<compile_context>
chip_gen: v5e
topology: v5e:2x2
jax: 0.10.0
libtpu: 0.0.40
codegen_flags: <defaults>
</compile_context>

<pallas_src>
import functools

import jax
import jax.numpy as jnp
from jax import lax
from jax.experimental import pallas as pl
from jax.experimental.pallas import tpu as pltpu


# ---------------------------------------------------------------------------
# small helpers
# ---------------------------------------------------------------------------
def _gelu(z, approximate):
    """GELU on an f32 tensor. Exact erf matches torch.nn.GELU() defaults."""
    if approximate:
        # tanh form lands in the EUP slot instead of the VALU erf polynomial.
        return jax.nn.gelu(z, approximate=True)
    return 0.5 * z * (1.0 + lax.erf(z * 0.7071067811865476))


def _vmem_budget_bytes():
    """~85% of per-core VMEM, always leaving >=12 MiB compiler headroom."""
    cap = None
    try:
        cap = getattr(pltpu.get_tpu_info(), "vmem_capacity_bytes", None)
    except Exception:
        cap = None
    if not cap:
        cap = 64 * 1024 * 1024          # conservative: v7x per-TC VMEM
    budget = min(int(cap * 0.85), cap - (12 << 20))
    return max(budget, 8 << 20)


def _sublane(itemsize):
    # rows per packed sublane group: 8 (f32), 16 (bf16), 32 (int8)
    return max(8, 32 // max(itemsize, 1))


def _tile_candidates(n, multiple, cap=2048):
    """Descending tile sizes that divide n and respect sublane packing."""
    cands = {t for t in (2048, 1024, 512, 256, 128, 64, 32, 16, 8)
             if t <= cap and t <= n and n % t == 0 and t % multiple == 0}
    if n <= cap:
        cands.add(n)                    # full-extent block is always legal
    return sorted(cands, reverse=True)


def _need_resident(tn, H, isz, wsz, w_bufs):
    return (2 * tn * H * isz            # x tile (double-buffered)
            + 2 * tn * H * isz          # out tile (double-buffered)
            + w_bufs * H * H * wsz      # resident W.T
            + 2 * H * 4                 # bias + mean (f32)
            + 2 * tn * H * 4)           # f32 matmul acc + GELU temporaries


def _need_ktiled(tn, tk, H, isz, wsz):
    return (2 * tn * tk * isz           # x tile
            + 2 * tk * H * wsz          # W.T tile (advances along k)
            + 2 * tn * H * isz          # out tile
            + tn * H * 4                # f32 accumulator scratch
            + 2 * H * 4                 # bias + mean
            + tn * H * 4)               # epilogue temporaries


def _need_fused(N, H, isz, wsz, w_bufs):
    return (2 * N * H * isz             # per-batch x slab (double-buffered)
            + 2 * N * H * isz           # out slab
            + w_bufs * H * H * wsz      # W.T
            + 2 * H * 4                 # bias
            + 2 * N * H * 4)            # f32 matmul result + GELU temporaries


# ---------------------------------------------------------------------------
# kernels
# ---------------------------------------------------------------------------
def _mean_bias_kernel(x_ref, b_ref, o_ref, acc_ref, *, inv_n):
    # x_ref: (tn1, H)   b_ref / o_ref / acc_ref: (1, H)
    k = pl.program_id(1)

    @pl.when(k == 0)
    def _():
        acc_ref[...] = jnp.zeros_like(acc_ref)

    acc_ref[...] += jnp.sum(x_ref[...].astype(jnp.float32), axis=0, keepdims=True)

    @pl.when(k == pl.num_programs(1) - 1)
    def _():
        o_ref[...] = acc_ref[...] * inv_n + b_ref[...].astype(jnp.float32)


def _gemm_resident_kernel(x_ref, wt_ref, bm_ref, o_ref, *, approximate, mxu_dtype):
    # x_ref: (tn, H)  wt_ref: (H, H)  bm_ref: (1, H) f32  o_ref: (tn, H)
    acc = jnp.dot(x_ref[...].astype(mxu_dtype), wt_ref[...],
                  preferred_element_type=jnp.float32)
    o_ref[...] = _gelu(acc + bm_ref[...], approximate).astype(o_ref.dtype)


def _gemm_ktiled_kernel(x_ref, wt_ref, bm_ref, o_ref, acc_ref, *,
                        approximate, mxu_dtype):
    # x_ref: (tn, tk)  wt_ref: (tk, H)  bm_ref: (1, H)  acc_ref: (tn, H) f32
    k = pl.program_id(2)

    @pl.when(k == 0)
    def _():
        acc_ref[...] = jnp.zeros_like(acc_ref)

    acc_ref[...] += jnp.dot(x_ref[...].astype(mxu_dtype), wt_ref[...],
                            preferred_element_type=jnp.float32)

    @pl.when(k == pl.num_programs(2) - 1)
    def _():
        o_ref[...] = _gelu(acc_ref[...] + bm_ref[...],
                           approximate).astype(o_ref.dtype)


def _fused_kernel(x_ref, wt_ref, b_ref, o_ref, *, inv_n, approximate, mxu_dtype):
    # x_ref / o_ref: (N, H) for one batch;  wt_ref: (H, H);  b_ref: (1, H)
    x = x_ref[...]
    mean = jnp.sum(x.astype(jnp.float32), axis=0, keepdims=True) * inv_n
    bias_mean = mean + b_ref[...].astype(jnp.float32)
    acc = jnp.dot(x.astype(mxu_dtype), wt_ref[...],
                  preferred_element_type=jnp.float32)
    o_ref[...] = _gelu(acc + bias_mean, approximate).astype(o_ref.dtype)


# ---------------------------------------------------------------------------
# wrapper
# ---------------------------------------------------------------------------
def _avno_block_impl(x, W, b, *, n_tile, use_bf16_mxu, approximate_gelu,
                     force_two_pass, force_k_tile, single_buffer_consts):
    B, N, H = x.shape
    isz = jnp.dtype(x.dtype).itemsize

    # MXU feed dtype: follow x, or force bf16 (faster on v6e/v7x MXU, halves
    # HBM read of W; small documented drift vs the f32-weight reference).
    mxu_dtype = (jnp.dtype(jnp.bfloat16)
                 if (use_bf16_mxu or x.dtype == jnp.bfloat16)
                 else jnp.dtype(x.dtype))
    wsz = mxu_dtype.itemsize

    wt = jnp.asarray(W).T.astype(mxu_dtype)            # (H_in, H_out)
    b2 = jnp.asarray(b).reshape(1, H).astype(jnp.float32)

    budget = _vmem_budget_bytes()
    w_bufs = 1 if single_buffer_consts else 2
    sub = _sublane(isz)

    def const_spec(shape, imap):
        # Blocks whose index map never advances: fetch once, keep one buffer.
        if single_buffer_consts:
            return pl.BlockSpec(shape, imap, pipeline_mode=pl.Buffered(1))
        return pl.BlockSpec(shape, imap)

    # -----------------------------------------------------------------
    # Path A: fused single pass -> one HBM read of x (mem-bound shapes).
    # -----------------------------------------------------------------
    slab_ok = (N * H * isz) <= (16 << 20)
    if (not force_two_pass and not force_k_tile and slab_ok
            and _need_fused(N, H, isz, wsz, w_bufs) <= budget):
        return pl.pallas_call(
            functools.partial(_fused_kernel, inv_n=1.0 / N,
                              approximate=approximate_gelu, mxu_dtype=mxu_dtype),
            out_shape=jax.ShapeDtypeStruct((B, N, H), x.dtype),
            grid_spec=pltpu.PrefetchScalarGridSpec(
                num_scalar_prefetch=0,
                grid=(B,),
                in_specs=[
                    pl.BlockSpec((None, N, H), lambda bi: (bi, 0, 0)),
                    const_spec((H, H), lambda bi: (0, 0)),
                    const_spec((1, H), lambda bi: (0, 0)),
                ],
                out_specs=pl.BlockSpec((None, N, H), lambda bi: (bi, 0, 0)),
            ),
            compiler_params=pltpu.CompilerParams(
                dimension_semantics=("parallel",),
                vmem_limit_bytes=budget,
            ),
        )(x, wt, b2)

    # -----------------------------------------------------------------
    # Path B, pass 1: bias_plus_mean[b] = b + mean_N(x[b])  (f32 accum).
    # Own, larger N tile: only the x tile occupies VMEM here.
    # -----------------------------------------------------------------
    cands1 = _tile_candidates(N, sub, cap=4096)
    tn1 = next((t for t in cands1 if 2 * t * H * isz + 4 * H * 4 <= budget),
               cands1[-1] if cands1 else N)

    bias_plus_mean = pl.pallas_call(
        functools.partial(_mean_bias_kernel, inv_n=1.0 / N),
        out_shape=jax.ShapeDtypeStruct((B, 1, H), jnp.float32),
        grid_spec=pltpu.PrefetchScalarGridSpec(
            num_scalar_prefetch=0,
            grid=(B, N // tn1),
            in_specs=[
                pl.BlockSpec((None, tn1, H), lambda bi, k: (bi, k, 0)),
                const_spec((1, H), lambda bi, k: (0, 0)),
            ],
            out_specs=pl.BlockSpec((None, 1, H), lambda bi, k: (bi, 0, 0)),
            scratch_shapes=[pltpu.VMEM((1, H), jnp.float32)],
        ),
        compiler_params=pltpu.CompilerParams(
            dimension_semantics=("parallel", "arbitrary"),
            vmem_limit_bytes=budget,
        ),
    )(x, b2)

    # -----------------------------------------------------------------
    # Path B, pass 2a: resident-W GEMM + GELU epilogue (grid (B, N/tn)).
    # -----------------------------------------------------------------
    cands = _tile_candidates(N, sub, cap=2048)

    tn = None
    if n_tile is not None:
        ok = (0 < n_tile <= N and N % n_tile == 0
              and (n_tile % sub == 0 or n_tile == N)
              and _need_resident(n_tile, H, isz, wsz, w_bufs) <= budget)
        if ok:
            tn = n_tile
    if tn is None:
        tn = next((t for t in cands
                   if _need_resident(t, H, isz, wsz, w_bufs) <= budget), None)

    if tn is not None and not force_k_tile:
        return pl.pallas_call(
            functools.partial(_gemm_resident_kernel,
                              approximate=approximate_gelu, mxu_dtype=mxu_dtype),
            out_shape=jax.ShapeDtypeStruct((B, N, H), x.dtype),
            grid_spec=pltpu.PrefetchScalarGridSpec(
                num_scalar_prefetch=0,
                grid=(B, N // tn),
                in_specs=[
                    pl.BlockSpec((None, tn, H), lambda bi, i: (bi, i, 0)),
                    const_spec((H, H), lambda bi, i: (0, 0)),        # W.T resident
                    pl.BlockSpec((None, 1, H), lambda bi, i: (bi, 0, 0)),
                ],
                out_specs=pl.BlockSpec((None, tn, H), lambda bi, i: (bi, i, 0)),
            ),
            compiler_params=pltpu.CompilerParams(
                dimension_semantics=("parallel", "parallel"),
                vmem_limit_bytes=budget,
            ),
        )(x, wt, bias_plus_mean)

    # -----------------------------------------------------------------
    # Path B, pass 2b: K-tiled GEMM for large H (W.T blocked along the
    # contraction dim, reduction axis last and "arbitrary").
    # -----------------------------------------------------------------
    tk_cands = [t for t in (2048, 1024, 512, 256, 128) if t < H and H % t == 0]
    cfg = None
    for t in cands:
        for tk in tk_cands:
            if _need_ktiled(t, tk, H, isz, wsz) <= budget:
                cfg = (t, tk)
                break
        if cfg is not None:
            break
    if cfg is None:
        # Degenerate fallback: smallest footprint we can still express.
        cfg = (cands[-1] if cands else N, tk_cands[-1] if tk_cands else H)
    tn, tk = cfg

    return pl.pallas_call(
        functools.partial(_gemm_ktiled_kernel,
                          approximate=approximate_gelu, mxu_dtype=mxu_dtype),
        out_shape=jax.ShapeDtypeStruct((B, N, H), x.dtype),
        grid_spec=pltpu.PrefetchScalarGridSpec(
            num_scalar_prefetch=0,
            grid=(B, N // tn, H // tk),
            in_specs=[
                pl.BlockSpec((None, tn, tk), lambda bi, i, k: (bi, i, k)),
                pl.BlockSpec((tk, H), lambda bi, i, k: (k, 0)),
                pl.BlockSpec((None, 1, H), lambda bi, i, k: (bi, 0, 0)),
            ],
            out_specs=pl.BlockSpec((None, tn, H), lambda bi, i, k: (bi, i, 0)),
            scratch_shapes=[pltpu.VMEM((tn, H), jnp.float32)],
        ),
        compiler_params=pltpu.CompilerParams(
            dimension_semantics=("parallel", "parallel", "arbitrary"),
            vmem_limit_bytes=budget,
        ),
    )(x, wt, bias_plus_mean)


def avno_block(x, W, b, *, n_tile=None, use_bf16_mxu=False,
               approximate_gelu=False, force_two_pass=False,
               force_k_tile=False):
    """AVNOBlock forward: gelu(x @ W.T + b + mean_N(x)).

    x: (B, N, H);  W: (H, H) as stored by nn.Linear;  b: (H,).
    use_bf16_mxu / approximate_gelu are performance knobs (off by default to
    match torch numerics); force_two_pass / force_k_tile select code paths.
    """
    kwargs = dict(n_tile=n_tile, use_bf16_mxu=use_bf16_mxu,
                  approximate_gelu=approximate_gelu,
                  force_two_pass=force_two_pass, force_k_tile=force_k_tile)
    try:
        return _avno_block_impl(x, W, b, single_buffer_consts=True, **kwargs)
    except Exception:
        # pl.Buffered(1) single-buffering of constant blocks is best-effort;
        # retry with default double-buffering if this JAX/Mosaic rejects it.
        return _avno_block_impl(x, W, b, single_buffer_consts=False, **kwargs)


# ---------------------------------------------------------------------------
# reference + self-test
# ---------------------------------------------------------------------------
def avno_block_ref(x, W, b):
    z = jnp.einsum("bnh,oh->bno", x, W) + b + jnp.mean(x, axis=1, keepdims=True)
    return 0.5 * z * (1.0 + lax.erf(z * 0.7071067811865476))


if __name__ == "__main__":
    key = jax.random.PRNGKey(0)
    kx, kw, kb = jax.random.split(key, 3)

    # Small, TPU-friendly shapes: lane-dense H (multiple of 128), N a
    # multiple of the row tile.
    B, N, H = 2, 256, 128
    x = jax.random.normal(kx, (B, N, H), dtype=jnp.float32)
    W = jax.random.normal(kw, (H, H), dtype=jnp.float32) * (1.0 / jnp.sqrt(H))
    b = jax.random.normal(kb, (H,), dtype=jnp.float32) * 0.1
    ref = avno_block_ref(x, W, b)

    # Path A: fused single pass (one HBM read of x).
    out_fused = jax.block_until_ready(avno_block(x, W, b))
    assert out_fused.shape == (B, N, H)
    err = float(jnp.max(jnp.abs(out_fused - ref)))
    assert jnp.allclose(out_fused, ref, atol=2e-4, rtol=2e-4), err

    # Path B: two-pass (mean folded into bias, resident-W GEMM).
    out_2p = jax.block_until_ready(
        avno_block(x, W, b, force_two_pass=True, n_tile=128))
    err2 = float(jnp.max(jnp.abs(out_2p - ref)))
    assert jnp.allclose(out_2p, ref, atol=2e-4, rtol=2e-4), err2

    # Path B (K-tiled GEMM): exercised with a larger hidden size.
    H2 = 256
    x2 = jax.random.normal(kx, (B, N, H2), dtype=jnp.float32)
    W2 = jax.random.normal(kw, (H2, H2), dtype=jnp.float32) * (1.0 / jnp.sqrt(H2))
    b2 = jax.random.normal(kb, (H2,), dtype=jnp.float32) * 0.1
    ref2 = avno_block_ref(x2, W2, b2)
    out_kt = jax.block_until_ready(
        avno_block(x2, W2, b2, force_two_pass=True, force_k_tile=True))
    errk = float(jnp.max(jnp.abs(out_kt - ref2)))
    assert jnp.allclose(out_kt, ref2, atol=2e-4, rtol=2e-4), errk

    print("KERNEL_OK")
</pallas_src>

<mosaic_0001>
module attributes {stable_mosaic.version = 11 : i64} {
  func.func @_fused_kernel(%arg0: i32, %arg1: memref<1x256x128xf32, #tpu.memory_space<vmem>>, %arg2: memref<128x128xf32, #tpu.memory_space<vmem>>, %arg3: memref<1x128xf32, #tpu.memory_space<vmem>>, %arg4: memref<1x256x128xf32, #tpu.memory_space<vmem>>) attributes {dimension_semantics = [#tpu.dimension_semantics<parallel>], iteration_bounds = array<i64: 2>, scalar_prefetch = 0 : i64, scratch_operands = 0 : i64, tpu.core_type = #tpu.core_type<tc>, window_params = [{transform_indices = @transform_0, window_bounds = array<i64: 1, 256, 128>}, {pipeline_mode = #tpu.pipeline_mode<synchronous>, transform_indices = @transform_1, window_bounds = array<i64: 128, 128>}, {pipeline_mode = #tpu.pipeline_mode<synchronous>, transform_indices = @transform_2, window_bounds = array<i64: 1, 128>}, {transform_indices = @transform_3, window_bounds = array<i64: 1, 256, 128>}]} {
    %c0 = arith.constant 0 : index
    %c0_0 = arith.constant 0 : index
    %c0_1 = arith.constant 0 : index
    %0 = vector.load %arg1[%c0, %c0_0, %c0_1] : memref<1x256x128xf32, #tpu.memory_space<vmem>>, vector<1x256x128xf32>
    %1 = vector.shape_cast %0 : vector<1x256x128xf32> to vector<256x128xf32>
    %cst = arith.constant dense<0.000000e+00> : vector<128xf32>
    %2 = vector.multi_reduction <add>, %1, %cst [0] : vector<256x128xf32> to vector<128xf32>
    %3 = vector.shape_cast %2 : vector<128xf32> to vector<1x128xf32>
    %cst_2 = arith.constant 3.906250e-03 : f32
    %4 = vector.broadcast %cst_2 : f32 to vector<1x128xf32>
    %5 = arith.mulf %3, %4 : vector<1x128xf32>
    %c0_3 = arith.constant 0 : index
    %c0_4 = arith.constant 0 : index
    %6 = vector.load %arg3[%c0_3, %c0_4] : memref<1x128xf32, #tpu.memory_space<vmem>>, vector<1x128xf32>
    %7 = arith.addf %5, %6 : vector<1x128xf32>
    %c0_5 = arith.constant 0 : index
    %c0_6 = arith.constant 0 : index
    %8 = vector.load %arg2[%c0_5, %c0_6] : memref<128x128xf32, #tpu.memory_space<vmem>>, vector<128x128xf32>
    %cst_7 = arith.constant dense<0.000000e+00> : vector<256x128xf32>
    %9 = tpu.matmul %1, %8, %cst_7 {dimension_numbers = #tpu.dot_dimension_numbers<[1], [0], [0], [1], [0, 0, 1, 1], [], []>} : vector<256x128xf32>, vector<128x128xf32>, vector<256x128xf32> -> vector<256x128xf32>
    %10 = vector.broadcast %7 : vector<1x128xf32> to vector<256x128xf32>
    %11 = arith.addf %9, %10 : vector<256x128xf32>
    %cst_8 = arith.constant 5.000000e-01 : f32
    %12 = vector.broadcast %cst_8 : f32 to vector<256x128xf32>
    %13 = arith.mulf %12, %11 : vector<256x128xf32>
    %cst_9 = arith.constant 0.707106769 : f32
    %14 = vector.broadcast %cst_9 : f32 to vector<256x128xf32>
    %15 = arith.mulf %11, %14 : vector<256x128xf32>
    %16 = math.erf %15 : vector<256x128xf32>
    %cst_10 = arith.constant 1.000000e+00 : f32
    %17 = vector.broadcast %cst_10 : f32 to vector<256x128xf32>
    %18 = arith.addf %17, %16 : vector<256x128xf32>
    %19 = arith.mulf %13, %18 : vector<256x128xf32>
    %c0_11 = arith.constant 0 : index
    %c0_12 = arith.constant 0 : index
    %c0_13 = arith.constant 0 : index
    %20 = vector.load %arg4[%c0_11, %c0_12, %c0_13] : memref<1x256x128xf32, #tpu.memory_space<vmem>>, vector<1x256x128xf32>
    %21 = vector.shape_cast %20 : vector<1x256x128xf32> to vector<256x128xf32>
    %22 = vector.shape_cast %19 : vector<256x128xf32> to vector<1x256x128xf32>
    tpu.vector_store %arg4[%c0_11, %c0_12, %c0_13], %22 {strides = array<i32>} : memref<1x256x128xf32, #tpu.memory_space<vmem>>, vector<1x256x128xf32>,
    return
  }
  func.func @transform_0(%arg0: i32) -> (i32, i32, i32) {
    %c0_i32 = arith.constant 0 : i32
    %c0_i32_0 = arith.constant 0 : i32
    %c0_i32_1 = arith.constant 0 : i32
    return %arg0, %c0_i32, %c0_i32_0 : i32, i32, i32
  }
  func.func @transform_1(%arg0: i32) -> (i32, i32) {
    %c0_i32 = arith.constant 0 : i32
    %c0_i32_0 = arith.constant 0 : i32
    %c0_i32_1 = arith.constant 0 : i32
    return %c0_i32, %c0_i32_0 : i32, i32
  }
  func.func @transform_2(%arg0: i32) -> (i32, i32) {
    %c0_i32 = arith.constant 0 : i32
    %c0_i32_0 = arith.constant 0 : i32
    %c0_i32_1 = arith.constant 0 : i32
    return %c0_i32, %c0_i32_0 : i32, i32
  }
  func.func @transform_3(%arg0: i32) -> (i32, i32, i32) {
    %c0_i32 = arith.constant 0 : i32
    %c0_i32_0 = arith.constant 0 : i32
    %c0_i32_1 = arith.constant 0 : i32
    return %arg0, %c0_i32, %c0_i32_0 : i32, i32, i32
  }
}

module attributes {stable_mosaic.version = 11 : i64} {
  func.func @_fused_kernel(%arg0: i32, %arg1: memref<1x256x128xf32, #tpu.memory_space<vmem>>, %arg2: memref<128x128xf32, #tpu.memory_space<vmem>>, %arg3: memref<1x128xf32, #tpu.memory_space<vmem>>, %arg4: memref<1x256x128xf32, #tpu.memory_space<vmem>>) attributes {dimension_semantics = [#tpu.dimension_semantics<parallel>], iteration_bounds = array<i64: 2>, scalar_prefetch = 0 : i64, scratch_operands = 0 : i64, tpu.core_type = #tpu.core_type<tc>, window_params = [{transform_indices = @transform_0, window_bounds = array<i64: 1, 256, 128>}, {pipeline_mode = #tpu.pipeline_mode<synchronous>, transform_indices = @transform_1, window_bounds = array<i64: 128, 128>}, {pipeline_mode = #tpu.pipeline_mode<synchronous>, transform_indices = @transform_2, window_bounds = array<i64: 1, 128>}, {transform_indices = @transform_3, window_bounds = array<i64: 1, 256, 128>}]} {
    %c0 = arith.constant 0 : index
    %c0_0 = arith.constant 0 : index
    %c0_1 = arith.constant 0 : index
    %0 = vector.load %arg1[%c0, %c0_0, %c0_1] : memref<1x256x128xf32, #tpu.memory_space<vmem>>, vector<1x256x128xf32>
    %1 = vector.shape_cast %0 : vector<1x256x128xf32> to vector<256x128xf32>
    %cst = arith.constant dense<0.000000e+00> : vector<128xf32>
    %2 = vector.multi_reduction <add>, %1, %cst [0] : vector<256x128xf32> to vector<128xf32>
    %3 = vector.shape_cast %2 : vector<128xf32> to vector<1x128xf32>
    %cst_2 = arith.constant 3.906250e-03 : f32
    %4 = vector.broadcast %cst_2 : f32 to vector<1x128xf32>
    %5 = arith.mulf %3, %4 : vector<1x128xf32>
    %c0_3 = arith.constant 0 : index
    %c0_4 = arith.constant 0 : index
    %6 = vector.load %arg3[%c0_3, %c0_4] : memref<1x128xf32, #tpu.memory_space<vmem>>, vector<1x128xf32>
    %7 = arith.addf %5, %6 : vector<1x128xf32>
    %c0_5 = arith.constant 0 : index
    %c0_6 = arith.constant 0 : index
    %8 = vector.load %arg2[%c0_5, %c0_6] : memref<128x128xf32, #tpu.memory_space<vmem>>, vector<128x128xf32>
    %cst_7 = arith.constant dense<0.000000e+00> : vector<256x128xf32>
    %9 = tpu.matmul %1, %8, %cst_7 {dimension_numbers = #tpu.dot_dimension_numbers<[1], [0], [0], [1], [0, 0, 1, 1], [], []>} : vector<256x128xf32>, vector<128x128xf32>, vector<256x128xf32> -> vector<256x128xf32>
    %10 = vector.broadcast %7 : vector<1x128xf32> to vector<256x128xf32>
    %11 = arith.addf %9, %10 : vector<256x128xf32>
    %cst_8 = arith.constant 5.000000e-01 : f32
    %12 = vector.broadcast %cst_8 : f32 to vector<256x128xf32>
    %13 = arith.mulf %12, %11 : vector<256x128xf32>
    %cst_9 = arith.constant 0.707106769 : f32
    %14 = vector.broadcast %cst_9 : f32 to vector<256x128xf32>
    %15 = arith.mulf %11, %14 : vector<256x128xf32>
    %16 = math.erf %15 : vector<256x128xf32>
    %cst_10 = arith.constant 1.000000e+00 : f32
    %17 = vector.broadcast %cst_10 : f32 to vector<256x128xf32>
    %18 = arith.addf %17, %16 : vector<256x128xf32>
    %19 = arith.mulf %13, %18 : vector<256x128xf32>
    %c0_11 = arith.constant 0 : index
    %c0_12 = arith.constant 0 : index
    %c0_13 = arith.constant 0 : index
    %20 = vector.load %arg4[%c0_11, %c0_12, %c0_13] : memref<1x256x128xf32, #tpu.memory_space<vmem>>, vector<1x256x128xf32>
    %21 = vector.shape_cast %20 : vector<1x256x128xf32> to vector<256x128xf32>
    %22 = vector.shape_cast %19 : vector<256x128xf32> to vector<1x256x128xf32>
    tpu.vector_store %arg4[%c0_11, %c0_12, %c0_13], %22 {strides = array<i32>} : memref<1x256x128xf32, #tpu.memory_space<vmem>>, vector<1x256x128xf32>,
    return
  }
  func.func @transform_0(%arg0: i32) -> (i32, i32, i32) {
    %c0_i32 = arith.constant 0 : i32
    %c0_i32_0 = arith.constant 0 : i32
    %c0_i32_1 = arith.constant 0 : i32
    return %arg0, %c0_i32, %c0_i32_0 : i32, i32, i32
  }
  func.func @transform_1(%arg0: i32) -> (i32, i32) {
    %c0_i32 = arith.constant 0 : i32
    %c0_i32_0 = arith.constant 0 : i32
    %c0_i32_1 = arith.constant 0 : i32
    return %c0_i32, %c0_i32_0 : i32, i32
  }
  func.func @transform_2(%arg0: i32) -> (i32, i32) {
    %c0_i32 = arith.constant 0 : i32
    %c0_i32_0 = arith.constant 0 : i32
    %c0_i32_1 = arith.constant 0 : i32
    return %c0_i32, %c0_i32_0 : i32, i32
  }
  func.func @transform_3(%arg0: i32) -> (i32, i32, i32) {
    %c0_i32 = arith.constant 0 : i32
    %c0_i32_0 = arith.constant 0 : i32
    %c0_i32_1 = arith.constant 0 : i32
    return %arg0, %c0_i32, %c0_i32_0 : i32, i32, i32
  }
}

</mosaic_0001>

<llo_original>
// kernel: tpu_custom_call.1
$region0: #{tpu_custom_call.1}
  #allocation0 [shape = 'u32[]', space=smem, size = 0x4, offset = 0x4, fixed_abs, tag = 'smem constant byte address 0x4 - core index']
  #allocation1 [shape = 'u32[72,128]{1,0:T(1,128)}', space=vmem, size = 0x9000, scoped, tag = 'internal scratch']
  %s0 = inlined_call_operand.hbm [shape: f32[2,256,128], index: 0, kind: input, shape index: {}]
  %s1 = inlined_call_operand.hbm [shape: f32[128,128], index: 1, kind: input, shape index: {}]
  %s2 = inlined_call_operand.vmem [shape: f32[1,128], index: 2, kind: input, shape index: {}]
  %s3 = inlined_call_operand.hbm [shape: f32[2,256,128], index: 3, kind: output, shape index: {}]
  %s4 = sld [smem:[#allocation0]]
  $region53: #{tpu_custom_call.1} parent=0
    _
  %s6 = ssub.s32 1, %s4
  %s7 = scalar_select 0, %s6, %s4
  $region1: #{tpu_custom_call.1} parent=0
    #allocation2 [shape = 'u8[262144]{0}', space=vmem, size = 0x40000, scoped, tag = 'input window, operand 0']
    #allocation3 [shape = 's32[2]{0}', space=sflag, size = 0x8, scoped, tag = 'scoped memory for tpu_custom_call.1']
    #allocation4 [shape = 's32[2]{0}', space=sflag, size = 0x8, scoped, tag = 'scoped memory for tpu_custom_call.1']
    #allocation5 [shape = 'u8[65536]{0}', space=vmem, size = 0x10000, scoped, tag = 'input window, operand 1, single buffered']
    #allocation6 [shape = 's32[1]{0}', space=sflag, size = 0x4, scoped, tag = 'scoped memory for tpu_custom_call.1']
    #allocation7 [shape = 'u8[262144]{0}', space=vmem, size = 0x40000, scoped, tag = 'output window, operand 0']
    %8 = vsyncpa [#allocation3], 0
    %s9 = scalar_lea.sflag [#allocation3], 1
    %10 = vsyncpa %s9, 0
    %11 = vsyncpa [#allocation6], 0
    %12 = vsyncpa [#allocation4], 0
    %s13 = scalar_lea.sflag [#allocation4], 1
    %14 = vsyncpa %s13, 0
    loop: start=0, step=1, limit=4
    $region2: #{tpu_custom_call.1} parent=1 // loop_pre_header
      _
    $region3: #{tpu_custom_call.1} parent=1 // loop_header
      %s16 = sphi 0, %s20
      %p17 = scmp.ge.s32.totalorder %s16, 4
      %s26 = sphi 0, %s28
      %s29 = sphi 0, %s26
      %s30 = sphi 0, %s29
      %s46 = sphi 0, %s30
      %s50 = sphi 0, %s50
      %s52 = sphi 0, %s50
      %s53 = sphi 0, %s52
      %s67 = sphi 0, %s53
      %s71 = sphi 0, %s71
      %s73 = sphi 0, %s71
      %s74 = sphi 0, %s73
      %s88 = sphi 0, %s74
      %s94 = sphi 0, %s96
      %s97 = sphi 0, %s94
      %s98 = sphi 0, %s97
      %s114 = sphi 0, %s98
    $region4: #{tpu_custom_call.1} parent=1 // loop_header_branch
      %19 = sbr.rel (%p17) target = $region8
    $region5: #{tpu_custom_call.1} parent=1 // loop_body
      %s21 = ssub.s32 %s16, 1
      %s22 = ssub.s32 %s16, 2
      %s23 = sadd.s32 %s16, 1
      %s24 = ssub.s32 %s16, %s23
      %p25 = scmp.eq.s32.totalorder %s24, 0
      %s27 = sadd.s32 %s26, 1
      %s28 = scalar_select %p25, %s26, %s27
      %p31 = pneg %p25
      %p32 = scmp.eq.s32.totalorder %s16, 1
      %p33 = por %p31, %p32
      %p34 = scmp.ne.s32.totalorder %s26, %s29
      %p35 = scmp.eq.s32.totalorder %s16, 0
      %p36 = por %p34, %p35
      %p37 = scmp.ne.s32.totalorder %s26, %s29
      %p38 = scmp.eq.s32.totalorder %s21, 1
      %p39 = por %p37, %p38
      %p40 = scmp.ne.s32.totalorder %s29, %s30
      %p41 = scmp.eq.s32.totalorder %s21, 0
      %p42 = por %p40, %p41
      %p43 = scmp.ne.s32.totalorder %s29, %s30
      %p44 = scmp.eq.s32.totalorder %s22, 1
      %p45 = por %p43, %p44
      %p47 = scmp.ne.s32.totalorder %s30, %s46
      %p48 = scmp.eq.s32.totalorder %s22, 0
      %p49 = por %p47, %p48
      %s51 = sadd.s32 %s50, 1
      %p54 = scmp.eq.s32.totalorder %s16, 1
      %p55 = scmp.ne.s32.totalorder %s50, %s52
      %p56 = scmp.eq.s32.totalorder %s16, 0
      %p57 = por %p55, %p56
      %p58 = scmp.ne.s32.totalorder %s50, %s52
      %p59 = scmp.eq.s32.totalorder %s21, 1
      %p60 = por %p58, %p59
      %p61 = scmp.ne.s32.totalorder %s52, %s53
      %p62 = scmp.eq.s32.totalorder %s21, 0
      %p63 = por %p61, %p62
      %p64 = scmp.ne.s32.totalorder %s52, %s53
      %p65 = scmp.eq.s32.totalorder %s22, 1
      %p66 = por %p64, %p65
      %p68 = scmp.ne.s32.totalorder %s53, %s67
      %p69 = scmp.eq.s32.totalorder %s22, 0
      %p70 = por %p68, %p69
      %s72 = sadd.s32 %s71, 1
      %p75 = scmp.eq.s32.totalorder %s16, 1
      %p76 = scmp.ne.s32.totalorder %s71, %s73
      %p77 = scmp.eq.s32.totalorder %s16, 0
      %p78 = por %p76, %p77
      %p79 = scmp.ne.s32.totalorder %s71, %s73
      %p80 = scmp.eq.s32.totalorder %s21, 1
      %p81 = por %p79, %p80
      %p82 = scmp.ne.s32.totalorder %s73, %s74
      %p83 = scmp.eq.s32.totalorder %s21, 0
      %p84 = por %p82, %p83
      %p85 = scmp.ne.s32.totalorder %s73, %s74
      %p86 = scmp.eq.s32.totalorder %s22, 1
      %p87 = por %p85, %p86
      %p89 = scmp.ne.s32.totalorder %s74, %s88
      %p90 = scmp.eq.s32.totalorder %s22, 0
      %p91 = por %p89, %p90
      %s92 = ssub.s32 %s16, %s23
      %p93 = scmp.eq.s32.totalorder %s92, 0
      %s95 = sadd.s32 %s94, 1
      %s96 = scalar_select %p93, %s94, %s95
      %p99 = pneg %p93
      %p100 = scmp.eq.s32.totalorder %s16, 1
      %p101 = por %p99, %p100
      %p102 = scmp.ne.s32.totalorder %s94, %s97
      %p103 = scmp.eq.s32.totalorder %s16, 0
      %p104 = por %p102, %p103
      %p105 = scmp.ne.s32.totalorder %s94, %s97
      %p106 = scmp.eq.s32.totalorder %s21, 1
      %p107 = por %p105, %p106
      %p108 = scmp.ne.s32.totalorder %s97, %s98
      %p109 = scmp.eq.s32.totalorder %s21, 0
      %p110 = por %p108, %p109
      %p111 = scmp.ne.s32.totalorder %s97, %s98
      %p112 = scmp.eq.s32.totalorder %s22, 1
      %p113 = por %p111, %p112
      %p115 = scmp.ne.s32.totalorder %s98, %s114
      %p116 = scmp.eq.s32.totalorder %s22, 0
      %p117 = por %p115, %p116
      %p118 = scmp.le.s32.totalorder 1, %s16
      %p119 = scmp.lt.s32.totalorder %s16, 3
      %p120 = pnand %p118, %p119
      %p121 = pneg %p120
      // Predicated region
      $region9: #{tpu_custom_call.1} parent=5 // pred_check
        _
      $region10: #{tpu_custom_call.1} parent=5 // pred_check_branch
        %123 = sbr.rel (%p120) target = $region12
      $region11: #{tpu_custom_call.1} parent=5 // pred_region
        %s124 = ssub.s32 %s16, 1
        // Predicated region
        $region13: #{tpu_custom_call.1} parent=11 // pred_check
          %p125 = pneg %p63
        $region14: #{tpu_custom_call.1} parent=11 // pred_check_branch
          %127 = sbr.rel (%p125) target = $region16
        $region15: #{tpu_custom_call.1} parent=11 // pred_region
          %129 = vsyncadd [#allocation6], 0
          %s130 = sshll.u32 %s1, 4
          %s131 = int_to_ptr.hbm [resolvable:$true] %s130
          %s132 = sshll.u32 [#allocation5], 4
          %s133 = int_to_ptr.vmem [resolvable:$true] %s132
          %138 = dma.hbm_to_vmem [thread:$0]  %s131, 2048, %s133, [#allocation6], 128, 128, 8
        $region16: #{tpu_custom_call.1} parent=11 // pred_fallthru
          _
        // Predicated region
        $region17: #{tpu_custom_call.1} parent=11 // pred_check
          %p139 = pneg %p84
        $region18: #{tpu_custom_call.1} parent=11 // pred_check_branch
          %141 = sbr.rel (%p139) target = $region20
        $region19: #{tpu_custom_call.1} parent=11 // pred_region
          _
        $region20: #{tpu_custom_call.1} parent=11 // pred_fallthru
          _
      $region12: #{tpu_custom_call.1} parent=5 // pred_fallthru
        _
      %p142 = scmp.lt.s32.totalorder %s16, 2
      // Predicated region
      $region21: #{tpu_custom_call.1} parent=5 // pred_check
        %p143 = pneg %p142
      $region22: #{tpu_custom_call.1} parent=5 // pred_check_branch
        %145 = sbr.rel (%p143) target = $region24
      $region23: #{tpu_custom_call.1} parent=5 // pred_region
        // Predicated region
        $region25: #{tpu_custom_call.1} parent=23 // pred_check
          %p146 = pneg %p36
        $region26: #{tpu_custom_call.1} parent=23 // pred_check_branch
          %148 = sbr.rel (%p146) target = $region28
        $region27: #{tpu_custom_call.1} parent=23 // pred_region
          %s149 = sand.u32 %s26, 1
          %s150 = scalar_lea.sflag [#allocation3], %s149
          %s151 = sand.u32 %s26, 1
          %s152 = smul.addr %s151, 256
          %s153 = scalar_lea.vmem [#allocation2], %s152
          %155 = vsyncadd %s150, 0
          %s156 = smul.addr %s16, 32
          %s157 = smul.addr %s156, 8
          %s158 = scalar_lea.hbm %s0, %s157
          %s159 = sshll.u32 %s158, 4
          %s160 = int_to_ptr.hbm [resolvable:$true] %s159
          %s161 = sshll.u32 %s153, 4
          %s162 = int_to_ptr.vmem [resolvable:$true] %s161
          %167 = dma.hbm_to_vmem [thread:$0]  %s160, 4096, %s162, %s150, 128, 128, 8
        $region28: #{tpu_custom_call.1} parent=23 // pred_fallthru
          _
      $region24: #{tpu_custom_call.1} parent=5 // pred_fallthru
        _
      %p168 = scmp.le.s32.totalorder 1, %s16
      %p169 = scmp.lt.s32.totalorder %s16, 3
      %p170 = pnand %p168, %p169
      %p171 = pneg %p170
      // Predicated region
      $region29: #{tpu_custom_call.1} parent=5 // pred_check
        _
      $region30: #{tpu_custom_call.1} parent=5 // pred_check_branch
        %173 = sbr.rel (%p170) target = $region32
      $region31: #{tpu_custom_call.1} parent=5 // pred_region
        %s174 = ssub.s32 %s16, 1
        %s175 = sand.u32 %s29, 1
        %s176 = scalar_lea.sflag [#allocation3], %s175
        %s177 = sand.u32 %s29, 1
        %s178 = smul.addr %s177, 256
        %s179 = scalar_lea.vmem [#allocation2], %s178
        // Predicated region
        $region33: #{tpu_custom_call.1} parent=31 // pred_check
          %p180 = pneg %p42
        $region34: #{tpu_custom_call.1} parent=31 // pred_check_branch
          %182 = sbr.rel (%p180) target = $region36
        $region35: #{tpu_custom_call.1} parent=31 // pred_region
          %184 = dma.done %s176, 4096
        $region36: #{tpu_custom_call.1} parent=31 // pred_fallthru
          _
        // Predicated region
        $region37: #{tpu_custom_call.1} parent=31 // pred_check
          %p185 = pneg %p63
        $region38: #{tpu_custom_call.1} parent=31 // pred_check_branch
          %187 = sbr.rel (%p185) target = $region40
        $region39: #{tpu_custom_call.1} parent=31 // pred_region
          %189 = dma.done [#allocation6], 2048
        $region40: #{tpu_custom_call.1} parent=31 // pred_fallthru
          _
        %s190 = sand.u32 %s29, 1
        %s191 = scalar_lea.sflag [#allocation3], %s190
        %s192 = sand.u32 %s29, 1
        %s193 = smul.addr %s192, 256
        %s194 = scalar_lea.vmem [#allocation2], %s193
        %p195 = pneg %p42
        %p196 = pneg %p39
        %p197 = pneg %p63
        %p198 = pneg %p60
        %p199 = pneg %p84
        %p200 = pneg %p81
        %p201 = pneg %p110
        %p202 = pneg %p107
        %s203 = sand.u32 %s97, 1
        %s204 = scalar_lea.sflag [#allocation4], %s203
        %s205 = sand.u32 %s97, 1
        %s206 = smul.addr %s205, 256
        %s207 = scalar_lea.vmem [#allocation7], %s206
        %v208 = vld [vmem:[%s179] sm:$0xff]
        %v209 = vld [vmem:[%s179 + $0x8] sm:$0xff]
        %v210 = vld [vmem:[%s179 + $0x10] sm:$0xff]
        %v211 = vld [vmem:[%s179 + $0x18] sm:$0xff]
        %v212 = vld [vmem:[%s179 + $0x20] sm:$0xff]
        %v213 = vld [vmem:[%s179 + $0x28] sm:$0xff]
        %v214 = vld [vmem:[%s179 + $0x30] sm:$0xff]
        %v215 = vld [vmem:[%s179 + $0x38] sm:$0xff]
        %v216 = vld [vmem:[%s179 + $0x40] sm:$0xff]
        %v217 = vld [vmem:[%s179 + $0x48] sm:$0xff]
        %v218 = vld [vmem:[%s179 + $0x50] sm:$0xff]
        %v219 = vld [vmem:[%s179 + $0x58] sm:$0xff]
        %v220 = vld [vmem:[%s179 + $0x60] sm:$0xff]
        %v221 = vld [vmem:[%s179 + $0x68] sm:$0xff]
        %v222 = vld [vmem:[%s179 + $0x70] sm:$0xff]
        %v223 = vld [vmem:[%s179 + $0x78] sm:$0xff]
        %v224 = vld [vmem:[%s179 + $0x80] sm:$0xff]
        %v225 = vld [vmem:[%s179 + $0x88] sm:$0xff]
        %v226 = vld [vmem:[%s179 + $0x90] sm:$0xff]
        %v227 = vld [vmem:[%s179 + $0x98] sm:$0xff]
        %v228 = vld [vmem:[%s179 + $0xa0] sm:$0xff]
        %v229 = vld [vmem:[%s179 + $0xa8] sm:$0xff]
        %v230 = vld [vmem:[%s179 + $0xb0] sm:$0xff]
        %v231 = vld [vmem:[%s179 + $0xb8] sm:$0xff]
        %v232 = vld [vmem:[%s179 + $0xc0] sm:$0xff]
        %v233 = vld [vmem:[%s179 + $0xc8] sm:$0xff]
        %v234 = vld [vmem:[%s179 + $0xd0] sm:$0xff]
        %v235 = vld [vmem:[%s179 + $0xd8] sm:$0xff]
        %v236 = vld [vmem:[%s179 + $0xe0] sm:$0xff]
        %v237 = vld [vmem:[%s179 + $0xe8] sm:$0xff]
        %v238 = vld [vmem:[%s179 + $0xf0] sm:$0xff]
        %v239 = vld [vmem:[%s179 + $0xf8] sm:$0xff]
        %v240 = vadd.f32 %v208, %v209
        %v241 = vadd.f32 %v240, %v210
        %v242 = vadd.f32 %v241, %v211
        %v243 = vadd.f32 %v242, %v212
        %v244 = vadd.f32 %v243, %v213
        %v245 = vadd.f32 %v244, %v214
        %v246 = vadd.f32 %v245, %v215
        %v247 = vadd.f32 %v246, %v216
        %v248 = vadd.f32 %v247, %v217
        %v249 = vadd.f32 %v248, %v218
        %v250 = vadd.f32 %v249, %v219
        %v251 = vadd.f32 %v250, %v220
        %v252 = vadd.f32 %v251, %v221
        %v253 = vadd.f32 %v252, %v222
        %v254 = vadd.f32 %v253, %v223
        %v255 = vadd.f32 %v254, %v224
        %v256 = vadd.f32 %v255, %v225
        %v257 = vadd.f32 %v256, %v226
        %v258 = vadd.f32 %v257, %v227
        %v259 = vadd.f32 %v258, %v228
        %v260 = vadd.f32 %v259, %v229
        %v261 = vadd.f32 %v260, %v230
        %v262 = vadd.f32 %v261, %v231
        %v263 = vadd.f32 %v262, %v232
        %v264 = vadd.f32 %v263, %v233
        %v265 = vadd.f32 %v264, %v234
        %v266 = vadd.f32 %v265, %v235
        %v267 = vadd.f32 %v266, %v236
        %v268 = vadd.f32 %v267, %v237
        %v269 = vadd.f32 %v268, %v238
        %v270 = vadd.f32 %v269, %v239
        %v271 = vrot.slane %v270, 4
        %v272 = vadd.f32 %v270, %v271
        %v273 = vrot.slane %v272, 2
        %v274 = vadd.f32 %v272, %v273
        %v275 = vrot.slane %v274, 1
        %v276 = vadd.f32 %v274, %v275
        %v277 = vmul.f32 %v276, 0.00390625
        %v278 = vld [vmem:[%s2] sm:$0x1]
        %v279 = vadd.f32 %v277, %v278
        %v280 = vld [vmem:[#allocation5] sm:$0xff]
        %v281 = vld [vmem:[#allocation5 + $0x8] sm:$0xff]
        %v282 = vld [vmem:[#allocation5 + $0x10] sm:$0xff]
        %v283 = vld [vmem:[#allocation5 + $0x18] sm:$0xff]
        %v284 = vld [vmem:[#allocation5 + $0x20] sm:$0xff]
        %v285 = vld [vmem:[#allocation5 + $0x28] sm:$0xff]
        %v286 = vld [vmem:[#allocation5 + $0x30] sm:$0xff]
        %v287 = vld [vmem:[#allocation5 + $0x38] sm:$0xff]
        %v288 = vld [vmem:[#allocation5 + $0x40] sm:$0xff]
        %v289 = vld [vmem:[#allocation5 + $0x48] sm:$0xff]
        %v290 = vld [vmem:[#allocation5 + $0x50] sm:$0xff]
        %v291 = vld [vmem:[#allocation5 + $0x58] sm:$0xff]
        %v292 = vld [vmem:[#allocation5 + $0x60] sm:$0xff]
        %v293 = vld [vmem:[#allocation5 + $0x68] sm:$0xff]
        %v294 = vld [vmem:[#allocation5 + $0x70] sm:$0xff]
        %v295 = vld [vmem:[#allocation5 + $0x78] sm:$0xff]
        %v296 = vperm.slane %v279, 0
        %297 = vmatpush.msra.mxu0 %v295
        %298 = vmatpush.msra.mxu0 %v294
        %299 = vmatpush.msra.mxu0 %v293
        %300 = vmatpush.msra.mxu0 %v292
        %301 = vmatpush.msra.mxu0 %v291
        %302 = vmatpush.msra.mxu0 %v290
        %303 = vmatpush.msra.mxu0 %v289
        %304 = vmatpush.msra.mxu0 %v288
        %305 = vmatpush.msra.mxu0 %v287
        %306 = vmatpush.msra.mxu0 %v286
        %307 = vmatpush.msra.mxu0 %v285
        %308 = vmatpush.msra.mxu0 %v284
        %309 = vmatpush.msra.mxu0 %v283
        %310 = vmatpush.msra.mxu0 %v282
        %311 = vmatpush.msra.mxu0 %v281
        %312 = vmatpush.msra.mxu0 %v280
        %313 = vmatmul.f32.gmra.mxu0 %v208
        %v314 = vpop.f32.mrf.mxu0
        %v315 = vadd.f32 %v296, %v314
        %316 = vmatmul.f32.gmra.mxu0 %v209
        %v317 = vpop.f32.mrf.mxu0
        %v318 = vadd.f32 %v296, %v317
        %319 = vmatmul.f32.gmra.mxu0 %v210
        %v320 = vpop.f32.mrf.mxu0
        %v321 = vadd.f32 %v296, %v320
        %322 = vmatmul.f32.gmra.mxu0 %v211
        %v323 = vpop.f32.mrf.mxu0
        %v324 = vadd.f32 %v296, %v323
        %325 = vmatmul.f32.gmra.mxu0 %v212
        %v326 = vpop.f32.mrf.mxu0
        %v327 = vadd.f32 %v296, %v326
        %328 = vmatmul.f32.gmra.mxu0 %v213
        %v329 = vpop.f32.mrf.mxu0
        %v330 = vadd.f32 %v296, %v329
        %331 = vmatmul.f32.gmra.mxu0 %v214
        %v332 = vpop.f32.mrf.mxu0
        %v333 = vadd.f32 %v296, %v332
        %334 = vmatmul.f32.gmra.mxu0 %v215
        %v335 = vpop.f32.mrf.mxu0
        %v336 = vadd.f32 %v296, %v335
        %337 = vmatmul.f32.gmra.mxu0 %v216
        %v338 = vpop.f32.mrf.mxu0
        %v339 = vadd.f32 %v296, %v338
        %340 = vmatmul.f32.gmra.mxu0 %v217
        %v341 = vpop.f32.mrf.mxu0
        %v342 = vadd.f32 %v296, %v341
        %343 = vmatmul.f32.gmra.mxu0 %v218
        %v344 = vpop.f32.mrf.mxu0
        %v345 = vadd.f32 %v296, %v344
        %346 = vmatmul.f32.gmra.mxu0 %v219
        %v347 = vpop.f32.mrf.mxu0
        %v348 = vadd.f32 %v296, %v347
        %349 = vmatmul.f32.gmra.mxu0 %v220
        %v350 = vpop.f32.mrf.mxu0
        %v351 = vadd.f32 %v296, %v350
        %352 = vmatmul.f32.gmra.mxu0 %v221
        %v353 = vpop.f32.mrf.mxu0
        %v354 = vadd.f32 %v296, %v353
        %355 = vmatmul.f32.gmra.mxu0 %v222
        %v356 = vpop.f32.mrf.mxu0
        %v357 = vadd.f32 %v296, %v356
        %358 = vmatmul.f32.gmra.mxu0 %v223
        %v359 = vpop.f32.mrf.mxu0
        %v360 = vadd.f32 %v296, %v359
        %361 = vmatmul.f32.gmra.mxu0 %v224
        %v362 = vpop.f32.mrf.mxu0
        %v363 = vadd.f32 %v296, %v362
        %364 = vmatmul.f32.gmra.mxu0 %v225
        %v365 = vpop.f32.mrf.mxu0
        %v366 = vadd.f32 %v296, %v365
        %367 = vmatmul.f32.gmra.mxu0 %v226
        %v368 = vpop.f32.mrf.mxu0
        %v369 = vadd.f32 %v296, %v368
        %370 = vmatmul.f32.gmra.mxu0 %v227
        %v371 = vpop.f32.mrf.mxu0
        %v372 = vadd.f32 %v296, %v371
        %373 = vmatmul.f32.gmra.mxu0 %v228
        %v374 = vpop.f32.mrf.mxu0
        %v375 = vadd.f32 %v296, %v374
        %376 = vmatmul.f32.gmra.mxu0 %v229
        %v377 = vpop.f32.mrf.mxu0
        %v378 = vadd.f32 %v296, %v377
        %379 = vmatmul.f32.gmra.mxu0 %v230
        %v380 = vpop.f32.mrf.mxu0
        %v381 = vadd.f32 %v296, %v380
        %382 = vmatmul.f32.gmra.mxu0 %v231
        %v383 = vpop.f32.mrf.mxu0
        %v384 = vadd.f32 %v296, %v383
        %385 = vmatmul.f32.gmra.mxu0 %v232
        %v386 = vpop.f32.mrf.mxu0
        %v387 = vadd.f32 %v296, %v386
        %388 = vmatmul.f32.gmra.mxu0 %v233
        %v389 = vpop.f32.mrf.mxu0
        %v390 = vadd.f32 %v296, %v389
        %391 = vmatmul.f32.gmra.mxu0 %v234
        %v392 = vpop.f32.mrf.mxu0
        %v393 = vadd.f32 %v296, %v392
        %394 = vmatmul.f32.gmra.mxu0 %v235
        %v395 = vpop.f32.mrf.mxu0
        %v396 = vadd.f32 %v296, %v395
        %397 = vmatmul.f32.gmra.mxu0 %v236
        %v398 = vpop.f32.mrf.mxu0
        %v399 = vadd.f32 %v296, %v398
        %400 = vmatmul.f32.gmra.mxu0 %v237
        %v401 = vpop.f32.mrf.mxu0
        %v402 = vadd.f32 %v296, %v401
        %403 = vmatmul.f32.gmra.mxu0 %v238
        %v404 = vpop.f32.mrf.mxu0
        %v405 = vadd.f32 %v296, %v404
        %406 = vmatmul.f32.gmra.mxu0 %v239
        %v407 = vpop.f32.mrf.mxu0
        %v408 = vadd.f32 %v296, %v407
        %409 = vdwg.mxu0
        %v410 = vmul.f32 %v315, 0.5
        %v411 = vmul.f32 %v318, 0.5
        %v412 = vmul.f32 %v321, 0.5
        %v413 = vmul.f32 %v324, 0.5
        %v414 = vmul.f32 %v327, 0.5
        %v415 = vmul.f32 %v330, 0.5
        %v416 = vmul.f32 %v333, 0.5
        %v417 = vmul.f32 %v336, 0.5
        %v418 = vmul.f32 %v339, 0.5
        %v419 = vmul.f32 %v342, 0.5
        %v420 = vmul.f32 %v345, 0.5
        %v421 = vmul.f32 %v348, 0.5
        %v422 = vmul.f32 %v351, 0.5
        %v423 = vmul.f32 %v354, 0.5
        %v424 = vmul.f32 %v357, 0.5
        %v425 = vmul.f32 %v360, 0.5
        %v426 = vmul.f32 %v363, 0.5
        %v427 = vmul.f32 %v366, 0.5
        %v428 = vmul.f32 %v369, 0.5
        %v429 = vmul.f32 %v372, 0.5
        %v430 = vmul.f32 %v375, 0.5
        %v431 = vmul.f32 %v378, 0.5
        %v432 = vmul.f32 %v381, 0.5
        %v433 = vmul.f32 %v384, 0.5
        %v434 = vmul.f32 %v387, 0.5
        %v435 = vmul.f32 %v390, 0.5
        %v436 = vmul.f32 %v393, 0.5
        %v437 = vmul.f32 %v396, 0.5
        %v438 = vmul.f32 %v399, 0.5
        %v439 = vmul.f32 %v402, 0.5
        %v440 = vmul.f32 %v405, 0.5
        %v441 = vmul.f32 %v408, 0.5
        %v442 = vmul.f32 %v315, 0.70710677
        %v443 = vmul.f32 %v318, 0.70710677
        %v444 = vmul.f32 %v321, 0.70710677
        %v445 = vmul.f32 %v324, 0.70710677
        %v446 = vmul.f32 %v327, 0.70710677
        %v447 = vmul.f32 %v330, 0.70710677
        %v448 = vmul.f32 %v333, 0.70710677
        %v449 = vmul.f32 %v336, 0.70710677
        %v450 = vmul.f32 %v339, 0.70710677
        %v451 = vmul.f32 %v342, 0.70710677
        %v452 = vmul.f32 %v345, 0.70710677
        %v453 = vmul.f32 %v348, 0.70710677
        %v454 = vmul.f32 %v351, 0.70710677
        %v455 = vmul.f32 %v354, 0.70710677
        %v456 = vmul.f32 %v357, 0.70710677
        %v457 = vmul.f32 %v360, 0.70710677
        %v458 = vmul.f32 %v363, 0.70710677
        %v459 = vmul.f32 %v366, 0.70710677
        %v460 = vmul.f32 %v369, 0.70710677
        %v461 = vmul.f32 %v372, 0.70710677
        %v462 = vmul.f32 %v375, 0.70710677
        %v463 = vmul.f32 %v378, 0.70710677
        %v464 = vmul.f32 %v381, 0.70710677
        %v465 = vmul.f32 %v384, 0.70710677
        %v466 = vmul.f32 %v387, 0.70710677
        %v467 = vmul.f32 %v390, 0.70710677
        %v468 = vmul.f32 %v393, 0.70710677
        %v469 = vmul.f32 %v396, 0.70710677
        %v470 = vmul.f32 %v399, 0.70710677
        %v471 = vmul.f32 %v402, 0.70710677
        %v472 = vmul.f32 %v405, 0.70710677
        %v473 = vmul.f32 %v408, 0.70710677
        %v474 = vmul.f32 %v442, %v442
        %v475 = vmin.f32 16.0, %v474
        %v476 = vmul.f32 %v475, 2.1237322e-06
        %v477 = vadd.f32 %v476, 0.00028619796
        %v478 = vmul.f32 %v475, %v477
        %v479 = vadd.f32 %v478, 0.0036580483
        %v480 = vmul.f32 %v475, %v479
        %v481 = vadd.f32 %v480, 0.05243302
        %v482 = vmul.f32 %v475, %v481
        %v483 = vadd.f32 %v482, 0.18741608
        %v484 = vmul.f32 %v475, %v483
        %v485 = vadd.f32 %v484, 1.1283791
        %v486 = vmul.f32 %v442, %v485
        %v487 = vmul.f32 %v475, 3.8918573e-05
        %v488 = vadd.f32 %v487, 0.001143296
        %v489 = vmul.f32 %v475, %v488
        %v490 = vadd.f32 %v489, 0.014752088
        %v491 = vmul.f32 %v475, %v490
        %v492 = vadd.f32 %v491, 0.112945676
        %v493 = vmul.f32 %v475, %v492
        %v494 = vadd.f32 %v493, 0.4994258
        %v495 = vmul.f32 %v475, %v494
        %v496 = vadd.f32 %v495, 1.0
        %v497 = vrcp.pop %v496
        %v498 = vmul.f32 %v496, %v497
        %v499 = vsub.f32 1.0, %v498
        %v500 = vmul.f32 %v497, %v499
        %v501 = vadd.f32 %v497, %v500
        %vm502 = vweird.f32 %v496
        %vm503 = vweird.f32 %v497
        %vm504 = vmor %vm502, %vm503
        %v505 = vsel %vm504, %v497, %v501
        %v506 = vand.u32 2147483647, %v496
        %vm507 = vcmp.eq.f32.partialorder %v506, 8.507059e+37
        %v508 = vand.u32 %v496, 2147483648
        %v509 = vor.u32 1.1754944e-38, %v508
        %v510 = vsel %vm507, %v509, %v505
        %v511 = vmul.f32 %v486, %v510
        %v512 = vmin.f32 %v511, 1.0
        %v513 = vmax.f32 %v512, -1.0
        %v514 = vmul.f32 %v443, %v443
        %v515 = vmin.f32 16.0, %v514
        %v516 = vmul.f32 %v515, 2.1237322e-06
        %v517 = vadd.f32 %v516, 0.00028619796
        %v518 = vmul.f32 %v515, %v517
        %v519 = vadd.f32 %v518, 0.0036580483
        %v520 = vmul.f32 %v515, %v519
        %v521 = vadd.f32 %v520, 0.05243302
        %v522 = vmul.f32 %v515, %v521
        %v523 = vadd.f32 %v522, 0.18741608
        %v524 = vmul.f32 %v515, %v523
        %v525 = vadd.f32 %v524, 1.1283791
        %v526 = vmul.f32 %v443, %v525
        %v527 = vmul.f32 %v515, 3.8918573e-05
        %v528 = vadd.f32 %v527, 0.001143296
        %v529 = vmul.f32 %v515, %v528
        %v530 = vadd.f32 %v529, 0.014752088
        %v531 = vmul.f32 %v515, %v530
        %v532 = vadd.f32 %v531, 0.112945676
        %v533 = vmul.f32 %v515, %v532
        %v534 = vadd.f32 %v533, 0.4994258
        %v535 = vmul.f32 %v515, %v534
        %v536 = vadd.f32 %v535, 1.0
        %v537 = vrcp.pop %v536
        %v538 = vmul.f32 %v536, %v537
        %v539 = vsub.f32 1.0, %v538
        %v540 = vmul.f32 %v537, %v539
        %v541 = vadd.f32 %v537, %v540
        %vm542 = vweird.f32 %v536
        %vm543 = vweird.f32 %v537
        %vm544 = vmor %vm542, %vm543
        %v545 = vsel %vm544, %v537, %v541
        %v546 = vand.u32 2147483647, %v536
        %vm547 = vcmp.eq.f32.partialorder %v546, 8.507059e+37
        %v548 = vand.u32 %v536, 2147483648
        %v549 = vor.u32 1.1754944e-38, %v548
        %v550 = vsel %vm547, %v549, %v545
        %v551 = vmul.f32 %v526, %v550
        %v552 = vmin.f32 %v551, 1.0
        %v553 = vmax.f32 %v552, -1.0
        %v554 = vmul.f32 %v444, %v444
        %v555 = vmin.f32 16.0, %v554
        %v556 = vmul.f32 %v555, 2.1237322e-06
        %v557 = vadd.f32 %v556, 0.00028619796
        %v558 = vmul.f32 %v555, %v557
        %v559 = vadd.f32 %v558, 0.0036580483
        %v560 = vmul.f32 %v555, %v559
        %v561 = vadd.f32 %v560, 0.05243302
        %v562 = vmul.f32 %v555, %v561
        %v563 = vadd.f32 %v562, 0.18741608
        %v564 = vmul.f32 %v555, %v563
        %v565 = vadd.f32 %v564, 1.1283791
        %v566 = vmul.f32 %v444, %v565
        %v567 = vmul.f32 %v555, 3.8918573e-05
        %v568 = vadd.f32 %v567, 0.001143296
        %v569 = vmul.f32 %v555, %v568
        %v570 = vadd.f32 %v569, 0.014752088
        %v571 = vmul.f32 %v555, %v570
        %v572 = vadd.f32 %v571, 0.112945676
        %v573 = vmul.f32 %v555, %v572
        %v574 = vadd.f32 %v573, 0.4994258
        %v575 = vmul.f32 %v555, %v574
        %v576 = vadd.f32 %v575, 1.0
        %v577 = vrcp.pop %v576
        %v578 = vmul.f32 %v576, %v577
        %v579 = vsub.f32 1.0, %v578
        %v580 = vmul.f32 %v577, %v579
        %v581 = vadd.f32 %v577, %v580
        %vm582 = vweird.f32 %v576
        %vm583 = vweird.f32 %v577
        %vm584 = vmor %vm582, %vm583
        %v585 = vsel %vm584, %v577, %v581
        %v586 = vand.u32 2147483647, %v576
        %vm587 = vcmp.eq.f32.partialorder %v586, 8.507059e+37
        %v588 = vand.u32 %v576, 2147483648
        %v589 = vor.u32 1.1754944e-38, %v588
        %v590 = vsel %vm587, %v589, %v585
        %v591 = vmul.f32 %v566, %v590
        %v592 = vmin.f32 %v591, 1.0
        %v593 = vmax.f32 %v592, -1.0
        %v594 = vmul.f32 %v445, %v445
        %v595 = vmin.f32 16.0, %v594
        %v596 = vmul.f32 %v595, 2.1237322e-06
        %v597 = vadd.f32 %v596, 0.00028619796
        %v598 = vmul.f32 %v595, %v597
        %v599 = vadd.f32 %v598, 0.0036580483
        %v600 = vmul.f32 %v595, %v599
        %v601 = vadd.f32 %v600, 0.05243302
        %v602 = vmul.f32 %v595, %v601
        %v603 = vadd.f32 %v602, 0.18741608
        %v604 = vmul.f32 %v595, %v603
        %v605 = vadd.f32 %v604, 1.1283791
        %v606 = vmul.f32 %v445, %v605
        %v607 = vmul.f32 %v595, 3.8918573e-05
        %v608 = vadd.f32 %v607, 0.001143296
        %v609 = vmul.f32 %v595, %v608
        %v610 = vadd.f32 %v609, 0.014752088
        %v611 = vmul.f32 %v595, %v610
        %v612 = vadd.f32 %v611, 0.112945676
        %v613 = vmul.f32 %v595, %v612
        %v614 = vadd.f32 %v613, 0.4994258
        %v615 = vmul.f32 %v595, %v614
        %v616 = vadd.f32 %v615, 1.0
        %v617 = vrcp.pop %v616
        %v618 = vmul.f32 %v616, %v617
        %v619 = vsub.f32 1.0, %v618
        %v620 = vmul.f32 %v617, %v619
        %v621 = vadd.f32 %v617, %v620
        %vm622 = vweird.f32 %v616
        %vm623 = vweird.f32 %v617
        %vm624 = vmor %vm622, %vm623
        %v625 = vsel %vm624, %v617, %v621
        %v626 = vand.u32 2147483647, %v616
        %vm627 = vcmp.eq.f32.partialorder %v626, 8.507059e+37
        %v628 = vand.u32 %v616, 2147483648
        %v629 = vor.u32 1.1754944e-38, %v628
        %v630 = vsel %vm627, %v629, %v625
        %v631 = vmul.f32 %v606, %v630
        %v632 = vmin.f32 %v631, 1.0
        %v633 = vmax.f32 %v632, -1.0
        %v634 = vmul.f32 %v446, %v446
        %v635 = vmin.f32 16.0, %v634
        %v636 = vmul.f32 %v635, 2.1237322e-06
        %v637 = vadd.f32 %v636, 0.00028619796
        %v638 = vmul.f32 %v635, %v637
        %v639 = vadd.f32 %v638, 0.0036580483
        %v640 = vmul.f32 %v635, %v639
        %v641 = vadd.f32 %v640, 0.05243302
        %v642 = vmul.f32 %v635, %v641
        %v643 = vadd.f32 %v642, 0.18741608
        %v644 = vmul.f32 %v635, %v643
        %v645 = vadd.f32 %v644, 1.1283791
        %v646 = vmul.f32 %v446, %v645
        %v647 = vmul.f32 %v635, 3.8918573e-05
        %v648 = vadd.f32 %v647, 0.001143296
        %v649 = vmul.f32 %v635, %v648
        %v650 = vadd.f32 %v649, 0.014752088
        %v651 = vmul.f32 %v635, %v650
        %v652 = vadd.f32 %v651, 0.112945676
        %v653 = vmul.f32 %v635, %v652
        %v654 = vadd.f32 %v653, 0.4994258
        %v655 = vmul.f32 %v635, %v654
        %v656 = vadd.f32 %v655, 1.0
        %v657 = vrcp.pop %v656
        %v658 = vmul.f32 %v656, %v657
        %v659 = vsub.f32 1.0, %v658
        %v660 = vmul.f32 %v657, %v659
        %v661 = vadd.f32 %v657, %v660
        %vm662 = vweird.f32 %v656
        %vm663 = vweird.f32 %v657
        %vm664 = vmor %vm662, %vm663
        %v665 = vsel %vm664, %v657, %v661
        %v666 = vand.u32 2147483647, %v656
        %vm667 = vcmp.eq.f32.partialorder %v666, 8.507059e+37
        %v668 = vand.u32 %v656, 2147483648
        %v669 = vor.u32 1.1754944e-38, %v668
        %v670 = vsel %vm667, %v669, %v665
        %v671 = vmul.f32 %v646, %v670
        %v672 = vmin.f32 %v671, 1.0
        %v673 = vmax.f32 %v672, -1.0
        %v674 = vmul.f32 %v447, %v447
        %v675 = vmin.f32 16.0, %v674
        %v676 = vmul.f32 %v675, 2.1237322e-06
        %v677 = vadd.f32 %v676, 0.00028619796
        %v678 = vmul.f32 %v675, %v677
        %v679 = vadd.f32 %v678, 0.0036580483
        %v680 = vmul.f32 %v675, %v679
        %v681 = vadd.f32 %v680, 0.05243302
        %v682 = vmul.f32 %v675, %v681
        %v683 = vadd.f32 %v682, 0.18741608
        %v684 = vmul.f32 %v675, %v683
        %v685 = vadd.f32 %v684, 1.1283791
        %v686 = vmul.f32 %v447, %v685
        %v687 = vmul.f32 %v675, 3.8918573e-05
        %v688 = vadd.f32 %v687, 0.001143296
        %v689 = vmul.f32 %v675, %v688
        %v690 = vadd.f32 %v689, 0.014752088
        %v691 = vmul.f32 %v675, %v690
        %v692 = vadd.f32 %v691, 0.112945676
        %v693 = vmul.f32 %v675, %v692
        %v694 = vadd.f32 %v693, 0.4994258
        %v695 = vmul.f32 %v675, %v694
        %v696 = vadd.f32 %v695, 1.0
        %v697 = vrcp.pop %v696
        %v698 = vmul.f32 %v696, %v697
        %v699 = vsub.f32 1.0, %v698
        %v700 = vmul.f32 %v697, %v699
        %v701 = vadd.f32 %v697, %v700
        %vm702 = vweird.f32 %v696
        %vm703 = vweird.f32 %v697
        %vm704 = vmor %vm702, %vm703
        %v705 = vsel %vm704, %v697, %v701
        %v706 = vand.u32 2147483647, %v696
        %vm707 = vcmp.eq.f32.partialorder %v706, 8.507059e+37
        %v708 = vand.u32 %v696, 2147483648
        %v709 = vor.u32 1.1754944e-38, %v708
        %v710 = vsel %vm707, %v709, %v705
        %v711 = vmul.f32 %v686, %v710
        %v712 = vmin.f32 %v711, 1.0
        %v713 = vmax.f32 %v712, -1.0
        %v714 = vmul.f32 %v448, %v448
        %v715 = vmin.f32 16.0, %v714
        %v716 = vmul.f32 %v715, 2.1237322e-06
        %v717 = vadd.f32 %v716, 0.00028619796
        %v718 = vmul.f32 %v715, %v717
        %v719 = vadd.f32 %v718, 0.0036580483
        %v720 = vmul.f32 %v715, %v719
        %v721 = vadd.f32 %v720, 0.05243302
        %v722 = vmul.f32 %v715, %v721
        %v723 = vadd.f32 %v722, 0.18741608
        %v724 = vmul.f32 %v715, %v723
        %v725 = vadd.f32 %v724, 1.1283791
        %v726 = vmul.f32 %v448, %v725
        %v727 = vmul.f32 %v715, 3.8918573e-05
        %v728 = vadd.f32 %v727, 0.001143296
        %v729 = vmul.f32 %v715, %v728
        %v730 = vadd.f32 %v729, 0.014752088
        %v731 = vmul.f32 %v715, %v730
        %v732 = vadd.f32 %v731, 0.112945676
        %v733 = vmul.f32 %v715, %v732
        %v734 = vadd.f32 %v733, 0.4994258
        %v735 = vmul.f32 %v715, %v734
        %v736 = vadd.f32 %v735, 1.0
        %v737 = vrcp.pop %v736
        %v738 = vmul.f32 %v736, %v737
        %v739 = vsub.f32 1.0, %v738
        %v740 = vmul.f32 %v737, %v739
        %v741 = vadd.f32 %v737, %v740
        %vm742 = vweird.f32 %v736
        %vm743 = vweird.f32 %v737
        %vm744 = vmor %vm742, %vm743
        %v745 = vsel %vm744, %v737, %v741
        %v746 = vand.u32 2147483647, %v736
        %vm747 = vcmp.eq.f32.partialorder %v746, 8.507059e+37
        %v748 = vand.u32 %v736, 2147483648
        %v749 = vor.u32 1.1754944e-38, %v748
        %v750 = vsel %vm747, %v749, %v745
        %v751 = vmul.f32 %v726, %v750
        %v752 = vmin.f32 %v751, 1.0
        %v753 = vmax.f32 %v752, -1.0
        %v754 = vmul.f32 %v449, %v449
        %v755 = vmin.f32 16.0, %v754
        %v756 = vmul.f32 %v755, 2.1237322e-06
        %v757 = vadd.f32 %v756, 0.00028619796
        %v758 = vmul.f32 %v755, %v757
        %v759 = vadd.f32 %v758, 0.0036580483
        %v760 = vmul.f32 %v755, %v759
        %v761 = vadd.f32 %v760, 0.05243302
        %v762 = vmul.f32 %v755, %v761
        %v763 = vadd.f32 %v762, 0.18741608
        %v764 = vmul.f32 %v755, %v763
        %v765 = vadd.f32 %v764, 1.1283791
        %v766 = vmul.f32 %v449, %v765
        %v767 = vmul.f32 %v755, 3.8918573e-05
        %v768 = vadd.f32 %v767, 0.001143296
        %v769 = vmul.f32 %v755, %v768
        %v770 = vadd.f32 %v769, 0.014752088
        %v771 = vmul.f32 %v755, %v770
        %v772 = vadd.f32 %v771, 0.112945676
        %v773 = vmul.f32 %v755, %v772
        %v774 = vadd.f32 %v773, 0.4994258
        %v775 = vmul.f32 %v755, %v774
        %v776 = vadd.f32 %v775, 1.0
        %v777 = vrcp.pop %v776
        %v778 = vmul.f32 %v776, %v777
        %v779 = vsub.f32 1.0, %v778
        %v780 = vmul.f32 %v777, %v779
        %v781 = vadd.f32 %v777, %v780
        %vm782 = vweird.f32 %v776
        %vm783 = vweird.f32 %v777
        %vm784 = vmor %vm782, %vm783
        %v785 = vsel %vm784, %v777, %v781
        %v786 = vand.u32 2147483647, %v776
        %vm787 = vcmp.eq.f32.partialorder %v786, 8.507059e+37
        %v788 = vand.u32 %v776, 2147483648
        %v789 = vor.u32 1.1754944e-38, %v788
        %v790 = vsel %vm787, %v789, %v785
        %v791 = vmul.f32 %v766, %v790
        %v792 = vmin.f32 %v791, 1.0
        %v793 = vmax.f32 %v792, -1.0
        %v794 = vmul.f32 %v450, %v450
        %v795 = vmin.f32 16.0, %v794
        %v796 = vmul.f32 %v795, 2.1237322e-06
        %v797 = vadd.f32 %v796, 0.00028619796
        %v798 = vmul.f32 %v795, %v797
        %v799 = vadd.f32 %v798, 0.0036580483
        %v800 = vmul.f32 %v795, %v799
        %v801 = vadd.f32 %v800, 0.05243302
        %v802 = vmul.f32 %v795, %v801
        %v803 = vadd.f32 %v802, 0.18741608
        %v804 = vmul.f32 %v795, %v803
        %v805 = vadd.f32 %v804, 1.1283791
        %v806 = vmul.f32 %v450, %v805
        %v807 = vmul.f32 %v795, 3.8918573e-05
        %v808 = vadd.f32 %v807, 0.001143296
        %v809 = vmul.f32 %v795, %v808
        %v810 = vadd.f32 %v809, 0.014752088
        %v811 = vmul.f32 %v795, %v810
        %v812 = vadd.f32 %v811, 0.112945676
        %v813 = vmul.f32 %v795, %v812
        %v814 = vadd.f32 %v813, 0.4994258
        %v815 = vmul.f32 %v795, %v814
        %v816 = vadd.f32 %v815, 1.0
        %v817 = vrcp.pop %v816
        %v818 = vmul.f32 %v816, %v817
        %v819 = vsub.f32 1.0, %v818
        %v820 = vmul.f32 %v817, %v819
        %v821 = vadd.f32 %v817, %v820
        %vm822 = vweird.f32 %v816
        %vm823 = vweird.f32 %v817
        %vm824 = vmor %vm822, %vm823
        %v825 = vsel %vm824, %v817, %v821
        %v826 = vand.u32 2147483647, %v816
        %vm827 = vcmp.eq.f32.partialorder %v826, 8.507059e+37
        %v828 = vand.u32 %v816, 2147483648
        %v829 = vor.u32 1.1754944e-38, %v828
        %v830 = vsel %vm827, %v829, %v825
        %v831 = vmul.f32 %v806, %v830
        %v832 = vmin.f32 %v831, 1.0
        %v833 = vmax.f32 %v832, -1.0
        %v834 = vmul.f32 %v451, %v451
        %v835 = vmin.f32 16.0, %v834
        %v836 = vmul.f32 %v835, 2.1237322e-06
        %v837 = vadd.f32 %v836, 0.00028619796
        %v838 = vmul.f32 %v835, %v837
        %v839 = vadd.f32 %v838, 0.0036580483
        %v840 = vmul.f32 %v835, %v839
        %v841 = vadd.f32 %v840, 0.05243302
        %v842 = vmul.f32 %v835, %v841
        %v843 = vadd.f32 %v842, 0.18741608
        %v844 = vmul.f32 %v835, %v843
        %v845 = vadd.f32 %v844, 1.1283791
        %v846 = vmul.f32 %v451, %v845
        %v847 = vmul.f32 %v835, 3.8918573e-05
        %v848 = vadd.f32 %v847, 0.001143296
        %v849 = vmul.f32 %v835, %v848
        %v850 = vadd.f32 %v849, 0.014752088
        %v851 = vmul.f32 %v835, %v850
        %v852 = vadd.f32 %v851, 0.112945676
        %v853 = vmul.f32 %v835, %v852
        %v854 = vadd.f32 %v853, 0.4994258
        %v855 = vmul.f32 %v835, %v854
        %v856 = vadd.f32 %v855, 1.0
        %v857 = vrcp.pop %v856
        %v858 = vmul.f32 %v856, %v857
        %v859 = vsub.f32 1.0, %v858
        %v860 = vmul.f32 %v857, %v859
        %v861 = vadd.f32 %v857, %v860
        %vm862 = vweird.f32 %v856
        %vm863 = vweird.f32 %v857
        %vm864 = vmor %vm862, %vm863
        %v865 = vsel %vm864, %v857, %v861
        %v866 = vand.u32 2147483647, %v856
        %vm867 = vcmp.eq.f32.partialorder %v866, 8.507059e+37
        %v868 = vand.u32 %v856, 2147483648
        %v869 = vor.u32 1.1754944e-38, %v868
        %v870 = vsel %vm867, %v869, %v865
        %v871 = vmul.f32 %v846, %v870
        %v872 = vmin.f32 %v871, 1.0
        %v873 = vmax.f32 %v872, -1.0
        %v874 = vmul.f32 %v452, %v452
        %v875 = vmin.f32 16.0, %v874
        %v876 = vmul.f32 %v875, 2.1237322e-06
        %v877 = vadd.f32 %v876, 0.00028619796
        %v878 = vmul.f32 %v875, %v877
        %v879 = vadd.f32 %v878, 0.0036580483
        %v880 = vmul.f32 %v875, %v879
        %v881 = vadd.f32 %v880, 0.05243302
        %v882 = vmul.f32 %v875, %v881
        %v883 = vadd.f32 %v882, 0.18741608
        %v884 = vmul.f32 %v875, %v883
        %v885 = vadd.f32 %v884, 1.1283791
        %v886 = vmul.f32 %v452, %v885
        %v887 = vmul.f32 %v875, 3.8918573e-05
        %v888 = vadd.f32 %v887, 0.001143296
        %v889 = vmul.f32 %v875, %v888
        %v890 = vadd.f32 %v889, 0.014752088
        %v891 = vmul.f32 %v875, %v890
        %v892 = vadd.f32 %v891, 0.112945676
        %v893 = vmul.f32 %v875, %v892
        %v894 = vadd.f32 %v893, 0.4994258
        %v895 = vmul.f32 %v875, %v894
        %v896 = vadd.f32 %v895, 1.0
        %v897 = vrcp.pop %v896
        %v898 = vmul.f32 %v896, %v897
        %v899 = vsub.f32 1.0, %v898
        %v900 = vmul.f32 %v897, %v899
        %v901 = vadd.f32 %v897, %v900
        %vm902 = vweird.f32 %v896
        %vm903 = vweird.f32 %v897
        %vm904 = vmor %vm902, %vm903
        %v905 = vsel %vm904, %v897, %v901
        %v906 = vand.u32 2147483647, %v896
        %vm907 = vcmp.eq.f32.partialorder %v906, 8.507059e+37
        %v908 = vand.u32 %v896, 2147483648
        %v909 = vor.u32 1.1754944e-38, %v908
        %v910 = vsel %vm907, %v909, %v905
        %v911 = vmul.f32 %v886, %v910
        %v912 = vmin.f32 %v911, 1.0
        %v913 = vmax.f32 %v912, -1.0
        %v914 = vmul.f32 %v453, %v453
        %v915 = vmin.f32 16.0, %v914
        %v916 = vmul.f32 %v915, 2.1237322e-06
        %v917 = vadd.f32 %v916, 0.00028619796
        %v918 = vmul.f32 %v915, %v917
        %v919 = vadd.f32 %v918, 0.0036580483
        %v920 = vmul.f32 %v915, %v919
        %v921 = vadd.f32 %v920, 0.05243302
        %v922 = vmul.f32 %v915, %v921
        %v923 = vadd.f32 %v922, 0.18741608
        %v924 = vmul.f32 %v915, %v923
        %v925 = vadd.f32 %v924, 1.1283791
        %v926 = vmul.f32 %v453, %v925
        %v927 = vmul.f32 %v915, 3.8918573e-05
        %v928 = vadd.f32 %v927, 0.001143296
        %v929 = vmul.f32 %v915, %v928
        %v930 = vadd.f32 %v929, 0.014752088
        %v931 = vmul.f32 %v915, %v930
        %v932 = vadd.f32 %v931, 0.112945676
        %v933 = vmul.f32 %v915, %v932
        %v934 = vadd.f32 %v933, 0.4994258
        %v935 = vmul.f32 %v915, %v934
        %v936 = vadd.f32 %v935, 1.0
        %v937 = vrcp.pop %v936
        %v938 = vmul.f32 %v936, %v937
        %v939 = vsub.f32 1.0, %v938
        %v940 = vmul.f32 %v937, %v939
        %v941 = vadd.f32 %v937, %v940
        %vm942 = vweird.f32 %v936
        %vm943 = vweird.f32 %v937
        %vm944 = vmor %vm942, %vm943
        %v945 = vsel %vm944, %v937, %v941
        %v946 = vand.u32 2147483647, %v936
        %vm947 = vcmp.eq.f32.partialorder %v946, 8.507059e+37
        %v948 = vand.u32 %v936, 2147483648
        %v949 = vor.u32 1.1754944e-38, %v948
        %v950 = vsel %vm947, %v949, %v945
        %v951 = vmul.f32 %v926, %v950
        %v952 = vmin.f32 %v951, 1.0
        %v953 = vmax.f32 %v952, -1.0
        %v954 = vmul.f32 %v454, %v454
        %v955 = vmin.f32 16.0, %v954
        %v956 = vmul.f32 %v955, 2.1237322e-06
        %v957 = vadd.f32 %v956, 0.00028619796
        %v958 = vmul.f32 %v955, %v957
        %v959 = vadd.f32 %v958, 0.0036580483
        %v960 = vmul.f32 %v955, %v959
        %v961 = vadd.f32 %v960, 0.05243302
        %v962 = vmul.f32 %v955, %v961
        %v963 = vadd.f32 %v962, 0.18741608
        %v964 = vmul.f32 %v955, %v963
        %v965 = vadd.f32 %v964, 1.1283791
        %v966 = vmul.f32 %v454, %v965
        %v967 = vmul.f32 %v955, 3.8918573e-05
        %v968 = vadd.f32 %v967, 0.001143296
        %v969 = vmul.f32 %v955, %v968
        %v970 = vadd.f32 %v969, 0.014752088
        %v971 = vmul.f32 %v955, %v970
        %v972 = vadd.f32 %v971, 0.112945676
        %v973 = vmul.f32 %v955, %v972
        %v974 = vadd.f32 %v973, 0.4994258
        %v975 = vmul.f32 %v955, %v974
        %v976 = vadd.f32 %v975, 1.0
        %v977 = vrcp.pop %v976
        %v978 = vmul.f32 %v976, %v977
        %v979 = vsub.f32 1.0, %v978
        %v980 = vmul.f32 %v977, %v979
        %v981 = vadd.f32 %v977, %v980
        %vm982 = vweird.f32 %v976
        %vm983 = vweird.f32 %v977
        %vm984 = vmor %vm982, %vm983
        %v985 = vsel %vm984, %v977, %v981
        %v986 = vand.u32 2147483647, %v976
        %vm987 = vcmp.eq.f32.partialorder %v986, 8.507059e+37
        %v988 = vand.u32 %v976, 2147483648
        %v989 = vor.u32 1.1754944e-38, %v988
        %v990 = vsel %vm987, %v989, %v985
        %v991 = vmul.f32 %v966, %v990
        %v992 = vmin.f32 %v991, 1.0
        %v993 = vmax.f32 %v992, -1.0
        %v994 = vmul.f32 %v455, %v455
        %v995 = vmin.f32 16.0, %v994
        %v996 = vmul.f32 %v995, 2.1237322e-06
        %v997 = vadd.f32 %v996, 0.00028619796
        %v998 = vmul.f32 %v995, %v997
        %v999 = vadd.f32 %v998, 0.0036580483
        %v1000 = vmul.f32 %v995, %v999
        %v1001 = vadd.f32 %v1000, 0.05243302
        %v1002 = vmul.f32 %v995, %v1001
        %v1003 = vadd.f32 %v1002, 0.18741608
        %v1004 = vmul.f32 %v995, %v1003
        %v1005 = vadd.f32 %v1004, 1.1283791
        %v1006 = vmul.f32 %v455, %v1005
        %v1007 = vmul.f32 %v995, 3.8918573e-05
        %v1008 = vadd.f32 %v1007, 0.001143296
        %v1009 = vmul.f32 %v995, %v1008
        %v1010 = vadd.f32 %v1009, 0.014752088
        %v1011 = vmul.f32 %v995, %v1010
        %v1012 = vadd.f32 %v1011, 0.112945676
        %v1013 = vmul.f32 %v995, %v1012
        %v1014 = vadd.f32 %v1013, 0.4994258
        %v1015 = vmul.f32 %v995, %v1014
        %v1016 = vadd.f32 %v1015, 1.0
        %v1017 = vrcp.pop %v1016
        %v1018 = vmul.f32 %v1016, %v1017
        %v1019 = vsub.f32 1.0, %v1018
        %v1020 = vmul.f32 %v1017, %v1019
        %v1021 = vadd.f32 %v1017, %v1020
        %vm1022 = vweird.f32 %v1016
        %vm1023 = vweird.f32 %v1017
        %vm1024 = vmor %vm1022, %vm1023
        %v1025 = vsel %vm1024, %v1017, %v1021
        %v1026 = vand.u32 2147483647, %v1016
        %vm1027 = vcmp.eq.f32.partialorder %v1026, 8.507059e+37
        %v1028 = vand.u32 %v1016, 2147483648
        %v1029 = vor.u32 1.1754944e-38, %v1028
        %v1030 = vsel %vm1027, %v1029, %v1025
        %v1031 = vmul.f32 %v1006, %v1030
        %v1032 = vmin.f32 %v1031, 1.0
        %v1033 = vmax.f32 %v1032, -1.0
        %v1034 = vmul.f32 %v456, %v456
        %v1035 = vmin.f32 16.0, %v1034
        %v1036 = vmul.f32 %v1035, 2.1237322e-06
        %v1037 = vadd.f32 %v1036, 0.00028619796
        %v1038 = vmul.f32 %v1035, %v1037
        %v1039 = vadd.f32 %v1038, 0.0036580483
        %v1040 = vmul.f32 %v1035, %v1039
        %v1041 = vadd.f32 %v1040, 0.05243302
        %v1042 = vmul.f32 %v1035, %v1041
        %v1043 = vadd.f32 %v1042, 0.18741608
        %v1044 = vmul.f32 %v1035, %v1043
        %v1045 = vadd.f32 %v1044, 1.1283791
        %v1046 = vmul.f32 %v456, %v1045
        %v1047 = vmul.f32 %v1035, 3.8918573e-05
        %v1048 = vadd.f32 %v1047, 0.001143296
        %v1049 = vmul.f32 %v1035, %v1048
        %v1050 = vadd.f32 %v1049, 0.014752088
        %v1051 = vmul.f32 %v1035, %v1050
        %v1052 = vadd.f32 %v1051, 0.112945676
        %v1053 = vmul.f32 %v1035, %v1052
        %v1054 = vadd.f32 %v1053, 0.4994258
        %v1055 = vmul.f32 %v1035, %v1054
        %v1056 = vadd.f32 %v1055, 1.0
        %v1057 = vrcp.pop %v1056
        %v1058 = vmul.f32 %v1056, %v1057
        %v1059 = vsub.f32 1.0, %v1058
        %v1060 = vmul.f32 %v1057, %v1059
        %v1061 = vadd.f32 %v1057, %v1060
        %vm1062 = vweird.f32 %v1056
        %vm1063 = vweird.f32 %v1057
        %vm1064 = vmor %vm1062, %vm1063
        %v1065 = vsel %vm1064, %v1057, %v1061
        %v1066 = vand.u32 2147483647, %v1056
        %vm1067 = vcmp.eq.f32.partialorder %v1066, 8.507059e+37
        %v1068 = vand.u32 %v1056, 2147483648
        %v1069 = vor.u32 1.1754944e-38, %v1068
        %v1070 = vsel %vm1067, %v1069, %v1065
        %v1071 = vmul.f32 %v1046, %v1070
        %v1072 = vmin.f32 %v1071, 1.0
        %v1073 = vmax.f32 %v1072, -1.0
        %v1074 = vmul.f32 %v457, %v457
        %v1075 = vmin.f32 16.0, %v1074
        %v1076 = vmul.f32 %v1075, 2.1237322e-06
        %v1077 = vadd.f32 %v1076, 0.00028619796
        %v1078 = vmul.f32 %v1075, %v1077
        %v1079 = vadd.f32 %v1078, 0.0036580483
        %v1080 = vmul.f32 %v1075, %v1079
        %v1081 = vadd.f32 %v1080, 0.05243302
        %v1082 = vmul.f32 %v1075, %v1081
        %v1083 = vadd.f32 %v1082, 0.18741608
        %v1084 = vmul.f32 %v1075, %v1083
        %v1085 = vadd.f32 %v1084, 1.1283791
        %v1086 = vmul.f32 %v457, %v1085
        %v1087 = vmul.f32 %v1075, 3.8918573e-05
        %v1088 = vadd.f32 %v1087, 0.001143296
        %v1089 = vmul.f32 %v1075, %v1088
        %v1090 = vadd.f32 %v1089, 0.014752088
        %v1091 = vmul.f32 %v1075, %v1090
        %v1092 = vadd.f32 %v1091, 0.112945676
        %v1093 = vmul.f32 %v1075, %v1092
        %v1094 = vadd.f32 %v1093, 0.4994258
        %v1095 = vmul.f32 %v1075, %v1094
        %v1096 = vadd.f32 %v1095, 1.0
        %v1097 = vrcp.pop %v1096
        %v1098 = vmul.f32 %v1096, %v1097
        %v1099 = vsub.f32 1.0, %v1098
        %v1100 = vmul.f32 %v1097, %v1099
        %v1101 = vadd.f32 %v1097, %v1100
        %vm1102 = vweird.f32 %v1096
        %vm1103 = vweird.f32 %v1097
        %vm1104 = vmor %vm1102, %vm1103
        %v1105 = vsel %vm1104, %v1097, %v1101
        %v1106 = vand.u32 2147483647, %v1096
        %vm1107 = vcmp.eq.f32.partialorder %v1106, 8.507059e+37
        %v1108 = vand.u32 %v1096, 2147483648
        %v1109 = vor.u32 1.1754944e-38, %v1108
        %v1110 = vsel %vm1107, %v1109, %v1105
        %v1111 = vmul.f32 %v1086, %v1110
        %v1112 = vmin.f32 %v1111, 1.0
        %v1113 = vmax.f32 %v1112, -1.0
        %v1114 = vmul.f32 %v458, %v458
        %v1115 = vmin.f32 16.0, %v1114
        %v1116 = vmul.f32 %v1115, 2.1237322e-06
        %v1117 = vadd.f32 %v1116, 0.00028619796
        %v1118 = vmul.f32 %v1115, %v1117
        %v1119 = vadd.f32 %v1118, 0.0036580483
        %v1120 = vmul.f32 %v1115, %v1119
        %v1121 = vadd.f32 %v1120, 0.05243302
        %v1122 = vmul.f32 %v1115, %v1121
        %v1123 = vadd.f32 %v1122, 0.18741608
        %v1124 = vmul.f32 %v1115, %v1123
        %v1125 = vadd.f32 %v1124, 1.1283791
        %v1126 = vmul.f32 %v458, %v1125
        %v1127 = vmul.f32 %v1115, 3.8918573e-05
        %v1128 = vadd.f32 %v1127, 0.001143296
        %v1129 = vmul.f32 %v1115, %v1128
        %v1130 = vadd.f32 %v1129, 0.014752088
        %v1131 = vmul.f32 %v1115, %v1130
        %v1132 = vadd.f32 %v1131, 0.112945676
        %v1133 = vmul.f32 %v1115, %v1132
        %v1134 = vadd.f32 %v1133, 0.4994258
        %v1135 = vmul.f32 %v1115, %v1134
        %v1136 = vadd.f32 %v1135, 1.0
        %v1137 = vrcp.pop %v1136
        %v1138 = vmul.f32 %v1136, %v1137
        %v1139 = vsub.f32 1.0, %v1138
        %v1140 = vmul.f32 %v1137, %v1139
        %v1141 = vadd.f32 %v1137, %v1140
        %vm1142 = vweird.f32 %v1136
        %vm1143 = vweird.f32 %v1137
        %vm1144 = vmor %vm1142, %vm1143
        %v1145 = vsel %vm1144, %v1137, %v1141
        %v1146 = vand.u32 2147483647, %v1136
        %vm1147 = vcmp.eq.f32.partialorder %v1146, 8.507059e+37
        %v1148 = vand.u32 %v1136, 2147483648
        %v1149 = vor.u32 1.1754944e-38, %v1148
        %v1150 = vsel %vm1147, %v1149, %v1145
        %v1151 = vmul.f32 %v1126, %v1150
        %v1152 = vmin.f32 %v1151, 1.0
        %v1153 = vmax.f32 %v1152, -1.0
        %v1154 = vmul.f32 %v459, %v459
        %v1155 = vmin.f32 16.0, %v1154
        %v1156 = vmul.f32 %v1155, 2.1237322e-06
        %v1157 = vadd.f32 %v1156, 0.00028619796
        %v1158 = vmul.f32 %v1155, %v1157
        %v1159 = vadd.f32 %v1158, 0.0036580483
        %v1160 = vmul.f32 %v1155, %v1159
        %v1161 = vadd.f32 %v1160, 0.05243302
        %v1162 = vmul.f32 %v1155, %v1161
        %v1163 = vadd.f32 %v1162, 0.18741608
        %v1164 = vmul.f32 %v1155, %v1163
        %v1165 = vadd.f32 %v1164, 1.1283791
        %v1166 = vmul.f32 %v459, %v1165
        %v1167 = vmul.f32 %v1155, 3.8918573e-05
        %v1168 = vadd.f32 %v1167, 0.001143296
        %v1169 = vmul.f32 %v1155, %v1168
        %v1170 = vadd.f32 %v1169, 0.014752088
        %v1171 = vmul.f32 %v1155, %v1170
        %v1172 = vadd.f32 %v1171, 0.112945676
        %v1173 = vmul.f32 %v1155, %v1172
        %v1174 = vadd.f32 %v1173, 0.4994258
        %v1175 = vmul.f32 %v1155, %v1174
        %v1176 = vadd.f32 %v1175, 1.0
        %v1177 = vrcp.pop %v1176
        %v1178 = vmul.f32 %v1176, %v1177
        %v1179 = vsub.f32 1.0, %v1178
        %v1180 = vmul.f32 %v1177, %v1179
        %v1181 = vadd.f32 %v1177, %v1180
        %vm1182 = vweird.f32 %v1176
        %vm1183 = vweird.f32 %v1177
        %vm1184 = vmor %vm1182, %vm1183
        %v1185 = vsel %vm1184, %v1177, %v1181
        %v1186 = vand.u32 2147483647, %v1176
        %vm1187 = vcmp.eq.f32.partialorder %v1186, 8.507059e+37
        %v1188 = vand.u32 %v1176, 2147483648
        %v1189 = vor.u32 1.1754944e-38, %v1188
        %v1190 = vsel %vm1187, %v1189, %v1185
        %v1191 = vmul.f32 %v1166, %v1190
        %v1192 = vmin.f32 %v1191, 1.0
        %v1193 = vmax.f32 %v1192, -1.0
        %v1194 = vmul.f32 %v460, %v460
        %v1195 = vmin.f32 16.0, %v1194
        %v1196 = vmul.f32 %v1195, 2.1237322e-06
        %v1197 = vadd.f32 %v1196, 0.00028619796
        %v1198 = vmul.f32 %v1195, %v1197
        %v1199 = vadd.f32 %v1198, 0.0036580483
        %v1200 = vmul.f32 %v1195, %v1199
        %v1201 = vadd.f32 %v1200, 0.05243302
        %v1202 = vmul.f32 %v1195, %v1201
        %v1203 = vadd.f32 %v1202, 0.18741608
        %v1204 = vmul.f32 %v1195, %v1203
        %v1205 = vadd.f32 %v1204, 1.1283791
        %v1206 = vmul.f32 %v460, %v1205
        %v1207 = vmul.f32 %v1195, 3.8918573e-05
        %v1208 = vadd.f32 %v1207, 0.001143296
        %v1209 = vmul.f32 %v1195, %v1208
        %v1210 = vadd.f32 %v1209, 0.014752088
        %v1211 = vmul.f32 %v1195, %v1210
        %v1212 = vadd.f32 %v1211, 0.112945676
        %v1213 = vmul.f32 %v1195, %v1212
        %v1214 = vadd.f32 %v1213, 0.4994258
        %v1215 = vmul.f32 %v1195, %v1214
        %v1216 = vadd.f32 %v1215, 1.0
        %v1217 = vrcp.pop %v1216
        %v1218 = vmul.f32 %v1216, %v1217
        %v1219 = vsub.f32 1.0, %v1218
        %v1220 = vmul.f32 %v1217, %v1219
        %v1221 = vadd.f32 %v1217, %v1220
        %vm1222 = vweird.f32 %v1216
        %vm1223 = vweird.f32 %v1217
        %vm1224 = vmor %vm1222, %vm1223
        %v1225 = vsel %vm1224, %v1217, %v1221
        %v1226 = vand.u32 2147483647, %v1216
        %vm1227 = vcmp.eq.f32.partialorder %v1226, 8.507059e+37
        %v1228 = vand.u32 %v1216, 2147483648
        %v1229 = vor.u32 1.1754944e-38, %v1228
        %v1230 = vsel %vm1227, %v1229, %v1225
        %v1231 = vmul.f32 %v1206, %v1230
        %v1232 = vmin.f32 %v1231, 1.0
        %v1233 = vmax.f32 %v1232, -1.0
        %v1234 = vmul.f32 %v461, %v461
        %v1235 = vmin.f32 16.0, %v1234
        %v1236 = vmul.f32 %v1235, 2.1237322e-06
        %v1237 = vadd.f32 %v1236, 0.00028619796
        %v1238 = vmul.f32 %v1235, %v1237
        %v1239 = vadd.f32 %v1238, 0.0036580483
        %v1240 = vmul.f32 %v1235, %v1239
        %v1241 = vadd.f32 %v1240, 0.05243302
        %v1242 = vmul.f32 %v1235, %v1241
        %v1243 = vadd.f32 %v1242, 0.18741608
        %v1244 = vmul.f32 %v1235, %v1243
        %v1245 = vadd.f32 %v1244, 1.1283791
        %v1246 = vmul.f32 %v461, %v1245
        %v1247 = vmul.f32 %v1235, 3.8918573e-05
        %v1248 = vadd.f32 %v1247, 0.001143296
        %v1249 = vmul.f32 %v1235, %v1248
        %v1250 = vadd.f32 %v1249, 0.014752088
        %v1251 = vmul.f32 %v1235, %v1250
        %v1252 = vadd.f32 %v1251, 0.112945676
        %v1253 = vmul.f32 %v1235, %v1252
        %v1254 = vadd.f32 %v1253, 0.4994258
        %v1255 = vmul.f32 %v1235, %v1254
        %v1256 = vadd.f32 %v1255, 1.0
        %v1257 = vrcp.pop %v1256
        %v1258 = vmul.f32 %v1256, %v1257
        %v1259 = vsub.f32 1.0, %v1258
        %v1260 = vmul.f32 %v1257, %v1259
        %v1261 = vadd.f32 %v1257, %v1260
        %vm1262 = vweird.f32 %v1256
        %vm1263 = vweird.f32 %v1257
        %vm1264 = vmor %vm1262, %vm1263
        %v1265 = vsel %vm1264, %v1257, %v1261
        %v1266 = vand.u32 2147483647, %v1256
        %vm1267 = vcmp.eq.f32.partialorder %v1266, 8.507059e+37
        %v1268 = vand.u32 %v1256, 2147483648
        %v1269 = vor.u32 1.1754944e-38, %v1268
        %v1270 = vsel %vm1267, %v1269, %v1265
        %v1271 = vmul.f32 %v1246, %v1270
        %v1272 = vmin.f32 %v1271, 1.0
        %v1273 = vmax.f32 %v1272, -1.0
        %v1274 = vmul.f32 %v462, %v462
        %v1275 = vmin.f32 16.0, %v1274
        %v1276 = vmul.f32 %v1275, 2.1237322e-06
        %v1277 = vadd.f32 %v1276, 0.00028619796
        %v1278 = vmul.f32 %v1275, %v1277
        %v1279 = vadd.f32 %v1278, 0.0036580483
        %v1280 = vmul.f32 %v1275, %v1279
        %v1281 = vadd.f32 %v1280, 0.05243302
        %v1282 = vmul.f32 %v1275, %v1281
        %v1283 = vadd.f32 %v1282, 0.18741608
        %v1284 = vmul.f32 %v1275, %v1283
        %v1285 = vadd.f32 %v1284, 1.1283791
        %v1286 = vmul.f32 %v462, %v1285
        %v1287 = vmul.f32 %v1275, 3.8918573e-05
        %v1288 = vadd.f32 %v1287, 0.001143296
        %v1289 = vmul.f32 %v1275, %v1288
        %v1290 = vadd.f32 %v1289, 0.014752088
        %v1291 = vmul.f32 %v1275, %v1290
        %v1292 = vadd.f32 %v1291, 0.112945676
        %v1293 = vmul.f32 %v1275, %v1292
        %v1294 = vadd.f32 %v1293, 0.4994258
        %v1295 = vmul.f32 %v1275, %v1294
        %v1296 = vadd.f32 %v1295, 1.0
        %v1297 = vrcp.pop %v1296
        %v1298 = vmul.f32 %v1296, %v1297
        %v1299 = vsub.f32 1.0, %v1298
        %v1300 = vmul.f32 %v1297, %v1299
        %v1301 = vadd.f32 %v1297, %v1300
        %vm1302 = vweird.f32 %v1296
        %vm1303 = vweird.f32 %v1297
        %vm1304 = vmor %vm1302, %vm1303
        %v1305 = vsel %vm1304, %v1297, %v1301
        %v1306 = vand.u32 2147483647, %v1296
        %vm1307 = vcmp.eq.f32.partialorder %v1306, 8.507059e+37
        %v1308 = vand.u32 %v1296, 2147483648
        %v1309 = vor.u32 1.1754944e-38, %v1308
        %v1310 = vsel %vm1307, %v1309, %v1305
        %v1311 = vmul.f32 %v1286, %v1310
        %v1312 = vmin.f32 %v1311, 1.0
        %v1313 = vmax.f32 %v1312, -1.0
        %v1314 = vmul.f32 %v463, %v463
        %v1315 = vmin.f32 16.0, %v1314
        %v1316 = vmul.f32 %v1315, 2.1237322e-06
        %v1317 = vadd.f32 %v1316, 0.00028619796
        %v1318 = vmul.f32 %v1315, %v1317
        %v1319 = vadd.f32 %v1318, 0.0036580483
        %v1320 = vmul.f32 %v1315, %v1319
        %v1321 = vadd.f32 %v1320, 0.05243302
        %v1322 = vmul.f32 %v1315, %v1321
        %v1323 = vadd.f32 %v1322, 0.18741608
        %v1324 = vmul.f32 %v1315, %v1323
        %v1325 = vadd.f32 %v1324, 1.1283791
        %v1326 = vmul.f32 %v463, %v1325
        %v1327 = vmul.f32 %v1315, 3.8918573e-05
        %v1328 = vadd.f32 %v1327, 0.001143296
        %v1329 = vmul.f32 %v1315, %v1328
        %v1330 = vadd.f32 %v1329, 0.014752088
        %v1331 = vmul.f32 %v1315, %v1330
        %v1332 = vadd.f32 %v1331, 0.112945676
        %v1333 = vmul.f32 %v1315, %v1332
        %v1334 = vadd.f32 %v1333, 0.4994258
        %v1335 = vmul.f32 %v1315, %v1334
        %v1336 = vadd.f32 %v1335, 1.0
        %v1337 = vrcp.pop %v1336
        %v1338 = vmul.f32 %v1336, %v1337
        %v1339 = vsub.f32 1.0, %v1338
        %v1340 = vmul.f32 %v1337, %v1339
        %v1341 = vadd.f32 %v1337, %v1340
        %vm1342 = vweird.f32 %v1336
        %vm1343 = vweird.f32 %v1337
        %vm1344 = vmor %vm1342, %vm1343
        %v1345 = vsel %vm1344, %v1337, %v1341
        %v1346 = vand.u32 2147483647, %v1336
        %vm1347 = vcmp.eq.f32.partialorder %v1346, 8.507059e+37
        %v1348 = vand.u32 %v1336, 2147483648
        %v1349 = vor.u32 1.1754944e-38, %v1348
        %v1350 = vsel %vm1347, %v1349, %v1345
        %v1351 = vmul.f32 %v1326, %v1350
        %v1352 = vmin.f32 %v1351, 1.0
        %v1353 = vmax.f32 %v1352, -1.0
        %v1354 = vmul.f32 %v464, %v464
        %v1355 = vmin.f32 16.0, %v1354
        %v1356 = vmul.f32 %v1355, 2.1237322e-06
        %v1357 = vadd.f32 %v1356, 0.00028619796
        %v1358 = vmul.f32 %v1355, %v1357
        %v1359 = vadd.f32 %v1358, 0.0036580483
        %v1360 = vmul.f32 %v1355, %v1359
        %v1361 = vadd.f32 %v1360, 0.05243302
        %v1362 = vmul.f32 %v1355, %v1361
        %v1363 = vadd.f32 %v1362, 0.18741608
        %v1364 = vmul.f32 %v1355, %v1363
        %v1365 = vadd.f32 %v1364, 1.1283791
        %v1366 = vmul.f32 %v464, %v1365
        %v1367 = vmul.f32 %v1355, 3.8918573e-05
        %v1368 = vadd.f32 %v1367, 0.001143296
        %v1369 = vmul.f32 %v1355, %v1368
        %v1370 = vadd.f32 %v1369, 0.014752088
        %v1371 = vmul.f32 %v1355, %v1370
        %v1372 = vadd.f32 %v1371, 0.112945676
        %v1373 = vmul.f32 %v1355, %v1372
        %v1374 = vadd.f32 %v1373, 0.4994258
        %v1375 = vmul.f32 %v1355, %v1374
        %v1376 = vadd.f32 %v1375, 1.0
        %v1377 = vrcp.pop %v1376
        %v1378 = vmul.f32 %v1376, %v1377
        %v1379 = vsub.f32 1.0, %v1378
        %v1380 = vmul.f32 %v1377, %v1379
        %v1381 = vadd.f32 %v1377, %v1380
        %vm1382 = vweird.f32 %v1376
        %vm1383 = vweird.f32 %v1377
        %vm1384 = vmor %vm1382, %vm1383
        %v1385 = vsel %vm1384, %v1377, %v1381
        %v1386 = vand.u32 2147483647, %v1376
        %vm1387 = vcmp.eq.f32.partialorder %v1386, 8.507059e+37
        %v1388 = vand.u32 %v1376, 2147483648
        %v1389 = vor.u32 1.1754944e-38, %v1388
        %v1390 = vsel %vm1387, %v1389, %v1385
        %v1391 = vmul.f32 %v1366, %v1390
        %v1392 = vmin.f32 %v1391, 1.0
        %v1393 = vmax.f32 %v1392, -1.0
        %v1394 = vmul.f32 %v465, %v465
        %v1395 = vmin.f32 16.0, %v1394
        %v1396 = vmul.f32 %v1395, 2.1237322e-06
        %v1397 = vadd.f32 %v1396, 0.00028619796
        %v1398 = vmul.f32 %v1395, %v1397
        %v1399 = vadd.f32 %v1398, 0.0036580483
        %v1400 = vmul.f32 %v1395, %v1399
        %v1401 = vadd.f32 %v1400, 0.05243302
        %v1402 = vmul.f32 %v1395, %v1401
        %v1403 = vadd.f32 %v1402, 0.18741608
        %v1404 = vmul.f32 %v1395, %v1403
        %v1405 = vadd.f32 %v1404, 1.1283791
        %v1406 = vmul.f32 %v465, %v1405
        %v1407 = vmul.f32 %v1395, 3.8918573e-05
        %v1408 = vadd.f32 %v1407, 0.001143296
        %v1409 = vmul.f32 %v1395, %v1408
        %v1410 = vadd.f32 %v1409, 0.014752088
        %v1411 = vmul.f32 %v1395, %v1410
        %v1412 = vadd.f32 %v1411, 0.112945676
        %v1413 = vmul.f32 %v1395, %v1412
        %v1414 = vadd.f32 %v1413, 0.4994258
        %v1415 = vmul.f32 %v1395, %v1414
        %v1416 = vadd.f32 %v1415, 1.0
        %v1417 = vrcp.pop %v1416
        %v1418 = vmul.f32 %v1416, %v1417
        %v1419 = vsub.f32 1.0, %v1418
        %v1420 = vmul.f32 %v1417, %v1419
        %v1421 = vadd.f32 %v1417, %v1420
        %vm1422 = vweird.f32 %v1416
        %vm1423 = vweird.f32 %v1417
        %vm1424 = vmor %vm1422, %vm1423
        %v1425 = vsel %vm1424, %v1417, %v1421
        %v1426 = vand.u32 2147483647, %v1416
        %vm1427 = vcmp.eq.f32.partialorder %v1426, 8.507059e+37
        %v1428 = vand.u32 %v1416, 2147483648
        %v1429 = vor.u32 1.1754944e-38, %v1428
        %v1430 = vsel %vm1427, %v1429, %v1425
        %v1431 = vmul.f32 %v1406, %v1430
        %v1432 = vmin.f32 %v1431, 1.0
        %v1433 = vmax.f32 %v1432, -1.0
        %v1434 = vmul.f32 %v466, %v466
        %v1435 = vmin.f32 16.0, %v1434
        %v1436 = vmul.f32 %v1435, 2.1237322e-06
        %v1437 = vadd.f32 %v1436, 0.00028619796
        %v1438 = vmul.f32 %v1435, %v1437
        %v1439 = vadd.f32 %v1438, 0.0036580483
        %v1440 = vmul.f32 %v1435, %v1439
        %v1441 = vadd.f32 %v1440, 0.05243302
        %v1442 = vmul.f32 %v1435, %v1441
        %v1443 = vadd.f32 %v1442, 0.18741608
        %v1444 = vmul.f32 %v1435, %v1443
        %v1445 = vadd.f32 %v1444, 1.1283791
        %v1446 = vmul.f32 %v466, %v1445
        %v1447 = vmul.f32 %v1435, 3.8918573e-05
        %v1448 = vadd.f32 %v1447, 0.001143296
        %v1449 = vmul.f32 %v1435, %v1448
        %v1450 = vadd.f32 %v1449, 0.014752088
        %v1451 = vmul.f32 %v1435, %v1450
        %v1452 = vadd.f32 %v1451, 0.112945676
        %v1453 = vmul.f32 %v1435, %v1452
        %v1454 = vadd.f32 %v1453, 0.4994258
        %v1455 = vmul.f32 %v1435, %v1454
        %v1456 = vadd.f32 %v1455, 1.0
        %v1457 = vrcp.pop %v1456
        %v1458 = vmul.f32 %v1456, %v1457
        %v1459 = vsub.f32 1.0, %v1458
        %v1460 = vmul.f32 %v1457, %v1459
        %v1461 = vadd.f32 %v1457, %v1460
        %vm1462 = vweird.f32 %v1456
        %vm1463 = vweird.f32 %v1457
        %vm1464 = vmor %vm1462, %vm1463
        %v1465 = vsel %vm1464, %v1457, %v1461
        %v1466 = vand.u32 2147483647, %v1456
        %vm1467 = vcmp.eq.f32.partialorder %v1466, 8.507059e+37
        %v1468 = vand.u32 %v1456, 2147483648
        %v1469 = vor.u32 1.1754944e-38, %v1468
        %v1470 = vsel %vm1467, %v1469, %v1465
        %v1471 = vmul.f32 %v1446, %v1470
        %v1472 = vmin.f32 %v1471, 1.0
        %v1473 = vmax.f32 %v1472, -1.0
        %v1474 = vmul.f32 %v467, %v467
        %v1475 = vmin.f32 16.0, %v1474
        %v1476 = vmul.f32 %v1475, 2.1237322e-06
        %v1477 = vadd.f32 %v1476, 0.00028619796
        %v1478 = vmul.f32 %v1475, %v1477
        %v1479 = vadd.f32 %v1478, 0.0036580483
        %v1480 = vmul.f32 %v1475, %v1479
        %v1481 = vadd.f32 %v1480, 0.05243302
        %v1482 = vmul.f32 %v1475, %v1481
        %v1483 = vadd.f32 %v1482, 0.18741608
        %v1484 = vmul.f32 %v1475, %v1483
        %v1485 = vadd.f32 %v1484, 1.1283791
        %v1486 = vmul.f32 %v467, %v1485
        %v1487 = vmul.f32 %v1475, 3.8918573e-05
        %v1488 = vadd.f32 %v1487, 0.001143296
        %v1489 = vmul.f32 %v1475, %v1488
        %v1490 = vadd.f32 %v1489, 0.014752088
        %v1491 = vmul.f32 %v1475, %v1490
        %v1492 = vadd.f32 %v1491, 0.112945676
        %v1493 = vmul.f32 %v1475, %v1492
        %v1494 = vadd.f32 %v1493, 0.4994258
        %v1495 = vmul.f32 %v1475, %v1494
        %v1496 = vadd.f32 %v1495, 1.0
        %v1497 = vrcp.pop %v1496
        %v1498 = vmul.f32 %v1496, %v1497
        %v1499 = vsub.f32 1.0, %v1498
        %v1500 = vmul.f32 %v1497, %v1499
        %v1501 = vadd.f32 %v1497, %v1500
        %vm1502 = vweird.f32 %v1496
        %vm1503 = vweird.f32 %v1497
        %vm1504 = vmor %vm1502, %vm1503
        %v1505 = vsel %vm1504, %v1497, %v1501
        %v1506 = vand.u32 2147483647, %v1496
        %vm1507 = vcmp.eq.f32.partialorder %v1506, 8.507059e+37
        %v1508 = vand.u32 %v1496, 2147483648
        %v1509 = vor.u32 1.1754944e-38, %v1508
        %v1510 = vsel %vm1507, %v1509, %v1505
        %v1511 = vmul.f32 %v1486, %v1510
        %v1512 = vmin.f32 %v1511, 1.0
        %v1513 = vmax.f32 %v1512, -1.0
        %v1514 = vmul.f32 %v468, %v468
        %v1515 = vmin.f32 16.0, %v1514
        %v1516 = vmul.f32 %v1515, 2.1237322e-06
        %v1517 = vadd.f32 %v1516, 0.00028619796
        %v1518 = vmul.f32 %v1515, %v1517
        %v1519 = vadd.f32 %v1518, 0.0036580483
        %v1520 = vmul.f32 %v1515, %v1519
        %v1521 = vadd.f32 %v1520, 0.05243302
        %v1522 = vmul.f32 %v1515, %v1521
        %v1523 = vadd.f32 %v1522, 0.18741608
        %v1524 = vmul.f32 %v1515, %v1523
        %v1525 = vadd.f32 %v1524, 1.1283791
        %v1526 = vmul.f32 %v468, %v1525
        %v1527 = vmul.f32 %v1515, 3.8918573e-05
        %v1528 = vadd.f32 %v1527, 0.001143296
        %v1529 = vmul.f32 %v1515, %v1528
        %v1530 = vadd.f32 %v1529, 0.014752088
        %v1531 = vmul.f32 %v1515, %v1530
        %v1532 = vadd.f32 %v1531, 0.112945676
        %v1533 = vmul.f32 %v1515, %v1532
        %v1534 = vadd.f32 %v1533, 0.4994258
        %v1535 = vmul.f32 %v1515, %v1534
        %v1536 = vadd.f32 %v1535, 1.0
        %v1537 = vrcp.pop %v1536
        %v1538 = vmul.f32 %v1536, %v1537
        %v1539 = vsub.f32 1.0, %v1538
        %v1540 = vmul.f32 %v1537, %v1539
        %v1541 = vadd.f32 %v1537, %v1540
        %vm1542 = vweird.f32 %v1536
        %vm1543 = vweird.f32 %v1537
        %vm1544 = vmor %vm1542, %vm1543
        %v1545 = vsel %vm1544, %v1537, %v1541
        %v1546 = vand.u32 2147483647, %v1536
        %vm1547 = vcmp.eq.f32.partialorder %v1546, 8.507059e+37
        %v1548 = vand.u32 %v1536, 2147483648
        %v1549 = vor.u32 1.1754944e-38, %v1548
        %v1550 = vsel %vm1547, %v1549, %v1545
        %v1551 = vmul.f32 %v1526, %v1550
        %v1552 = vmin.f32 %v1551, 1.0
        %v1553 = vmax.f32 %v1552, -1.0
        %v1554 = vmul.f32 %v469, %v469
        %v1555 = vmin.f32 16.0, %v1554
        %v1556 = vmul.f32 %v1555, 2.1237322e-06
        %v1557 = vadd.f32 %v1556, 0.00028619796
        %v1558 = vmul.f32 %v1555, %v1557
        %v1559 = vadd.f32 %v1558, 0.0036580483
        %v1560 = vmul.f32 %v1555, %v1559
        %v1561 = vadd.f32 %v1560, 0.05243302
        %v1562 = vmul.f32 %v1555, %v1561
        %v1563 = vadd.f32 %v1562, 0.18741608
        %v1564 = vmul.f32 %v1555, %v1563
        %v1565 = vadd.f32 %v1564, 1.1283791
        %v1566 = vmul.f32 %v469, %v1565
        %v1567 = vmul.f32 %v1555, 3.8918573e-05
        %v1568 = vadd.f32 %v1567, 0.001143296
        %v1569 = vmul.f32 %v1555, %v1568
        %v1570 = vadd.f32 %v1569, 0.014752088
        %v1571 = vmul.f32 %v1555, %v1570
        %v1572 = vadd.f32 %v1571, 0.112945676
        %v1573 = vmul.f32 %v1555, %v1572
        %v1574 = vadd.f32 %v1573, 0.4994258
        %v1575 = vmul.f32 %v1555, %v1574
        %v1576 = vadd.f32 %v1575, 1.0
        %v1577 = vrcp.pop %v1576
        %v1578 = vmul.f32 %v1576, %v1577
        %v1579 = vsub.f32 1.0, %v1578
        %v1580 = vmul.f32 %v1577, %v1579
        %v1581 = vadd.f32 %v1577, %v1580
        %vm1582 = vweird.f32 %v1576
        %vm1583 = vweird.f32 %v1577
        %vm1584 = vmor %vm1582, %vm1583
        %v1585 = vsel %vm1584, %v1577, %v1581
        %v1586 = vand.u32 2147483647, %v1576
        %vm1587 = vcmp.eq.f32.partialorder %v1586, 8.507059e+37
        %v1588 = vand.u32 %v1576, 2147483648
        %v1589 = vor.u32 1.1754944e-38, %v1588
        %v1590 = vsel %vm1587, %v1589, %v1585
        %v1591 = vmul.f32 %v1566, %v1590
        %v1592 = vmin.f32 %v1591, 1.0
        %v1593 = vmax.f32 %v1592, -1.0
        %v1594 = vmul.f32 %v470, %v470
        %v1595 = vmin.f32 16.0, %v1594
        %v1596 = vmul.f32 %v1595, 2.1237322e-06
        %v1597 = vadd.f32 %v1596, 0.00028619796
        %v1598 = vmul.f32 %v1595, %v1597
        %v1599 = vadd.f32 %v1598, 0.0036580483
        %v1600 = vmul.f32 %v1595, %v1599
        %v1601 = vadd.f32 %v1600, 0.05243302
        %v1602 = vmul.f32 %v1595, %v1601
        %v1603 = vadd.f32 %v1602, 0.18741608
        %v1604 = vmul.f32 %v1595, %v1603
        %v1605 = vadd.f32 %v1604, 1.1283791
        %v1606 = vmul.f32 %v470, %v1605
        %v1607 = vmul.f32 %v1595, 3.8918573e-05
        %v1608 = vadd.f32 %v1607, 0.001143296
        %v1609 = vmul.f32 %v1595, %v1608
        %v1610 = vadd.f32 %v1609, 0.014752088
        %v1611 = vmul.f32 %v1595, %v1610
        %v1612 = vadd.f32 %v1611, 0.112945676
        %v1613 = vmul.f32 %v1595, %v1612
        %v1614 = vadd.f32 %v1613, 0.4994258
        %v1615 = vmul.f32 %v1595, %v1614
        %v1616 = vadd.f32 %v1615, 1.0
        %v1617 = vrcp.pop %v1616
        %v1618 = vmul.f32 %v1616, %v1617
        %v1619 = vsub.f32 1.0, %v1618
        %v1620 = vmul.f32 %v1617, %v1619
        %v1621 = vadd.f32 %v1617, %v1620
        %vm1622 = vweird.f32 %v1616
        %vm1623 = vweird.f32 %v1617
        %vm1624 = vmor %vm1622, %vm1623
        %v1625 = vsel %vm1624, %v1617, %v1621
        %v1626 = vand.u32 2147483647, %v1616
        %vm1627 = vcmp.eq.f32.partialorder %v1626, 8.507059e+37
        %v1628 = vand.u32 %v1616, 2147483648
        %v1629 = vor.u32 1.1754944e-38, %v1628
        %v1630 = vsel %vm1627, %v1629, %v1625
        %v1631 = vmul.f32 %v1606, %v1630
        %v1632 = vmin.f32 %v1631, 1.0
        %v1633 = vmax.f32 %v1632, -1.0
        %v1634 = vmul.f32 %v471, %v471
        %v1635 = vmin.f32 16.0, %v1634
        %v1636 = vmul.f32 %v1635, 2.1237322e-06
        %v1637 = vadd.f32 %v1636, 0.00028619796
        %v1638 = vmul.f32 %v1635, %v1637
        %v1639 = vadd.f32 %v1638, 0.0036580483
        %v1640 = vmul.f32 %v1635, %v1639
        %v1641 = vadd.f32 %v1640, 0.05243302
        %v1642 = vmul.f32 %v1635, %v1641
        %v1643 = vadd.f32 %v1642, 0.18741608
        %v1644 = vmul.f32 %v1635, %v1643
        %v1645 = vadd.f32 %v1644, 1.1283791
        %v1646 = vmul.f32 %v471, %v1645
        %v1647 = vmul.f32 %v1635, 3.8918573e-05
        %v1648 = vadd.f32 %v1647, 0.001143296
        %v1649 = vmul.f32 %v1635, %v1648
        %v1650 = vadd.f32 %v1649, 0.014752088
        %v1651 = vmul.f32 %v1635, %v1650
        %v1652 = vadd.f32 %v1651, 0.112945676
        %v1653 = vmul.f32 %v1635, %v1652
        %v1654 = vadd.f32 %v1653, 0.4994258
        %v1655 = vmul.f32 %v1635, %v1654
        %v1656 = vadd.f32 %v1655, 1.0
        %v1657 = vrcp.pop %v1656
        %v1658 = vmul.f32 %v1656, %v1657
        %v1659 = vsub.f32 1.0, %v1658
        %v1660 = vmul.f32 %v1657, %v1659
        %v1661 = vadd.f32 %v1657, %v1660
        %vm1662 = vweird.f32 %v1656
        %vm1663 = vweird.f32 %v1657
        %vm1664 = vmor %vm1662, %vm1663
        %v1665 = vsel %vm1664, %v1657, %v1661
        %v1666 = vand.u32 2147483647, %v1656
        %vm1667 = vcmp.eq.f32.partialorder %v1666, 8.507059e+37
        %v1668 = vand.u32 %v1656, 2147483648
        %v1669 = vor.u32 1.1754944e-38, %v1668
        %v1670 = vsel %vm1667, %v1669, %v1665
        %v1671 = vmul.f32 %v1646, %v1670
        %v1672 = vmin.f32 %v1671, 1.0
        %v1673 = vmax.f32 %v1672, -1.0
        %v1674 = vmul.f32 %v472, %v472
        %v1675 = vmin.f32 16.0, %v1674
        %v1676 = vmul.f32 %v1675, 2.1237322e-06
        %v1677 = vadd.f32 %v1676, 0.00028619796
        %v1678 = vmul.f32 %v1675, %v1677
        %v1679 = vadd.f32 %v1678, 0.0036580483
        %v1680 = vmul.f32 %v1675, %v1679
        %v1681 = vadd.f32 %v1680, 0.05243302
        %v1682 = vmul.f32 %v1675, %v1681
        %v1683 = vadd.f32 %v1682, 0.18741608
        %v1684 = vmul.f32 %v1675, %v1683
        %v1685 = vadd.f32 %v1684, 1.1283791
        %v1686 = vmul.f32 %v472, %v1685
        %v1687 = vmul.f32 %v1675, 3.8918573e-05
        %v1688 = vadd.f32 %v1687, 0.001143296
        %v1689 = vmul.f32 %v1675, %v1688
        %v1690 = vadd.f32 %v1689, 0.014752088
        %v1691 = vmul.f32 %v1675, %v1690
        %v1692 = vadd.f32 %v1691, 0.112945676
        %v1693 = vmul.f32 %v1675, %v1692
        %v1694 = vadd.f32 %v1693, 0.4994258
        %v1695 = vmul.f32 %v1675, %v1694
        %v1696 = vadd.f32 %v1695, 1.0
        %v1697 = vrcp.pop %v1696
        %v1698 = vmul.f32 %v1696, %v1697
        %v1699 = vsub.f32 1.0, %v1698
        %v1700 = vmul.f32 %v1697, %v1699
        %v1701 = vadd.f32 %v1697, %v1700
        %vm1702 = vweird.f32 %v1696
        %vm1703 = vweird.f32 %v1697
        %vm1704 = vmor %vm1702, %vm1703
        %v1705 = vsel %vm1704, %v1697, %v1701
        %v1706 = vand.u32 2147483647, %v1696
        %vm1707 = vcmp.eq.f32.partialorder %v1706, 8.507059e+37
        %v1708 = vand.u32 %v1696, 2147483648
        %v1709 = vor.u32 1.1754944e-38, %v1708
        %v1710 = vsel %vm1707, %v1709, %v1705
        %v1711 = vmul.f32 %v1686, %v1710
        %v1712 = vmin.f32 %v1711, 1.0
        %v1713 = vmax.f32 %v1712, -1.0
        %v1714 = vmul.f32 %v473, %v473
        %v1715 = vmin.f32 16.0, %v1714
        %v1716 = vmul.f32 %v1715, 2.1237322e-06
        %v1717 = vadd.f32 %v1716, 0.00028619796
        %v1718 = vmul.f32 %v1715, %v1717
        %v1719 = vadd.f32 %v1718, 0.0036580483
        %v1720 = vmul.f32 %v1715, %v1719
        %v1721 = vadd.f32 %v1720, 0.05243302
        %v1722 = vmul.f32 %v1715, %v1721
        %v1723 = vadd.f32 %v1722, 0.18741608
        %v1724 = vmul.f32 %v1715, %v1723
        %v1725 = vadd.f32 %v1724, 1.1283791
        %v1726 = vmul.f32 %v473, %v1725
        %v1727 = vmul.f32 %v1715, 3.8918573e-05
        %v1728 = vadd.f32 %v1727, 0.001143296
        %v1729 = vmul.f32 %v1715, %v1728
        %v1730 = vadd.f32 %v1729, 0.014752088
        %v1731 = vmul.f32 %v1715, %v1730
        %v1732 = vadd.f32 %v1731, 0.112945676
        %v1733 = vmul.f32 %v1715, %v1732
        %v1734 = vadd.f32 %v1733, 0.4994258
        %v1735 = vmul.f32 %v1715, %v1734
        %v1736 = vadd.f32 %v1735, 1.0
        %v1737 = vrcp.pop %v1736
        %v1738 = vmul.f32 %v1736, %v1737
        %v1739 = vsub.f32 1.0, %v1738
        %v1740 = vmul.f32 %v1737, %v1739
        %v1741 = vadd.f32 %v1737, %v1740
        %vm1742 = vweird.f32 %v1736
        %vm1743 = vweird.f32 %v1737
        %vm1744 = vmor %vm1742, %vm1743
        %v1745 = vsel %vm1744, %v1737, %v1741
        %v1746 = vand.u32 2147483647, %v1736
        %vm1747 = vcmp.eq.f32.partialorder %v1746, 8.507059e+37
        %v1748 = vand.u32 %v1736, 2147483648
        %v1749 = vor.u32 1.1754944e-38, %v1748
        %v1750 = vsel %vm1747, %v1749, %v1745
        %v1751 = vmul.f32 %v1726, %v1750
        %v1752 = vmin.f32 %v1751, 1.0
        %v1753 = vmax.f32 %v1752, -1.0
        %v1754 = vadd.f32 %v513, 1.0
        %v1755 = vadd.f32 %v553, 1.0
        %v1756 = vadd.f32 %v593, 1.0
        %v1757 = vadd.f32 %v633, 1.0
        %v1758 = vadd.f32 %v673, 1.0
        %v1759 = vadd.f32 %v713, 1.0
        %v1760 = vadd.f32 %v753, 1.0
        %v1761 = vadd.f32 %v793, 1.0
        %v1762 = vadd.f32 %v833, 1.0
        %v1763 = vadd.f32 %v873, 1.0
        %v1764 = vadd.f32 %v913, 1.0
        %v1765 = vadd.f32 %v953, 1.0
        %v1766 = vadd.f32 %v993, 1.0
        %v1767 = vadd.f32 %v1033, 1.0
        %v1768 = vadd.f32 %v1073, 1.0
        %v1769 = vadd.f32 %v1113, 1.0
        %v1770 = vadd.f32 %v1153, 1.0
        %v1771 = vadd.f32 %v1193, 1.0
        %v1772 = vadd.f32 %v1233, 1.0
        %v1773 = vadd.f32 %v1273, 1.0
        %v1774 = vadd.f32 %v1313, 1.0
        %v1775 = vadd.f32 %v1353, 1.0
        %v1776 = vadd.f32 %v1393, 1.0
        %v1777 = vadd.f32 %v1433, 1.0
        %v1778 = vadd.f32 %v1473, 1.0
        %v1779 = vadd.f32 %v1513, 1.0
        %v1780 = vadd.f32 %v1553, 1.0
        %v1781 = vadd.f32 %v1593, 1.0
        %v1782 = vadd.f32 %v1633, 1.0
        %v1783 = vadd.f32 %v1673, 1.0
        %v1784 = vadd.f32 %v1713, 1.0
        %v1785 = vadd.f32 %v1753, 1.0
        %v1786 = vmul.f32 %v410, %v1754
        %v1787 = vmul.f32 %v411, %v1755
        %v1788 = vmul.f32 %v412, %v1756
        %v1789 = vmul.f32 %v413, %v1757
        %v1790 = vmul.f32 %v414, %v1758
        %v1791 = vmul.f32 %v415, %v1759
        %v1792 = vmul.f32 %v416, %v1760
        %v1793 = vmul.f32 %v417, %v1761
        %v1794 = vmul.f32 %v418, %v1762
        %v1795 = vmul.f32 %v419, %v1763
        %v1796 = vmul.f32 %v420, %v1764
        %v1797 = vmul.f32 %v421, %v1765
        %v1798 = vmul.f32 %v422, %v1766
        %v1799 = vmul.f32 %v423, %v1767
        %v1800 = vmul.f32 %v424, %v1768
        %v1801 = vmul.f32 %v425, %v1769
        %v1802 = vmul.f32 %v426, %v1770
        %v1803 = vmul.f32 %v427, %v1771
        %v1804 = vmul.f32 %v428, %v1772
        %v1805 = vmul.f32 %v429, %v1773
        %v1806 = vmul.f32 %v430, %v1774
        %v1807 = vmul.f32 %v431, %v1775
        %v1808 = vmul.f32 %v432, %v1776
        %v1809 = vmul.f32 %v433, %v1777
        %v1810 = vmul.f32 %v434, %v1778
        %v1811 = vmul.f32 %v435, %v1779
        %v1812 = vmul.f32 %v436, %v1780
        %v1813 = vmul.f32 %v437, %v1781
        %v1814 = vmul.f32 %v438, %v1782
        %v1815 = vmul.f32 %v439, %v1783
        %v1816 = vmul.f32 %v440, %v1784
        %v1817 = vmul.f32 %v441, %v1785
        %1818 = vst [vmem:[%s207] sm:$0xff] %v1786
        %1819 = vst [vmem:[%s207 + $0x8] sm:$0xff] %v1787
        %1820 = vst [vmem:[%s207 + $0x10] sm:$0xff] %v1788
        %1821 = vst [vmem:[%s207 + $0x18] sm:$0xff] %v1789
        %1822 = vst [vmem:[%s207 + $0x20] sm:$0xff] %v1790
        %1823 = vst [vmem:[%s207 + $0x28] sm:$0xff] %v1791
        %1824 = vst [vmem:[%s207 + $0x30] sm:$0xff] %v1792
        %1825 = vst [vmem:[%s207 + $0x38] sm:$0xff] %v1793
        %1826 = vst [vmem:[%s207 + $0x40] sm:$0xff] %v1794
        %1827 = vst [vmem:[%s207 + $0x48] sm:$0xff] %v1795
        %1828 = vst [vmem:[%s207 + $0x50] sm:$0xff] %v1796
        %1829 = vst [vmem:[%s207 + $0x58] sm:$0xff] %v1797
        %1830 = vst [vmem:[%s207 + $0x60] sm:$0xff] %v1798
        %1831 = vst [vmem:[%s207 + $0x68] sm:$0xff] %v1799
        %1832 = vst [vmem:[%s207 + $0x70] sm:$0xff] %v1800
        %1833 = vst [vmem:[%s207 + $0x78] sm:$0xff] %v1801
        %1834 = vst [vmem:[%s207 + $0x80] sm:$0xff] %v1802
        %1835 = vst [vmem:[%s207 + $0x88] sm:$0xff] %v1803
        %1836 = vst [vmem:[%s207 + $0x90] sm:$0xff] %v1804
        %1837 = vst [vmem:[%s207 + $0x98] sm:$0xff] %v1805
        %1838 = vst [vmem:[%s207 + $0xa0] sm:$0xff] %v1806
        %1839 = vst [vmem:[%s207 + $0xa8] sm:$0xff] %v1807
        %1840 = vst [vmem:[%s207 + $0xb0] sm:$0xff] %v1808
        %1841 = vst [vmem:[%s207 + $0xb8] sm:$0xff] %v1809
        %1842 = vst [vmem:[%s207 + $0xc0] sm:$0xff] %v1810
        %1843 = vst [vmem:[%s207 + $0xc8] sm:$0xff] %v1811
        %1844 = vst [vmem:[%s207 + $0xd0] sm:$0xff] %v1812
        %1845 = vst [vmem:[%s207 + $0xd8] sm:$0xff] %v1813
        %1846 = vst [vmem:[%s207 + $0xe0] sm:$0xff] %v1814
        %1847 = vst [vmem:[%s207 + $0xe8] sm:$0xff] %v1815
        %1848 = vst [vmem:[%s207 + $0xf0] sm:$0xff] %v1816
        %1849 = vst [vmem:[%s207 + $0xf8] sm:$0xff] %v1817
        %s1850 = sand.u32 %s97, 1
        %s1851 = scalar_lea.sflag [#allocation4], %s1850
        %s1852 = sand.u32 %s97, 1
        %s1853 = smul.addr %s1852, 256
        %s1854 = scalar_lea.vmem [#allocation7], %s1853
        // Predicated region
        $region41: #{tpu_custom_call.1} parent=31 // pred_check
          %p1855 = pneg %p107
        $region42: #{tpu_custom_call.1} parent=31 // pred_check_branch
          %1857 = sbr.rel (%p1855) target = $region44
        $region43: #{tpu_custom_call.1} parent=31 // pred_region
          %1859 = vsyncadd %s1851, 0
          %s1860 = smul.addr %s21, 32
          %s1861 = smul.addr %s1860, 8
          %s1862 = scalar_lea.hbm %s3, %s1861
          %s1863 = sshll.u32 %s1854, 4
          %s1864 = int_to_ptr.vmem [resolvable:$true] %s1863
          %s1865 = sshll.u32 %s1862, 4
          %s1866 = int_to_ptr.hbm [resolvable:$true] %s1865
          %1871 = dma.vmem_to_hbm [thread:$0]  %s1864, 4096, %s1866, %s1851, 128, 128, 8
        $region44: #{tpu_custom_call.1} parent=31 // pred_fallthru
          _
      $region32: #{tpu_custom_call.1} parent=5 // pred_fallthru
        _
      %p1872 = scmp.le.s32.totalorder 2, %s16
      // Predicated region
      $region45: #{tpu_custom_call.1} parent=5 // pred_check
        %p1873 = pneg %p1872
      $region46: #{tpu_custom_call.1} parent=5 // pred_check_branch
        %1875 = sbr.rel (%p1873) target = $region48
      $region47: #{tpu_custom_call.1} parent=5 // pred_region
        %s1876 = ssub.s32 %s16, 2
        // Predicated region
        $region49: #{tpu_custom_call.1} parent=47 // pred_check
          %p1877 = pneg %p113
        $region50: #{tpu_custom_call.1} parent=47 // pred_check_branch
          %1879 = sbr.rel (%p1877) target = $region52
        $region51: #{tpu_custom_call.1} parent=47 // pred_region
          %s1880 = sand.u32 %s98, 1
          %s1881 = scalar_lea.sflag [#allocation4], %s1880
          %s1882 = sand.u32 %s98, 1
          %s1883 = smul.addr %s1882, 256
          %s1884 = scalar_lea.vmem [#allocation7], %s1883
          %1886 = dma.done %s1881, 4096
        $region52: #{tpu_custom_call.1} parent=47 // pred_fallthru
          _
      $region48: #{tpu_custom_call.1} parent=5 // pred_fallthru
        _
    $region6: #{tpu_custom_call.1} parent=1 // loop_footer
      %s20 = sadd.s32 1, %s16
    $region7: #{tpu_custom_call.1} parent=1 // loop_footer_branch
      %15 = sbr.rel target = $region3
    $region8: #{tpu_custom_call.1} parent=1 // loop_exit
      _
    %1887 = vsyncpa [#allocation3], 1
    %s1888 = scalar_lea.sflag [#allocation3], 1
    %1889 = vsyncpa %s1888, 1
    %1890 = vsyncpa [#allocation6], 1
    %1891 = vsyncpa [#allocation4], 1
    %s1892 = scalar_lea.sflag [#allocation4], 1
    %1893 = vsyncpa %s1892, 1

// kernel: tpu_custom_call.1
$region0: #{tpu_custom_call.1}
  #allocation0 [shape = 'u32[]', space=smem, size = 0x4, offset = 0x4, fixed_abs, tag = 'smem constant byte address 0x4 - core index']
  #allocation1 [shape = 'u32[72,128]{1,0:T(1,128)}', space=vmem, size = 0x9000, scoped, tag = 'internal scratch']
  %s0 = inlined_call_operand.hbm [shape: f32[2,256,128], index: 0, kind: input, shape index: {}]
  %s1 = inlined_call_operand.hbm [shape: f32[128,128], index: 1, kind: input, shape index: {}]
  %s2 = inlined_call_operand.vmem [shape: f32[1,128], index: 2, kind: input, shape index: {}]
  %s3 = inlined_call_operand.hbm [shape: f32[2,256,128], index: 3, kind: output, shape index: {}]
  %s4 = sld [smem:[#allocation0]]
  $region53: #{tpu_custom_call.1} parent=0
    _
  %s6 = ssub.s32 1, %s4
  %s7 = scalar_select 0, %s6, %s4
  $region1: #{tpu_custom_call.1} parent=0
    #allocation2 [shape = 'u8[262144]{0}', space=vmem, size = 0x40000, scoped, tag = 'input window, operand 0']
    #allocation3 [shape = 's32[2]{0}', space=sflag, size = 0x8, scoped, tag = 'scoped memory for tpu_custom_call.1']
    #allocation4 [shape = 's32[2]{0}', space=sflag, size = 0x8, scoped, tag = 'scoped memory for tpu_custom_call.1']
    #allocation5 [shape = 'u8[65536]{0}', space=vmem, size = 0x10000, scoped, tag = 'input window, operand 1, single buffered']
    #allocation6 [shape = 's32[1]{0}', space=sflag, size = 0x4, scoped, tag = 'scoped memory for tpu_custom_call.1']
    #allocation7 [shape = 'u8[262144]{0}', space=vmem, size = 0x40000, scoped, tag = 'output window, operand 0']
    %8 = vsyncpa [#allocation3], 0
    %s9 = scalar_lea.sflag [#allocation3], 1
    %10 = vsyncpa %s9, 0
    %11 = vsyncpa [#allocation6], 0
    %12 = vsyncpa [#allocation4], 0
    %s13 = scalar_lea.sflag [#allocation4], 1
    %14 = vsyncpa %s13, 0
    loop: start=0, step=1, limit=4
    $region2: #{tpu_custom_call.1} parent=1 // loop_pre_header
      _
    $region3: #{tpu_custom_call.1} parent=1 // loop_header
      %s16 = sphi 0, %s20
      %p17 = scmp.ge.s32.totalorder %s16, 4
      %s26 = sphi 0, %s28
      %s29 = sphi 0, %s26
      %s30 = sphi 0, %s29
      %s46 = sphi 0, %s30
      %s50 = sphi 0, %s50
      %s52 = sphi 0, %s50
      %s53 = sphi 0, %s52
      %s67 = sphi 0, %s53
      %s71 = sphi 0, %s71
      %s73 = sphi 0, %s71
      %s74 = sphi 0, %s73
      %s88 = sphi 0, %s74
      %s94 = sphi 0, %s96
      %s97 = sphi 0, %s94
      %s98 = sphi 0, %s97
      %s114 = sphi 0, %s98
    $region4: #{tpu_custom_call.1} parent=1 // loop_header_branch
      %19 = sbr.rel (%p17) target = $region8
    $region5: #{tpu_custom_call.1} parent=1 // loop_body
      %s21 = ssub.s32 %s16, 1
      %s22 = ssub.s32 %s16, 2
      %s23 = sadd.s32 %s16, 1
      %s24 = ssub.s32 %s16, %s23
      %p25 = scmp.eq.s32.totalorder %s24, 0
      %s27 = sadd.s32 %s26, 1
      %s28 = scalar_select %p25, %s26, %s27
      %p31 = pneg %p25
      %p32 = scmp.eq.s32.totalorder %s16, 1
      %p33 = por %p31, %p32
      %p34 = scmp.ne.s32.totalorder %s26, %s29
      %p35 = scmp.eq.s32.totalorder %s16, 0
      %p36 = por %p34, %p35
      %p37 = scmp.ne.s32.totalorder %s26, %s29
      %p38 = scmp.eq.s32.totalorder %s21, 1
      %p39 = por %p37, %p38
      %p40 = scmp.ne.s32.totalorder %s29, %s30
      %p41 = scmp.eq.s32.totalorder %s21, 0
      %p42 = por %p40, %p41
      %p43 = scmp.ne.s32.totalorder %s29, %s30
      %p44 = scmp.eq.s32.totalorder %s22, 1
      %p45 = por %p43, %p44
      %p47 = scmp.ne.s32.totalorder %s30, %s46
      %p48 = scmp.eq.s32.totalorder %s22, 0
      %p49 = por %p47, %p48
      %s51 = sadd.s32 %s50, 1
      %p54 = scmp.eq.s32.totalorder %s16, 1
      %p55 = scmp.ne.s32.totalorder %s50, %s52
      %p56 = scmp.eq.s32.totalorder %s16, 0
      %p57 = por %p55, %p56
      %p58 = scmp.ne.s32.totalorder %s50, %s52
      %p59 = scmp.eq.s32.totalorder %s21, 1
      %p60 = por %p58, %p59
      %p61 = scmp.ne.s32.totalorder %s52, %s53
      %p62 = scmp.eq.s32.totalorder %s21, 0
      %p63 = por %p61, %p62
      %p64 = scmp.ne.s32.totalorder %s52, %s53
      %p65 = scmp.eq.s32.totalorder %s22, 1
      %p66 = por %p64, %p65
      %p68 = scmp.ne.s32.totalorder %s53, %s67
      %p69 = scmp.eq.s32.totalorder %s22, 0
      %p70 = por %p68, %p69
      %s72 = sadd.s32 %s71, 1
      %p75 = scmp.eq.s32.totalorder %s16, 1
      %p76 = scmp.ne.s32.totalorder %s71, %s73
      %p77 = scmp.eq.s32.totalorder %s16, 0
      %p78 = por %p76, %p77
      %p79 = scmp.ne.s32.totalorder %s71, %s73
      %p80 = scmp.eq.s32.totalorder %s21, 1
      %p81 = por %p79, %p80
      %p82 = scmp.ne.s32.totalorder %s73, %s74
      %p83 = scmp.eq.s32.totalorder %s21, 0
      %p84 = por %p82, %p83
      %p85 = scmp.ne.s32.totalorder %s73, %s74
      %p86 = scmp.eq.s32.totalorder %s22, 1
      %p87 = por %p85, %p86
      %p89 = scmp.ne.s32.totalorder %s74, %s88
      %p90 = scmp.eq.s32.totalorder %s22, 0
      %p91 = por %p89, %p90
      %s92 = ssub.s32 %s16, %s23
      %p93 = scmp.eq.s32.totalorder %s92, 0
      %s95 = sadd.s32 %s94, 1
      %s96 = scalar_select %p93, %s94, %s95
      %p99 = pneg %p93
      %p100 = scmp.eq.s32.totalorder %s16, 1
      %p101 = por %p99, %p100
      %p102 = scmp.ne.s32.totalorder %s94, %s97
      %p103 = scmp.eq.s32.totalorder %s16, 0
      %p104 = por %p102, %p103
      %p105 = scmp.ne.s32.totalorder %s94, %s97
      %p106 = scmp.eq.s32.totalorder %s21, 1
      %p107 = por %p105, %p106
      %p108 = scmp.ne.s32.totalorder %s97, %s98
      %p109 = scmp.eq.s32.totalorder %s21, 0
      %p110 = por %p108, %p109
      %p111 = scmp.ne.s32.totalorder %s97, %s98
      %p112 = scmp.eq.s32.totalorder %s22, 1
      %p113 = por %p111, %p112
      %p115 = scmp.ne.s32.totalorder %s98, %s114
      %p116 = scmp.eq.s32.totalorder %s22, 0
      %p117 = por %p115, %p116
      %p118 = scmp.le.s32.totalorder 1, %s16
      %p119 = scmp.lt.s32.totalorder %s16, 3
      %p120 = pnand %p118, %p119
      %p121 = pneg %p120
      // Predicated region
      $region9: #{tpu_custom_call.1} parent=5 // pred_check
        _
      $region10: #{tpu_custom_call.1} parent=5 // pred_check_branch
        %123 = sbr.rel (%p120) target = $region12
      $region11: #{tpu_custom_call.1} parent=5 // pred_region
        %s124 = ssub.s32 %s16, 1
        // Predicated region
        $region13: #{tpu_custom_call.1} parent=11 // pred_check
          %p125 = pneg %p63
        $region14: #{tpu_custom_call.1} parent=11 // pred_check_branch
          %127 = sbr.rel (%p125) target = $region16
        $region15: #{tpu_custom_call.1} parent=11 // pred_region
          %129 = vsyncadd [#allocation6], 0
          %s130 = sshll.u32 %s1, 4
          %s131 = int_to_ptr.hbm [resolvable:$true] %s130
          %s132 = sshll.u32 [#allocation5], 4
          %s133 = int_to_ptr.vmem [resolvable:$true] %s132
          %138 = dma.hbm_to_vmem [thread:$0]  %s131, 2048, %s133, [#allocation6], 128, 128, 8
        $region16: #{tpu_custom_call.1} parent=11 // pred_fallthru
          _
        // Predicated region
        $region17: #{tpu_custom_call.1} parent=11 // pred_check
          %p139 = pneg %p84
        $region18: #{tpu_custom_call.1} parent=11 // pred_check_branch
          %141 = sbr.rel (%p139) target = $region20
        $region19: #{tpu_custom_call.1} parent=11 // pred_region
          _
        $region20: #{tpu_custom_call.1} parent=11 // pred_fallthru
          _
      $region12: #{tpu_custom_call.1} parent=5 // pred_fallthru
        _
      %p142 = scmp.lt.s32.totalorder %s16, 2
      // Predicated region
      $region21: #{tpu_custom_call.1} parent=5 // pred_check
        %p143 = pneg %p142
      $region22: #{tpu_custom_call.1} parent=5 // pred_check_branch
        %145 = sbr.rel (%p143) target = $region24
      $region23: #{tpu_custom_call.1} parent=5 // pred_region
        // Predicated region
        $region25: #{tpu_custom_call.1} parent=23 // pred_check
          %p146 = pneg %p36
        $region26: #{tpu_custom_call.1} parent=23 // pred_check_branch
          %148 = sbr.rel (%p146) target = $region28
        $region27: #{tpu_custom_call.1} parent=23 // pred_region
          %s149 = sand.u32 %s26, 1
          %s150 = scalar_lea.sflag [#allocation3], %s149
          %s151 = sand.u32 %s26, 1
          %s152 = smul.addr %s151, 256
          %s153 = scalar_lea.vmem [#allocation2], %s152
          %155 = vsyncadd %s150, 0
          %s156 = smul.addr %s16, 32
          %s157 = smul.addr %s156, 8
          %s158 = scalar_lea.hbm %s0, %s157
          %s159 = sshll.u32 %s158, 4
          %s160 = int_to_ptr.hbm [resolvable:$true] %s159
          %s161 = sshll.u32 %s153, 4
          %s162 = int_to_ptr.vmem [resolvable:$true] %s161
          %167 = dma.hbm_to_vmem [thread:$0]  %s160, 4096, %s162, %s150, 128, 128, 8
        $region28: #{tpu_custom_call.1} parent=23 // pred_fallthru
          _
      $region24: #{tpu_custom_call.1} parent=5 // pred_fallthru
        _
      %p168 = scmp.le.s32.totalorder 1, %s16
      %p169 = scmp.lt.s32.totalorder %s16, 3
      %p170 = pnand %p168, %p169
      %p171 = pneg %p170
      // Predicated region
      $region29: #{tpu_custom_call.1} parent=5 // pred_check
        _
      $region30: #{tpu_custom_call.1} parent=5 // pred_check_branch
        %173 = sbr.rel (%p170) target = $region32
      $region31: #{tpu_custom_call.1} parent=5 // pred_region
        %s174 = ssub.s32 %s16, 1
        %s175 = sand.u32 %s29, 1
        %s176 = scalar_lea.sflag [#allocation3], %s175
        %s177 = sand.u32 %s29, 1
        %s178 = smul.addr %s177, 256
        %s179 = scalar_lea.vmem [#allocation2], %s178
        // Predicated region
        $region33: #{tpu_custom_call.1} parent=31 // pred_check
          %p180 = pneg %p42
        $region34: #{tpu_custom_call.1} parent=31 // pred_check_branch
          %182 = sbr.rel (%p180) target = $region36
        $region35: #{tpu_custom_call.1} parent=31 // pred_region
          %184 = dma.done %s176, 4096
        $region36: #{tpu_custom_call.1} parent=31 // pred_fallthru
          _
        // Predicated region
        $region37: #{tpu_custom_call.1} parent=31 // pred_check
          %p185 = pneg %p63
        $region38: #{tpu_custom_call.1} parent=31 // pred_check_branch
          %187 = sbr.rel (%p185) target = $region40
        $region39: #{tpu_custom_call.1} parent=31 // pred_region
          %189 = dma.done [#allocation6], 2048
        $region40: #{tpu_custom_call.1} parent=31 // pred_fallthru
          _
        %s190 = sand.u32 %s29, 1
        %s191 = scalar_lea.sflag [#allocation3], %s190
        %s192 = sand.u32 %s29, 1
        %s193 = smul.addr %s192, 256
        %s194 = scalar_lea.vmem [#allocation2], %s193
        %p195 = pneg %p42
        %p196 = pneg %p39
        %p197 = pneg %p63
        %p198 = pneg %p60
        %p199 = pneg %p84
        %p200 = pneg %p81
        %p201 = pneg %p110
        %p202 = pneg %p107
        %s203 = sand.u32 %s97, 1
        %s204 = scalar_lea.sflag [#allocation4], %s203
        %s205 = sand.u32 %s97, 1
        %s206 = smul.addr %s205, 256
        %s207 = scalar_lea.vmem [#allocation7], %s206
        %v208 = vld [vmem:[%s179] sm:$0xff]
        %v209 = vld [vmem:[%s179 + $0x8] sm:$0xff]
        %v210 = vld [vmem:[%s179 + $0x10] sm:$0xff]
        %v211 = vld [vmem:[%s179 + $0x18] sm:$0xff]
        %v212 = vld [vmem:[%s179 + $0x20] sm:$0xff]
        %v213 = vld [vmem:[%s179 + $0x28] sm:$0xff]
        %v214 = vld [vmem:[%s179 + $0x30] sm:$0xff]
        %v215 = vld [vmem:[%s179 + $0x38] sm:$0xff]
        %v216 = vld [vmem:[%s179 + $0x40] sm:$0xff]
        %v217 = vld [vmem:[%s179 + $0x48] sm:$0xff]
        %v218 = vld [vmem:[%s179 + $0x50] sm:$0xff]
        %v219 = vld [vmem:[%s179 + $0x58] sm:$0xff]
        %v220 = vld [vmem:[%s179 + $0x60] sm:$0xff]
        %v221 = vld [vmem:[%s179 + $0x68] sm:$0xff]
        %v222 = vld [vmem:[%s179 + $0x70] sm:$0xff]
        %v223 = vld [vmem:[%s179 + $0x78] sm:$0xff]
        %v224 = vld [vmem:[%s179 + $0x80] sm:$0xff]
        %v225 = vld [vmem:[%s179 + $0x88] sm:$0xff]
        %v226 = vld [vmem:[%s179 + $0x90] sm:$0xff]
        %v227 = vld [vmem:[%s179 + $0x98] sm:$0xff]
        %v228 = vld [vmem:[%s179 + $0xa0] sm:$0xff]
        %v229 = vld [vmem:[%s179 + $0xa8] sm:$0xff]
        %v230 = vld [vmem:[%s179 + $0xb0] sm:$0xff]
        %v231 = vld [vmem:[%s179 + $0xb8] sm:$0xff]
        %v232 = vld [vmem:[%s179 + $0xc0] sm:$0xff]
        %v233 = vld [vmem:[%s179 + $0xc8] sm:$0xff]
        %v234 = vld [vmem:[%s179 + $0xd0] sm:$0xff]
        %v235 = vld [vmem:[%s179 + $0xd8] sm:$0xff]
        %v236 = vld [vmem:[%s179 + $0xe0] sm:$0xff]
        %v237 = vld [vmem:[%s179 + $0xe8] sm:$0xff]
        %v238 = vld [vmem:[%s179 + $0xf0] sm:$0xff]
        %v239 = vld [vmem:[%s179 + $0xf8] sm:$0xff]
        %v240 = vadd.f32 %v208, %v209
        %v241 = vadd.f32 %v240, %v210
        %v242 = vadd.f32 %v241, %v211
        %v243 = vadd.f32 %v242, %v212
        %v244 = vadd.f32 %v243, %v213
        %v245 = vadd.f32 %v244, %v214
        %v246 = vadd.f32 %v245, %v215
        %v247 = vadd.f32 %v246, %v216
        %v248 = vadd.f32 %v247, %v217
        %v249 = vadd.f32 %v248, %v218
        %v250 = vadd.f32 %v249, %v219
        %v251 = vadd.f32 %v250, %v220
        %v252 = vadd.f32 %v251, %v221
        %v253 = vadd.f32 %v252, %v222
        %v254 = vadd.f32 %v253, %v223
        %v255 = vadd.f32 %v254, %v224
        %v256 = vadd.f32 %v255, %v225
        %v257 = vadd.f32 %v256, %v226
        %v258 = vadd.f32 %v257, %v227
        %v259 = vadd.f32 %v258, %v228
        %v260 = vadd.f32 %v259, %v229
        %v261 = vadd.f32 %v260, %v230
        %v262 = vadd.f32 %v261, %v231
        %v263 = vadd.f32 %v262, %v232
        %v264 = vadd.f32 %v263, %v233
        %v265 = vadd.f32 %v264, %v234
        %v266 = vadd.f32 %v265, %v235
        %v267 = vadd.f32 %v266, %v236
        %v268 = vadd.f32 %v267, %v237
        %v269 = vadd.f32 %v268, %v238
        %v270 = vadd.f32 %v269, %v239
        %v271 = vrot.slane %v270, 4
        %v272 = vadd.f32 %v270, %v271
        %v273 = vrot.slane %v272, 2
        %v274 = vadd.f32 %v272, %v273
        %v275 = vrot.slane %v274, 1
        %v276 = vadd.f32 %v274, %v275
        %v277 = vmul.f32 %v276, 0.00390625
        %v278 = vld [vmem:[%s2] sm:$0x1]
        %v279 = vadd.f32 %v277, %v278
        %v280 = vld [vmem:[#allocation5] sm:$0xff]
        %v281 = vld [vmem:[#allocation5 + $0x8] sm:$0xff]
        %v282 = vld [vmem:[#allocation5 + $0x10] sm:$0xff]
        %v283 = vld [vmem:[#allocation5 + $0x18] sm:$0xff]
        %v284 = vld [vmem:[#allocation5 + $0x20] sm:$0xff]
        %v285 = vld [vmem:[#allocation5 + $0x28] sm:$0xff]
        %v286 = vld [vmem:[#allocation5 + $0x30] sm:$0xff]
        %v287 = vld [vmem:[#allocation5 + $0x38] sm:$0xff]
        %v288 = vld [vmem:[#allocation5 + $0x40] sm:$0xff]
        %v289 = vld [vmem:[#allocation5 + $0x48] sm:$0xff]
        %v290 = vld [vmem:[#allocation5 + $0x50] sm:$0xff]
        %v291 = vld [vmem:[#allocation5 + $0x58] sm:$0xff]
        %v292 = vld [vmem:[#allocation5 + $0x60] sm:$0xff]
        %v293 = vld [vmem:[#allocation5 + $0x68] sm:$0xff]
        %v294 = vld [vmem:[#allocation5 + $0x70] sm:$0xff]
        %v295 = vld [vmem:[#allocation5 + $0x78] sm:$0xff]
        %v296 = vperm.slane %v279, 0
        %297 = vmatpush.msra.mxu0 %v295
        %298 = vmatpush.msra.mxu0 %v294
        %299 = vmatpush.msra.mxu0 %v293
        %300 = vmatpush.msra.mxu0 %v292
        %301 = vmatpush.msra.mxu0 %v291
        %302 = vmatpush.msra.mxu0 %v290
        %303 = vmatpush.msra.mxu0 %v289
        %304 = vmatpush.msra.mxu0 %v288
        %305 = vmatpush.msra.mxu0 %v287
        %306 = vmatpush.msra.mxu0 %v286
        %307 = vmatpush.msra.mxu0 %v285
        %308 = vmatpush.msra.mxu0 %v284
        %309 = vmatpush.msra.mxu0 %v283
        %310 = vmatpush.msra.mxu0 %v282
        %311 = vmatpush.msra.mxu0 %v281
        %312 = vmatpush.msra.mxu0 %v280
        %313 = vmatmul.f32.gmra.mxu0 %v208
        %v314 = vpop.f32.mrf.mxu0
        %v315 = vadd.f32 %v296, %v314
        %316 = vmatmul.f32.gmra.mxu0 %v209
        %v317 = vpop.f32.mrf.mxu0
        %v318 = vadd.f32 %v296, %v317
        %319 = vmatmul.f32.gmra.mxu0 %v210
        %v320 = vpop.f32.mrf.mxu0
        %v321 = vadd.f32 %v296, %v320
        %322 = vmatmul.f32.gmra.mxu0 %v211
        %v323 = vpop.f32.mrf.mxu0
        %v324 = vadd.f32 %v296, %v323
        %325 = vmatmul.f32.gmra.mxu0 %v212
        %v326 = vpop.f32.mrf.mxu0
        %v327 = vadd.f32 %v296, %v326
        %328 = vmatmul.f32.gmra.mxu0 %v213
        %v329 = vpop.f32.mrf.mxu0
        %v330 = vadd.f32 %v296, %v329
        %331 = vmatmul.f32.gmra.mxu0 %v214
        %v332 = vpop.f32.mrf.mxu0
        %v333 = vadd.f32 %v296, %v332
        %334 = vmatmul.f32.gmra.mxu0 %v215
        %v335 = vpop.f32.mrf.mxu0
        %v336 = vadd.f32 %v296, %v335
        %337 = vmatmul.f32.gmra.mxu0 %v216
        %v338 = vpop.f32.mrf.mxu0
        %v339 = vadd.f32 %v296, %v338
        %340 = vmatmul.f32.gmra.mxu0 %v217
        %v341 = vpop.f32.mrf.mxu0
        %v342 = vadd.f32 %v296, %v341
        %343 = vmatmul.f32.gmra.mxu0 %v218
        %v344 = vpop.f32.mrf.mxu0
        %v345 = vadd.f32 %v296, %v344
        %346 = vmatmul.f32.gmra.mxu0 %v219
        %v347 = vpop.f32.mrf.mxu0
        %v348 = vadd.f32 %v296, %v347
        %349 = vmatmul.f32.gmra.mxu0 %v220
        %v350 = vpop.f32.mrf.mxu0
        %v351 = vadd.f32 %v296, %v350
        %352 = vmatmul.f32.gmra.mxu0 %v221
        %v353 = vpop.f32.mrf.mxu0
        %v354 = vadd.f32 %v296, %v353
        %355 = vmatmul.f32.gmra.mxu0 %v222
        %v356 = vpop.f32.mrf.mxu0
        %v357 = vadd.f32 %v296, %v356
        %358 = vmatmul.f32.gmra.mxu0 %v223
        %v359 = vpop.f32.mrf.mxu0
        %v360 = vadd.f32 %v296, %v359
        %361 = vmatmul.f32.gmra.mxu0 %v224
        %v362 = vpop.f32.mrf.mxu0
        %v363 = vadd.f32 %v296, %v362
        %364 = vmatmul.f32.gmra.mxu0 %v225
        %v365 = vpop.f32.mrf.mxu0
        %v366 = vadd.f32 %v296, %v365
        %367 = vmatmul.f32.gmra.mxu0 %v226
        %v368 = vpop.f32.mrf.mxu0
        %v369 = vadd.f32 %v296, %v368
        %370 = vmatmul.f32.gmra.mxu0 %v227
        %v371 = vpop.f32.mrf.mxu0
        %v372 = vadd.f32 %v296, %v371
        %373 = vmatmul.f32.gmra.mxu0 %v228
        %v374 = vpop.f32.mrf.mxu0
        %v375 = vadd.f32 %v296, %v374
        %376 = vmatmul.f32.gmra.mxu0 %v229
        %v377 = vpop.f32.mrf.mxu0
        %v378 = vadd.f32 %v296, %v377
        %379 = vmatmul.f32.gmra.mxu0 %v230
        %v380 = vpop.f32.mrf.mxu0
        %v381 = vadd.f32 %v296, %v380
        %382 = vmatmul.f32.gmra.mxu0 %v231
        %v383 = vpop.f32.mrf.mxu0
        %v384 = vadd.f32 %v296, %v383
        %385 = vmatmul.f32.gmra.mxu0 %v232
        %v386 = vpop.f32.mrf.mxu0
        %v387 = vadd.f32 %v296, %v386
        %388 = vmatmul.f32.gmra.mxu0 %v233
        %v389 = vpop.f32.mrf.mxu0
        %v390 = vadd.f32 %v296, %v389
        %391 = vmatmul.f32.gmra.mxu0 %v234
        %v392 = vpop.f32.mrf.mxu0
        %v393 = vadd.f32 %v296, %v392
        %394 = vmatmul.f32.gmra.mxu0 %v235
        %v395 = vpop.f32.mrf.mxu0
        %v396 = vadd.f32 %v296, %v395
        %397 = vmatmul.f32.gmra.mxu0 %v236
        %v398 = vpop.f32.mrf.mxu0
        %v399 = vadd.f32 %v296, %v398
        %400 = vmatmul.f32.gmra.mxu0 %v237
        %v401 = vpop.f32.mrf.mxu0
        %v402 = vadd.f32 %v296, %v401
        %403 = vmatmul.f32.gmra.mxu0 %v238
        %v404 = vpop.f32.mrf.mxu0
        %v405 = vadd.f32 %v296, %v404
        %406 = vmatmul.f32.gmra.mxu0 %v239
        %v407 = vpop.f32.mrf.mxu0
        %v408 = vadd.f32 %v296, %v407
        %409 = vdwg.mxu0
        %v410 = vmul.f32 %v315, 0.5
        %v411 = vmul.f32 %v318, 0.5
        %v412 = vmul.f32 %v321, 0.5
        %v413 = vmul.f32 %v324, 0.5
        %v414 = vmul.f32 %v327, 0.5
        %v415 = vmul.f32 %v330, 0.5
        %v416 = vmul.f32 %v333, 0.5
        %v417 = vmul.f32 %v336, 0.5
        %v418 = vmul.f32 %v339, 0.5
        %v419 = vmul.f32 %v342, 0.5
        %v420 = vmul.f32 %v345, 0.5
        %v421 = vmul.f32 %v348, 0.5
        %v422 = vmul.f32 %v351, 0.5
        %v423 = vmul.f32 %v354, 0.5
        %v424 = vmul.f32 %v357, 0.5
        %v425 = vmul.f32 %v360, 0.5
        %v426 = vmul.f32 %v363, 0.5
        %v427 = vmul.f32 %v366, 0.5
        %v428 = vmul.f32 %v369, 0.5
        %v429 = vmul.f32 %v372, 0.5
        %v430 = vmul.f32 %v375, 0.5
        %v431 = vmul.f32 %v378, 0.5
        %v432 = vmul.f32 %v381, 0.5
        %v433 = vmul.f32 %v384, 0.5
        %v434 = vmul.f32 %v387, 0.5
        %v435 = vmul.f32 %v390, 0.5
        %v436 = vmul.f32 %v393, 0.5
        %v437 = vmul.f32 %v396, 0.5
        %v438 = vmul.f32 %v399, 0.5
        %v439 = vmul.f32 %v402, 0.5
        %v440 = vmul.f32 %v405, 0.5
        %v441 = vmul.f32 %v408, 0.5
        %v442 = vmul.f32 %v315, 0.70710677
        %v443 = vmul.f32 %v318, 0.70710677
        %v444 = vmul.f32 %v321, 0.70710677
        %v445 = vmul.f32 %v324, 0.70710677
        %v446 = vmul.f32 %v327, 0.70710677
        %v447 = vmul.f32 %v330, 0.70710677
        %v448 = vmul.f32 %v333, 0.70710677
        %v449 = vmul.f32 %v336, 0.70710677
        %v450 = vmul.f32 %v339, 0.70710677
        %v451 = vmul.f32 %v342, 0.70710677
        %v452 = vmul.f32 %v345, 0.70710677
        %v453 = vmul.f32 %v348, 0.70710677
        %v454 = vmul.f32 %v351, 0.70710677
        %v455 = vmul.f32 %v354, 0.70710677
        %v456 = vmul.f32 %v357, 0.70710677
        %v457 = vmul.f32 %v360, 0.70710677
        %v458 = vmul.f32 %v363, 0.70710677
        %v459 = vmul.f32 %v366, 0.70710677
        %v460 = vmul.f32 %v369, 0.70710677
        %v461 = vmul.f32 %v372, 0.70710677
        %v462 = vmul.f32 %v375, 0.70710677
        %v463 = vmul.f32 %v378, 0.70710677
        %v464 = vmul.f32 %v381, 0.70710677
        %v465 = vmul.f32 %v384, 0.70710677
        %v466 = vmul.f32 %v387, 0.70710677
        %v467 = vmul.f32 %v390, 0.70710677
        %v468 = vmul.f32 %v393, 0.70710677
        %v469 = vmul.f32 %v396, 0.70710677
        %v470 = vmul.f32 %v399, 0.70710677
        %v471 = vmul.f32 %v402, 0.70710677
        %v472 = vmul.f32 %v405, 0.70710677
        %v473 = vmul.f32 %v408, 0.70710677
        %v474 = vmul.f32 %v442, %v442
        %v475 = vmin.f32 16.0, %v474
        %v476 = vmul.f32 %v475, 2.1237322e-06
        %v477 = vadd.f32 %v476, 0.00028619796
        %v478 = vmul.f32 %v475, %v477
        %v479 = vadd.f32 %v478, 0.0036580483
        %v480 = vmul.f32 %v475, %v479
        %v481 = vadd.f32 %v480, 0.05243302
        %v482 = vmul.f32 %v475, %v481
        %v483 = vadd.f32 %v482, 0.18741608
        %v484 = vmul.f32 %v475, %v483
        %v485 = vadd.f32 %v484, 1.1283791
        %v486 = vmul.f32 %v442, %v485
        %v487 = vmul.f32 %v475, 3.8918573e-05
        %v488 = vadd.f32 %v487, 0.001143296
        %v489 = vmul.f32 %v475, %v488
        %v490 = vadd.f32 %v489, 0.014752088
        %v491 = vmul.f32 %v475, %v490
        %v492 = vadd.f32 %v491, 0.112945676
        %v493 = vmul.f32 %v475, %v492
        %v494 = vadd.f32 %v493, 0.4994258
        %v495 = vmul.f32 %v475, %v494
        %v496 = vadd.f32 %v495, 1.0
        %v497 = vrcp.pop %v496
        %v498 = vmul.f32 %v496, %v497
        %v499 = vsub.f32 1.0, %v498
        %v500 = vmul.f32 %v497, %v499
        %v501 = vadd.f32 %v497, %v500
        %vm502 = vweird.f32 %v496
        %vm503 = vweird.f32 %v497
        %vm504 = vmor %vm502, %vm503
        %v505 = vsel %vm504, %v497, %v501
        %v506 = vand.u32 2147483647, %v496
        %vm507 = vcmp.eq.f32.partialorder %v506, 8.507059e+37
        %v508 = vand.u32 %v496, 2147483648
        %v509 = vor.u32 1.1754944e-38, %v508
        %v510 = vsel %vm507, %v509, %v505
        %v511 = vmul.f32 %v486, %v510
        %v512 = vmin.f32 %v511, 1.0
        %v513 = vmax.f32 %v512, -1.0
        %v514 = vmul.f32 %v443, %v443
        %v515 = vmin.f32 16.0, %v514
        %v516 = vmul.f32 %v515, 2.1237322e-06
        %v517 = vadd.f32 %v516, 0.00028619796
        %v518 = vmul.f32 %v515, %v517
        %v519 = vadd.f32 %v518, 0.0036580483
        %v520 = vmul.f32 %v515, %v519
        %v521 = vadd.f32 %v520, 0.05243302
        %v522 = vmul.f32 %v515, %v521
        %v523 = vadd.f32 %v522, 0.18741608
        %v524 = vmul.f32 %v515, %v523
        %v525 = vadd.f32 %v524, 1.1283791
        %v526 = vmul.f32 %v443, %v525
        %v527 = vmul.f32 %v515, 3.8918573e-05
        %v528 = vadd.f32 %v527, 0.001143296
        %v529 = vmul.f32 %v515, %v528
        %v530 = vadd.f32 %v529, 0.014752088
        %v531 = vmul.f32 %v515, %v530
        %v532 = vadd.f32 %v531, 0.112945676
        %v533 = vmul.f32 %v515, %v532
        %v534 = vadd.f32 %v533, 0.4994258
        %v535 = vmul.f32 %v515, %v534
        %v536 = vadd.f32 %v535, 1.0
        %v537 = vrcp.pop %v536
        %v538 = vmul.f32 %v536, %v537
        %v539 = vsub.f32 1.0, %v538
        %v540 = vmul.f32 %v537, %v539
        %v541 = vadd.f32 %v537, %v540
        %vm542 = vweird.f32 %v536
        %vm543 = vweird.f32 %v537
        %vm544 = vmor %vm542, %vm543
        %v545 = vsel %vm544, %v537, %v541
        %v546 = vand.u32 2147483647, %v536
        %vm547 = vcmp.eq.f32.partialorder %v546, 8.507059e+37
        %v548 = vand.u32 %v536, 2147483648
        %v549 = vor.u32 1.1754944e-38, %v548
        %v550 = vsel %vm547, %v549, %v545
        %v551 = vmul.f32 %v526, %v550
        %v552 = vmin.f32 %v551, 1.0
        %v553 = vmax.f32 %v552, -1.0
        %v554 = vmul.f32 %v444, %v444
        %v555 = vmin.f32 16.0, %v554
        %v556 = vmul.f32 %v555, 2.1237322e-06
        %v557 = vadd.f32 %v556, 0.00028619796
        %v558 = vmul.f32 %v555, %v557
        %v559 = vadd.f32 %v558, 0.0036580483
        %v560 = vmul.f32 %v555, %v559
        %v561 = vadd.f32 %v560, 0.05243302
        %v562 = vmul.f32 %v555, %v561
        %v563 = vadd.f32 %v562, 0.18741608
        %v564 = vmul.f32 %v555, %v563
        %v565 = vadd.f32 %v564, 1.1283791
        %v566 = vmul.f32 %v444, %v565
        %v567 = vmul.f32 %v555, 3.8918573e-05
        %v568 = vadd.f32 %v567, 0.001143296
        %v569 = vmul.f32 %v555, %v568
        %v570 = vadd.f32 %v569, 0.014752088
        %v571 = vmul.f32 %v555, %v570
        %v572 = vadd.f32 %v571, 0.112945676
        %v573 = vmul.f32 %v555, %v572
        %v574 = vadd.f32 %v573, 0.4994258
        %v575 = vmul.f32 %v555, %v574
        %v576 = vadd.f32 %v575, 1.0
        %v577 = vrcp.pop %v576
        %v578 = vmul.f32 %v576, %v577
        %v579 = vsub.f32 1.0, %v578
        %v580 = vmul.f32 %v577, %v579
        %v581 = vadd.f32 %v577, %v580
        %vm582 = vweird.f32 %v576
        %vm583 = vweird.f32 %v577
        %vm584 = vmor %vm582, %vm583
        %v585 = vsel %vm584, %v577, %v581
        %v586 = vand.u32 2147483647, %v576
        %vm587 = vcmp.eq.f32.partialorder %v586, 8.507059e+37
        %v588 = vand.u32 %v576, 2147483648
        %v589 = vor.u32 1.1754944e-38, %v588
        %v590 = vsel %vm587, %v589, %v585
        %v591 = vmul.f32 %v566, %v590
        %v592 = vmin.f32 %v591, 1.0
        %v593 = vmax.f32 %v592, -1.0
        %v594 = vmul.f32 %v445, %v445
        %v595 = vmin.f32 16.0, %v594
        %v596 = vmul.f32 %v595, 2.1237322e-06
        %v597 = vadd.f32 %v596, 0.00028619796
        %v598 = vmul.f32 %v595, %v597
        %v599 = vadd.f32 %v598, 0.0036580483
        %v600 = vmul.f32 %v595, %v599
        %v601 = vadd.f32 %v600, 0.05243302
        %v602 = vmul.f32 %v595, %v601
        %v603 = vadd.f32 %v602, 0.18741608
        %v604 = vmul.f32 %v595, %v603
        %v605 = vadd.f32 %v604, 1.1283791
        %v606 = vmul.f32 %v445, %v605
        %v607 = vmul.f32 %v595, 3.8918573e-05
        %v608 = vadd.f32 %v607, 0.001143296
        %v609 = vmul.f32 %v595, %v608
        %v610 = vadd.f32 %v609, 0.014752088
        %v611 = vmul.f32 %v595, %v610
        %v612 = vadd.f32 %v611, 0.112945676
        %v613 = vmul.f32 %v595, %v612
        %v614 = vadd.f32 %v613, 0.4994258
        %v615 = vmul.f32 %v595, %v614
        %v616 = vadd.f32 %v615, 1.0
        %v617 = vrcp.pop %v616
        %v618 = vmul.f32 %v616, %v617
        %v619 = vsub.f32 1.0, %v618
        %v620 = vmul.f32 %v617, %v619
        %v621 = vadd.f32 %v617, %v620
        %vm622 = vweird.f32 %v616
        %vm623 = vweird.f32 %v617
        %vm624 = vmor %vm622, %vm623
        %v625 = vsel %vm624, %v617, %v621
        %v626 = vand.u32 2147483647, %v616
        %vm627 = vcmp.eq.f32.partialorder %v626, 8.507059e+37
        %v628 = vand.u32 %v616, 2147483648
        %v629 = vor.u32 1.1754944e-38, %v628
        %v630 = vsel %vm627, %v629, %v625
        %v631 = vmul.f32 %v606, %v630
        %v632 = vmin.f32 %v631, 1.0
        %v633 = vmax.f32 %v632, -1.0
        %v634 = vmul.f32 %v446, %v446
        %v635 = vmin.f32 16.0, %v634
        %v636 = vmul.f32 %v635, 2.1237322e-06
        %v637 = vadd.f32 %v636, 0.00028619796
        %v638 = vmul.f32 %v635, %v637
        %v639 = vadd.f32 %v638, 0.0036580483
        %v640 = vmul.f32 %v635, %v639
        %v641 = vadd.f32 %v640, 0.05243302
        %v642 = vmul.f32 %v635, %v641
        %v643 = vadd.f32 %v642, 0.18741608
        %v644 = vmul.f32 %v635, %v643
        %v645 = vadd.f32 %v644, 1.1283791
        %v646 = vmul.f32 %v446, %v645
        %v647 = vmul.f32 %v635, 3.8918573e-05
        %v648 = vadd.f32 %v647, 0.001143296
        %v649 = vmul.f32 %v635, %v648
        %v650 = vadd.f32 %v649, 0.014752088
        %v651 = vmul.f32 %v635, %v650
        %v652 = vadd.f32 %v651, 0.112945676
        %v653 = vmul.f32 %v635, %v652
        %v654 = vadd.f32 %v653, 0.4994258
        %v655 = vmul.f32 %v635, %v654
        %v656 = vadd.f32 %v655, 1.0
        %v657 = vrcp.pop %v656
        %v658 = vmul.f32 %v656, %v657
        %v659 = vsub.f32 1.0, %v658
        %v660 = vmul.f32 %v657, %v659
        %v661 = vadd.f32 %v657, %v660
        %vm662 = vweird.f32 %v656
        %vm663 = vweird.f32 %v657
        %vm664 = vmor %vm662, %vm663
        %v665 = vsel %vm664, %v657, %v661
        %v666 = vand.u32 2147483647, %v656
        %vm667 = vcmp.eq.f32.partialorder %v666, 8.507059e+37
        %v668 = vand.u32 %v656, 2147483648
        %v669 = vor.u32 1.1754944e-38, %v668
        %v670 = vsel %vm667, %v669, %v665
        %v671 = vmul.f32 %v646, %v670
        %v672 = vmin.f32 %v671, 1.0
        %v673 = vmax.f32 %v672, -1.0
        %v674 = vmul.f32 %v447, %v447
        %v675 = vmin.f32 16.0, %v674
        %v676 = vmul.f32 %v675, 2.1237322e-06
        %v677 = vadd.f32 %v676, 0.00028619796
        %v678 = vmul.f32 %v675, %v677
        %v679 = vadd.f32 %v678, 0.0036580483
        %v680 = vmul.f32 %v675, %v679
        %v681 = vadd.f32 %v680, 0.05243302
        %v682 = vmul.f32 %v675, %v681
        %v683 = vadd.f32 %v682, 0.18741608
        %v684 = vmul.f32 %v675, %v683
        %v685 = vadd.f32 %v684, 1.1283791
        %v686 = vmul.f32 %v447, %v685
        %v687 = vmul.f32 %v675, 3.8918573e-05
        %v688 = vadd.f32 %v687, 0.001143296
        %v689 = vmul.f32 %v675, %v688
        %v690 = vadd.f32 %v689, 0.014752088
        %v691 = vmul.f32 %v675, %v690
        %v692 = vadd.f32 %v691, 0.112945676
        %v693 = vmul.f32 %v675, %v692
        %v694 = vadd.f32 %v693, 0.4994258
        %v695 = vmul.f32 %v675, %v694
        %v696 = vadd.f32 %v695, 1.0
        %v697 = vrcp.pop %v696
        %v698 = vmul.f32 %v696, %v697
        %v699 = vsub.f32 1.0, %v698
        %v700 = vmul.f32 %v697, %v699
        %v701 = vadd.f32 %v697, %v700
        %vm702 = vweird.f32 %v696
        %vm703 = vweird.f32 %v697
        %vm704 = vmor %vm702, %vm703
        %v705 = vsel %vm704, %v697, %v701
        %v706 = vand.u32 2147483647, %v696
        %vm707 = vcmp.eq.f32.partialorder %v706, 8.507059e+37
        %v708 = vand.u32 %v696, 2147483648
        %v709 = vor.u32 1.1754944e-38, %v708
        %v710 = vsel %vm707, %v709, %v705
        %v711 = vmul.f32 %v686, %v710
        %v712 = vmin.f32 %v711, 1.0
        %v713 = vmax.f32 %v712, -1.0
        %v714 = vmul.f32 %v448, %v448
        %v715 = vmin.f32 16.0, %v714
        %v716 = vmul.f32 %v715, 2.1237322e-06
        %v717 = vadd.f32 %v716, 0.00028619796
        %v718 = vmul.f32 %v715, %v717
        %v719 = vadd.f32 %v718, 0.0036580483
        %v720 = vmul.f32 %v715, %v719
        %v721 = vadd.f32 %v720, 0.05243302
        %v722 = vmul.f32 %v715, %v721
        %v723 = vadd.f32 %v722, 0.18741608
        %v724 = vmul.f32 %v715, %v723
        %v725 = vadd.f32 %v724, 1.1283791
        %v726 = vmul.f32 %v448, %v725
        %v727 = vmul.f32 %v715, 3.8918573e-05
        %v728 = vadd.f32 %v727, 0.001143296
        %v729 = vmul.f32 %v715, %v728
        %v730 = vadd.f32 %v729, 0.014752088
        %v731 = vmul.f32 %v715, %v730
        %v732 = vadd.f32 %v731, 0.112945676
        %v733 = vmul.f32 %v715, %v732
        %v734 = vadd.f32 %v733, 0.4994258
        %v735 = vmul.f32 %v715, %v734
        %v736 = vadd.f32 %v735, 1.0
        %v737 = vrcp.pop %v736
        %v738 = vmul.f32 %v736, %v737
        %v739 = vsub.f32 1.0, %v738
        %v740 = vmul.f32 %v737, %v739
        %v741 = vadd.f32 %v737, %v740
        %vm742 = vweird.f32 %v736
        %vm743 = vweird.f32 %v737
        %vm744 = vmor %vm742, %vm743
        %v745 = vsel %vm744, %v737, %v741
        %v746 = vand.u32 2147483647, %v736
        %vm747 = vcmp.eq.f32.partialorder %v746, 8.507059e+37
        %v748 = vand.u32 %v736, 2147483648
        %v749 = vor.u32 1.1754944e-38, %v748
        %v750 = vsel %vm747, %v749, %v745
        %v751 = vmul.f32 %v726, %v750
        %v752 = vmin.f32 %v751, 1.0
        %v753 = vmax.f32 %v752, -1.0
        %v754 = vmul.f32 %v449, %v449
        %v755 = vmin.f32 16.0, %v754
        %v756 = vmul.f32 %v755, 2.1237322e-06
        %v757 = vadd.f32 %v756, 0.00028619796
        %v758 = vmul.f32 %v755, %v757
        %v759 = vadd.f32 %v758, 0.0036580483
        %v760 = vmul.f32 %v755, %v759
        %v761 = vadd.f32 %v760, 0.05243302
        %v762 = vmul.f32 %v755, %v761
        %v763 = vadd.f32 %v762, 0.18741608
        %v764 = vmul.f32 %v755, %v763
        %v765 = vadd.f32 %v764, 1.1283791
        %v766 = vmul.f32 %v449, %v765
        %v767 = vmul.f32 %v755, 3.8918573e-05
        %v768 = vadd.f32 %v767, 0.001143296
        %v769 = vmul.f32 %v755, %v768
        %v770 = vadd.f32 %v769, 0.014752088
        %v771 = vmul.f32 %v755, %v770
        %v772 = vadd.f32 %v771, 0.112945676
        %v773 = vmul.f32 %v755, %v772
        %v774 = vadd.f32 %v773, 0.4994258
        %v775 = vmul.f32 %v755, %v774
        %v776 = vadd.f32 %v775, 1.0
        %v777 = vrcp.pop %v776
        %v778 = vmul.f32 %v776, %v777
        %v779 = vsub.f32 1.0, %v778
        %v780 = vmul.f32 %v777, %v779
        %v781 = vadd.f32 %v777, %v780
        %vm782 = vweird.f32 %v776
        %vm783 = vweird.f32 %v777
        %vm784 = vmor %vm782, %vm783
        %v785 = vsel %vm784, %v777, %v781
        %v786 = vand.u32 2147483647, %v776
        %vm787 = vcmp.eq.f32.partialorder %v786, 8.507059e+37
        %v788 = vand.u32 %v776, 2147483648
        %v789 = vor.u32 1.1754944e-38, %v788
        %v790 = vsel %vm787, %v789, %v785
        %v791 = vmul.f32 %v766, %v790
        %v792 = vmin.f32 %v791, 1.0
        %v793 = vmax.f32 %v792, -1.0
        %v794 = vmul.f32 %v450, %v450
        %v795 = vmin.f32 16.0, %v794
        %v796 = vmul.f32 %v795, 2.1237322e-06
        %v797 = vadd.f32 %v796, 0.00028619796
        %v798 = vmul.f32 %v795, %v797
        %v799 = vadd.f32 %v798, 0.0036580483
        %v800 = vmul.f32 %v795, %v799
        %v801 = vadd.f32 %v800, 0.05243302
        %v802 = vmul.f32 %v795, %v801
        %v803 = vadd.f32 %v802, 0.18741608
        %v804 = vmul.f32 %v795, %v803
        %v805 = vadd.f32 %v804, 1.1283791
        %v806 = vmul.f32 %v450, %v805
        %v807 = vmul.f32 %v795, 3.8918573e-05
        %v808 = vadd.f32 %v807, 0.001143296
        %v809 = vmul.f32 %v795, %v808
        %v810 = vadd.f32 %v809, 0.014752088
        %v811 = vmul.f32 %v795, %v810
        %v812 = vadd.f32 %v811, 0.112945676
        %v813 = vmul.f32 %v795, %v812
        %v814 = vadd.f32 %v813, 0.4994258
        %v815 = vmul.f32 %v795, %v814
        %v816 = vadd.f32 %v815, 1.0
        %v817 = vrcp.pop %v816
        %v818 = vmul.f32 %v816, %v817
        %v819 = vsub.f32 1.0, %v818
        %v820 = vmul.f32 %v817, %v819
        %v821 = vadd.f32 %v817, %v820
        %vm822 = vweird.f32 %v816
        %vm823 = vweird.f32 %v817
        %vm824 = vmor %vm822, %vm823
        %v825 = vsel %vm824, %v817, %v821
        %v826 = vand.u32 2147483647, %v816
        %vm827 = vcmp.eq.f32.partialorder %v826, 8.507059e+37
        %v828 = vand.u32 %v816, 2147483648
        %v829 = vor.u32 1.1754944e-38, %v828
        %v830 = vsel %vm827, %v829, %v825
        %v831 = vmul.f32 %v806, %v830
        %v832 = vmin.f32 %v831, 1.0
        %v833 = vmax.f32 %v832, -1.0
        %v834 = vmul.f32 %v451, %v451
        %v835 = vmin.f32 16.0, %v834
        %v836 = vmul.f32 %v835, 2.1237322e-06
        %v837 = vadd.f32 %v836, 0.00028619796
        %v838 = vmul.f32 %v835, %v837
        %v839 = vadd.f32 %v838, 0.0036580483
        %v840 = vmul.f32 %v835, %v839
        %v841 = vadd.f32 %v840, 0.05243302
        %v842 = vmul.f32 %v835, %v841
        %v843 = vadd.f32 %v842, 0.18741608
        %v844 = vmul.f32 %v835, %v843
        %v845 = vadd.f32 %v844, 1.1283791
        %v846 = vmul.f32 %v451, %v845
        %v847 = vmul.f32 %v835, 3.8918573e-05
        %v848 = vadd.f32 %v847, 0.001143296
        %v849 = vmul.f32 %v835, %v848
        %v850 = vadd.f32 %v849, 0.014752088
        %v851 = vmul.f32 %v835, %v850
        %v852 = vadd.f32 %v851, 0.112945676
        %v853 = vmul.f32 %v835, %v852
        %v854 = vadd.f32 %v853, 0.4994258
        %v855 = vmul.f32 %v835, %v854
        %v856 = vadd.f32 %v855, 1.0
        %v857 = vrcp.pop %v856
        %v858 = vmul.f32 %v856, %v857
        %v859 = vsub.f32 1.0, %v858
        %v860 = vmul.f32 %v857, %v859
        %v861 = vadd.f32 %v857, %v860
        %vm862 = vweird.f32 %v856
        %vm863 = vweird.f32 %v857
        %vm864 = vmor %vm862, %vm863
        %v865 = vsel %vm864, %v857, %v861
        %v866 = vand.u32 2147483647, %v856
        %vm867 = vcmp.eq.f32.partialorder %v866, 8.507059e+37
        %v868 = vand.u32 %v856, 2147483648
        %v869 = vor.u32 1.1754944e-38, %v868
        %v870 = vsel %vm867, %v869, %v865
        %v871 = vmul.f32 %v846, %v870
        %v872 = vmin.f32 %v871, 1.0
        %v873 = vmax.f32 %v872, -1.0
        %v874 = vmul.f32 %v452, %v452
        %v875 = vmin.f32 16.0, %v874
        %v876 = vmul.f32 %v875, 2.1237322e-06
        %v877 = vadd.f32 %v876, 0.00028619796
        %v878 = vmul.f32 %v875, %v877
        %v879 = vadd.f32 %v878, 0.0036580483
        %v880 = vmul.f32 %v875, %v879
        %v881 = vadd.f32 %v880, 0.05243302
        %v882 = vmul.f32 %v875, %v881
        %v883 = vadd.f32 %v882, 0.18741608
        %v884 = vmul.f32 %v875, %v883
        %v885 = vadd.f32 %v884, 1.1283791
        %v886 = vmul.f32 %v452, %v885
        %v887 = vmul.f32 %v875, 3.8918573e-05
        %v888 = vadd.f32 %v887, 0.001143296
        %v889 = vmul.f32 %v875, %v888
        %v890 = vadd.f32 %v889, 0.014752088
        %v891 = vmul.f32 %v875, %v890
        %v892 = vadd.f32 %v891, 0.112945676
        %v893 = vmul.f32 %v875, %v892
        %v894 = vadd.f32 %v893, 0.4994258
        %v895 = vmul.f32 %v875, %v894
        %v896 = vadd.f32 %v895, 1.0
        %v897 = vrcp.pop %v896
        %v898 = vmul.f32 %v896, %v897
        %v899 = vsub.f32 1.0, %v898
        %v900 = vmul.f32 %v897, %v899
        %v901 = vadd.f32 %v897, %v900
        %vm902 = vweird.f32 %v896
        %vm903 = vweird.f32 %v897
        %vm904 = vmor %vm902, %vm903
        %v905 = vsel %vm904, %v897, %v901
        %v906 = vand.u32 2147483647, %v896
        %vm907 = vcmp.eq.f32.partialorder %v906, 8.507059e+37
        %v908 = vand.u32 %v896, 2147483648
        %v909 = vor.u32 1.1754944e-38, %v908
        %v910 = vsel %vm907, %v909, %v905
        %v911 = vmul.f32 %v886, %v910
        %v912 = vmin.f32 %v911, 1.0
        %v913 = vmax.f32 %v912, -1.0
        %v914 = vmul.f32 %v453, %v453
        %v915 = vmin.f32 16.0, %v914
        %v916 = vmul.f32 %v915, 2.1237322e-06
        %v917 = vadd.f32 %v916, 0.00028619796
        %v918 = vmul.f32 %v915, %v917
        %v919 = vadd.f32 %v918, 0.0036580483
        %v920 = vmul.f32 %v915, %v919
        %v921 = vadd.f32 %v920, 0.05243302
        %v922 = vmul.f32 %v915, %v921
        %v923 = vadd.f32 %v922, 0.18741608
        %v924 = vmul.f32 %v915, %v923
        %v925 = vadd.f32 %v924, 1.1283791
        %v926 = vmul.f32 %v453, %v925
        %v927 = vmul.f32 %v915, 3.8918573e-05
        %v928 = vadd.f32 %v927, 0.001143296
        %v929 = vmul.f32 %v915, %v928
        %v930 = vadd.f32 %v929, 0.014752088
        %v931 = vmul.f32 %v915, %v930
        %v932 = vadd.f32 %v931, 0.112945676
        %v933 = vmul.f32 %v915, %v932
        %v934 = vadd.f32 %v933, 0.4994258
        %v935 = vmul.f32 %v915, %v934
        %v936 = vadd.f32 %v935, 1.0
        %v937 = vrcp.pop %v936
        %v938 = vmul.f32 %v936, %v937
        %v939 = vsub.f32 1.0, %v938
        %v940 = vmul.f32 %v937, %v939
        %v941 = vadd.f32 %v937, %v940
        %vm942 = vweird.f32 %v936
        %vm943 = vweird.f32 %v937
        %vm944 = vmor %vm942, %vm943
        %v945 = vsel %vm944, %v937, %v941
        %v946 = vand.u32 2147483647, %v936
        %vm947 = vcmp.eq.f32.partialorder %v946, 8.507059e+37
        %v948 = vand.u32 %v936, 2147483648
        %v949 = vor.u32 1.1754944e-38, %v948
        %v950 = vsel %vm947, %v949, %v945
        %v951 = vmul.f32 %v926, %v950
        %v952 = vmin.f32 %v951, 1.0
        %v953 = vmax.f32 %v952, -1.0
        %v954 = vmul.f32 %v454, %v454
        %v955 = vmin.f32 16.0, %v954
        %v956 = vmul.f32 %v955, 2.1237322e-06
        %v957 = vadd.f32 %v956, 0.00028619796
        %v958 = vmul.f32 %v955, %v957
        %v959 = vadd.f32 %v958, 0.0036580483
        %v960 = vmul.f32 %v955, %v959
        %v961 = vadd.f32 %v960, 0.05243302
        %v962 = vmul.f32 %v955, %v961
        %v963 = vadd.f32 %v962, 0.18741608
        %v964 = vmul.f32 %v955, %v963
        %v965 = vadd.f32 %v964, 1.1283791
        %v966 = vmul.f32 %v454, %v965
        %v967 = vmul.f32 %v955, 3.8918573e-05
        %v968 = vadd.f32 %v967, 0.001143296
        %v969 = vmul.f32 %v955, %v968
        %v970 = vadd.f32 %v969, 0.014752088
        %v971 = vmul.f32 %v955, %v970
        %v972 = vadd.f32 %v971, 0.112945676
        %v973 = vmul.f32 %v955, %v972
        %v974 = vadd.f32 %v973, 0.4994258
        %v975 = vmul.f32 %v955, %v974
        %v976 = vadd.f32 %v975, 1.0
        %v977 = vrcp.pop %v976
        %v978 = vmul.f32 %v976, %v977
        %v979 = vsub.f32 1.0, %v978
        %v980 = vmul.f32 %v977, %v979
        %v981 = vadd.f32 %v977, %v980
        %vm982 = vweird.f32 %v976
        %vm983 = vweird.f32 %v977
        %vm984 = vmor %vm982, %vm983
        %v985 = vsel %vm984, %v977, %v981
        %v986 = vand.u32 2147483647, %v976
        %vm987 = vcmp.eq.f32.partialorder %v986, 8.507059e+37
        %v988 = vand.u32 %v976, 2147483648
        %v989 = vor.u32 1.1754944e-38, %v988
        %v990 = vsel %vm987, %v989, %v985
        %v991 = vmul.f32 %v966, %v990
        %v992 = vmin.f32 %v991, 1.0
        %v993 = vmax.f32 %v992, -1.0
        %v994 = vmul.f32 %v455, %v455
        %v995 = vmin.f32 16.0, %v994
        %v996 = vmul.f32 %v995, 2.1237322e-06
        %v997 = vadd.f32 %v996, 0.00028619796
        %v998 = vmul.f32 %v995, %v997
        %v999 = vadd.f32 %v998, 0.0036580483
        %v1000 = vmul.f32 %v995, %v999
        %v1001 = vadd.f32 %v1000, 0.05243302
        %v1002 = vmul.f32 %v995, %v1001
        %v1003 = vadd.f32 %v1002, 0.18741608
        %v1004 = vmul.f32 %v995, %v1003
        %v1005 = vadd.f32 %v1004, 1.1283791
        %v1006 = vmul.f32 %v455, %v1005
        %v1007 = vmul.f32 %v995, 3.8918573e-05
        %v1008 = vadd.f32 %v1007, 0.001143296
        %v1009 = vmul.f32 %v995, %v1008
        %v1010 = vadd.f32 %v1009, 0.014752088
        %v1011 = vmul.f32 %v995, %v1010
        %v1012 = vadd.f32 %v1011, 0.112945676
        %v1013 = vmul.f32 %v995, %v1012
        %v1014 = vadd.f32 %v1013, 0.4994258
        %v1015 = vmul.f32 %v995, %v1014
        %v1016 = vadd.f32 %v1015, 1.0
        %v1017 = vrcp.pop %v1016
        %v1018 = vmul.f32 %v1016, %v1017
        %v1019 = vsub.f32 1.0, %v1018
        %v1020 = vmul.f32 %v1017, %v1019
        %v1021 = vadd.f32 %v1017, %v1020
        %vm1022 = vweird.f32 %v1016
        %vm1023 = vweird.f32 %v1017
        %vm1024 = vmor %vm1022, %vm1023
        %v1025 = vsel %vm1024, %v1017, %v1021
        %v1026 = vand.u32 2147483647, %v1016
        %vm1027 = vcmp.eq.f32.partialorder %v1026, 8.507059e+37
        %v1028 = vand.u32 %v1016, 2147483648
        %v1029 = vor.u32 1.1754944e-38, %v1028
        %v1030 = vsel %vm1027, %v1029, %v1025
        %v1031 = vmul.f32 %v1006, %v1030
        %v1032 = vmin.f32 %v1031, 1.0
        %v1033 = vmax.f32 %v1032, -1.0
        %v1034 = vmul.f32 %v456, %v456
        %v1035 = vmin.f32 16.0, %v1034
        %v1036 = vmul.f32 %v1035, 2.1237322e-06
        %v1037 = vadd.f32 %v1036, 0.00028619796
        %v1038 = vmul.f32 %v1035, %v1037
        %v1039 = vadd.f32 %v1038, 0.0036580483
        %v1040 = vmul.f32 %v1035, %v1039
        %v1041 = vadd.f32 %v1040, 0.05243302
        %v1042 = vmul.f32 %v1035, %v1041
        %v1043 = vadd.f32 %v1042, 0.18741608
        %v1044 = vmul.f32 %v1035, %v1043
        %v1045 = vadd.f32 %v1044, 1.1283791
        %v1046 = vmul.f32 %v456, %v1045
        %v1047 = vmul.f32 %v1035, 3.8918573e-05
        %v1048 = vadd.f32 %v1047, 0.001143296
        %v1049 = vmul.f32 %v1035, %v1048
        %v1050 = vadd.f32 %v1049, 0.014752088
        %v1051 = vmul.f32 %v1035, %v1050
        %v1052 = vadd.f32 %v1051, 0.112945676
        %v1053 = vmul.f32 %v1035, %v1052
        %v1054 = vadd.f32 %v1053, 0.4994258
        %v1055 = vmul.f32 %v1035, %v1054
        %v1056 = vadd.f32 %v1055, 1.0
        %v1057 = vrcp.pop %v1056
        %v1058 = vmul.f32 %v1056, %v1057
        %v1059 = vsub.f32 1.0, %v1058
        %v1060 = vmul.f32 %v1057, %v1059
        %v1061 = vadd.f32 %v1057, %v1060
        %vm1062 = vweird.f32 %v1056
        %vm1063 = vweird.f32 %v1057
        %vm1064 = vmor %vm1062, %vm1063
        %v1065 = vsel %vm1064, %v1057, %v1061
        %v1066 = vand.u32 2147483647, %v1056
        %vm1067 = vcmp.eq.f32.partialorder %v1066, 8.507059e+37
        %v1068 = vand.u32 %v1056, 2147483648
        %v1069 = vor.u32 1.1754944e-38, %v1068
        %v1070 = vsel %vm1067, %v1069, %v1065
        %v1071 = vmul.f32 %v1046, %v1070
        %v1072 = vmin.f32 %v1071, 1.0
        %v1073 = vmax.f32 %v1072, -1.0
        %v1074 = vmul.f32 %v457, %v457
        %v1075 = vmin.f32 16.0, %v1074
        %v1076 = vmul.f32 %v1075, 2.1237322e-06
        %v1077 = vadd.f32 %v1076, 0.00028619796
        %v1078 = vmul.f32 %v1075, %v1077
        %v1079 = vadd.f32 %v1078, 0.0036580483
        %v1080 = vmul.f32 %v1075, %v1079
        %v1081 = vadd.f32 %v1080, 0.05243302
        %v1082 = vmul.f32 %v1075, %v1081
        %v1083 = vadd.f32 %v1082, 0.18741608
        %v1084 = vmul.f32 %v1075, %v1083
        %v1085 = vadd.f32 %v1084, 1.1283791
        %v1086 = vmul.f32 %v457, %v1085
        %v1087 = vmul.f32 %v1075, 3.8918573e-05
        %v1088 = vadd.f32 %v1087, 0.001143296
        %v1089 = vmul.f32 %v1075, %v1088
        %v1090 = vadd.f32 %v1089, 0.014752088
        %v1091 = vmul.f32 %v1075, %v1090
        %v1092 = vadd.f32 %v1091, 0.112945676
        %v1093 = vmul.f32 %v1075, %v1092
        %v1094 = vadd.f32 %v1093, 0.4994258
        %v1095 = vmul.f32 %v1075, %v1094
        %v1096 = vadd.f32 %v1095, 1.0
        %v1097 = vrcp.pop %v1096
        %v1098 = vmul.f32 %v1096, %v1097
        %v1099 = vsub.f32 1.0, %v1098
        %v1100 = vmul.f32 %v1097, %v1099
        %v1101 = vadd.f32 %v1097, %v1100
        %vm1102 = vweird.f32 %v1096
        %vm1103 = vweird.f32 %v1097
        %vm1104 = vmor %vm1102, %vm1103
        %v1105 = vsel %vm1104, %v1097, %v1101
        %v1106 = vand.u32 2147483647, %v1096
        %vm1107 = vcmp.eq.f32.partialorder %v1106, 8.507059e+37
        %v1108 = vand.u32 %v1096, 2147483648
        %v1109 = vor.u32 1.1754944e-38, %v1108
        %v1110 = vsel %vm1107, %v1109, %v1105
        %v1111 = vmul.f32 %v1086, %v1110
        %v1112 = vmin.f32 %v1111, 1.0
        %v1113 = vmax.f32 %v1112, -1.0
        %v1114 = vmul.f32 %v458, %v458
        %v1115 = vmin.f32 16.0, %v1114
        %v1116 = vmul.f32 %v1115, 2.1237322e-06
        %v1117 = vadd.f32 %v1116, 0.00028619796
        %v1118 = vmul.f32 %v1115, %v1117
        %v1119 = vadd.f32 %v1118, 0.0036580483
        %v1120 = vmul.f32 %v1115, %v1119
        %v1121 = vadd.f32 %v1120, 0.05243302
        %v1122 = vmul.f32 %v1115, %v1121
        %v1123 = vadd.f32 %v1122, 0.18741608
        %v1124 = vmul.f32 %v1115, %v1123
        %v1125 = vadd.f32 %v1124, 1.1283791
        %v1126 = vmul.f32 %v458, %v1125
        %v1127 = vmul.f32 %v1115, 3.8918573e-05
        %v1128 = vadd.f32 %v1127, 0.001143296
        %v1129 = vmul.f32 %v1115, %v1128
        %v1130 = vadd.f32 %v1129, 0.014752088
        %v1131 = vmul.f32 %v1115, %v1130
        %v1132 = vadd.f32 %v1131, 0.112945676
        %v1133 = vmul.f32 %v1115, %v1132
        %v1134 = vadd.f32 %v1133, 0.4994258
        %v1135 = vmul.f32 %v1115, %v1134
        %v1136 = vadd.f32 %v1135, 1.0
        %v1137 = vrcp.pop %v1136
        %v1138 = vmul.f32 %v1136, %v1137
        %v1139 = vsub.f32 1.0, %v1138
        %v1140 = vmul.f32 %v1137, %v1139
        %v1141 = vadd.f32 %v1137, %v1140
        %vm1142 = vweird.f32 %v1136
        %vm1143 = vweird.f32 %v1137
        %vm1144 = vmor %vm1142, %vm1143
        %v1145 = vsel %vm1144, %v1137, %v1141
        %v1146 = vand.u32 2147483647, %v1136
        %vm1147 = vcmp.eq.f32.partialorder %v1146, 8.507059e+37
        %v1148 = vand.u32 %v1136, 2147483648
        %v1149 = vor.u32 1.1754944e-38, %v1148
        %v1150 = vsel %vm1147, %v1149, %v1145
        %v1151 = vmul.f32 %v1126, %v1150
        %v1152 = vmin.f32 %v1151, 1.0
        %v1153 = vmax.f32 %v1152, -1.0
        %v1154 = vmul.f32 %v459, %v459
        %v1155 = vmin.f32 16.0, %v1154
        %v1156 = vmul.f32 %v1155, 2.1237322e-06
        %v1157 = vadd.f32 %v1156, 0.00028619796
        %v1158 = vmul.f32 %v1155, %v1157
        %v1159 = vadd.f32 %v1158, 0.0036580483
        %v1160 = vmul.f32 %v1155, %v1159
        %v1161 = vadd.f32 %v1160, 0.05243302
        %v1162 = vmul.f32 %v1155, %v1161
        %v1163 = vadd.f32 %v1162, 0.18741608
        %v1164 = vmul.f32 %v1155, %v1163
        %v1165 = vadd.f32 %v1164, 1.1283791
        %v1166 = vmul.f32 %v459, %v1165
        %v1167 = vmul.f32 %v1155, 3.8918573e-05
        %v1168 = vadd.f32 %v1167, 0.001143296
        %v1169 = vmul.f32 %v1155, %v1168
        %v1170 = vadd.f32 %v1169, 0.014752088
        %v1171 = vmul.f32 %v1155, %v1170
        %v1172 = vadd.f32 %v1171, 0.112945676
        %v1173 = vmul.f32 %v1155, %v1172
        %v1174 = vadd.f32 %v1173, 0.4994258
        %v1175 = vmul.f32 %v1155, %v1174
        %v1176 = vadd.f32 %v1175, 1.0
        %v1177 = vrcp.pop %v1176
        %v1178 = vmul.f32 %v1176, %v1177
        %v1179 = vsub.f32 1.0, %v1178
        %v1180 = vmul.f32 %v1177, %v1179
        %v1181 = vadd.f32 %v1177, %v1180
        %vm1182 = vweird.f32 %v1176
        %vm1183 = vweird.f32 %v1177
        %vm1184 = vmor %vm1182, %vm1183
        %v1185 = vsel %vm1184, %v1177, %v1181
        %v1186 = vand.u32 2147483647, %v1176
        %vm1187 = vcmp.eq.f32.partialorder %v1186, 8.507059e+37
        %v1188 = vand.u32 %v1176, 2147483648
        %v1189 = vor.u32 1.1754944e-38, %v1188
        %v1190 = vsel %vm1187, %v1189, %v1185
        %v1191 = vmul.f32 %v1166, %v1190
        %v1192 = vmin.f32 %v1191, 1.0
        %v1193 = vmax.f32 %v1192, -1.0
        %v1194 = vmul.f32 %v460, %v460
        %v1195 = vmin.f32 16.0, %v1194
        %v1196 = vmul.f32 %v1195, 2.1237322e-06
        %v1197 = vadd.f32 %v1196, 0.00028619796
        %v1198 = vmul.f32 %v1195, %v1197
        %v1199 = vadd.f32 %v1198, 0.0036580483
        %v1200 = vmul.f32 %v1195, %v1199
        %v1201 = vadd.f32 %v1200, 0.05243302
        %v1202 = vmul.f32 %v1195, %v1201
        %v1203 = vadd.f32 %v1202, 0.18741608
        %v1204 = vmul.f32 %v1195, %v1203
        %v1205 = vadd.f32 %v1204, 1.1283791
        %v1206 = vmul.f32 %v460, %v1205
        %v1207 = vmul.f32 %v1195, 3.8918573e-05
        %v1208 = vadd.f32 %v1207, 0.001143296
        %v1209 = vmul.f32 %v1195, %v1208
        %v1210 = vadd.f32 %v1209, 0.014752088
        %v1211 = vmul.f32 %v1195, %v1210
        %v1212 = vadd.f32 %v1211, 0.112945676
        %v1213 = vmul.f32 %v1195, %v1212
        %v1214 = vadd.f32 %v1213, 0.4994258
        %v1215 = vmul.f32 %v1195, %v1214
        %v1216 = vadd.f32 %v1215, 1.0
        %v1217 = vrcp.pop %v1216
        %v1218 = vmul.f32 %v1216, %v1217
        %v1219 = vsub.f32 1.0, %v1218
        %v1220 = vmul.f32 %v1217, %v1219
        %v1221 = vadd.f32 %v1217, %v1220
        %vm1222 = vweird.f32 %v1216
        %vm1223 = vweird.f32 %v1217
        %vm1224 = vmor %vm1222, %vm1223
        %v1225 = vsel %vm1224, %v1217, %v1221
        %v1226 = vand.u32 2147483647, %v1216
        %vm1227 = vcmp.eq.f32.partialorder %v1226, 8.507059e+37
        %v1228 = vand.u32 %v1216, 2147483648
        %v1229 = vor.u32 1.1754944e-38, %v1228
        %v1230 = vsel %vm1227, %v1229, %v1225
        %v1231 = vmul.f32 %v1206, %v1230
        %v1232 = vmin.f32 %v1231, 1.0
        %v1233 = vmax.f32 %v1232, -1.0
        %v1234 = vmul.f32 %v461, %v461
        %v1235 = vmin.f32 16.0, %v1234
        %v1236 = vmul.f32 %v1235, 2.1237322e-06
        %v1237 = vadd.f32 %v1236, 0.00028619796
        %v1238 = vmul.f32 %v1235, %v1237
        %v1239 = vadd.f32 %v1238, 0.0036580483
        %v1240 = vmul.f32 %v1235, %v1239
        %v1241 = vadd.f32 %v1240, 0.05243302
        %v1242 = vmul.f32 %v1235, %v1241
        %v1243 = vadd.f32 %v1242, 0.18741608
        %v1244 = vmul.f32 %v1235, %v1243
        %v1245 = vadd.f32 %v1244, 1.1283791
        %v1246 = vmul.f32 %v461, %v1245
        %v1247 = vmul.f32 %v1235, 3.8918573e-05
        %v1248 = vadd.f32 %v1247, 0.001143296
        %v1249 = vmul.f32 %v1235, %v1248
        %v1250 = vadd.f32 %v1249, 0.014752088
        %v1251 = vmul.f32 %v1235, %v1250
        %v1252 = vadd.f32 %v1251, 0.112945676
        %v1253 = vmul.f32 %v1235, %v1252
        %v1254 = vadd.f32 %v1253, 0.4994258
        %v1255 = vmul.f32 %v1235, %v1254
        %v1256 = vadd.f32 %v1255, 1.0
        %v1257 = vrcp.pop %v1256
        %v1258 = vmul.f32 %v1256, %v1257
        %v1259 = vsub.f32 1.0, %v1258
        %v1260 = vmul.f32 %v1257, %v1259
        %v1261 = vadd.f32 %v1257, %v1260
        %vm1262 = vweird.f32 %v1256
        %vm1263 = vweird.f32 %v1257
        %vm1264 = vmor %vm1262, %vm1263
        %v1265 = vsel %vm1264, %v1257, %v1261
        %v1266 = vand.u32 2147483647, %v1256
        %vm1267 = vcmp.eq.f32.partialorder %v1266, 8.507059e+37
        %v1268 = vand.u32 %v1256, 2147483648
        %v1269 = vor.u32 1.1754944e-38, %v1268
        %v1270 = vsel %vm1267, %v1269, %v1265
        %v1271 = vmul.f32 %v1246, %v1270
        %v1272 = vmin.f32 %v1271, 1.0
        %v1273 = vmax.f32 %v1272, -1.0
        %v1274 = vmul.f32 %v462, %v462
        %v1275 = vmin.f32 16.0, %v1274
        %v1276 = vmul.f32 %v1275, 2.1237322e-06
        %v1277 = vadd.f32 %v1276, 0.00028619796
        %v1278 = vmul.f32 %v1275, %v1277
        %v1279 = vadd.f32 %v1278, 0.0036580483
        %v1280 = vmul.f32 %v1275, %v1279
        %v1281 = vadd.f32 %v1280, 0.05243302
        %v1282 = vmul.f32 %v1275, %v1281
        %v1283 = vadd.f32 %v1282, 0.18741608
        %v1284 = vmul.f32 %v1275, %v1283
        %v1285 = vadd.f32 %v1284, 1.1283791
        %v1286 = vmul.f32 %v462, %v1285
        %v1287 = vmul.f32 %v1275, 3.8918573e-05
        %v1288 = vadd.f32 %v1287, 0.001143296
        %v1289 = vmul.f32 %v1275, %v1288
        %v1290 = vadd.f32 %v1289, 0.014752088
        %v1291 = vmul.f32 %v1275, %v1290
        %v1292 = vadd.f32 %v1291, 0.112945676
        %v1293 = vmul.f32 %v1275, %v1292
        %v1294 = vadd.f32 %v1293, 0.4994258
        %v1295 = vmul.f32 %v1275, %v1294
        %v1296 = vadd.f32 %v1295, 1.0
        %v1297 = vrcp.pop %v1296
        %v1298 = vmul.f32 %v1296, %v1297
        %v1299 = vsub.f32 1.0, %v1298
        %v1300 = vmul.f32 %v1297, %v1299
        %v1301 = vadd.f32 %v1297, %v1300
        %vm1302 = vweird.f32 %v1296
        %vm1303 = vweird.f32 %v1297
        %vm1304 = vmor %vm1302, %vm1303
        %v1305 = vsel %vm1304, %v1297, %v1301
        %v1306 = vand.u32 2147483647, %v1296
        %vm1307 = vcmp.eq.f32.partialorder %v1306, 8.507059e+37
        %v1308 = vand.u32 %v1296, 2147483648
        %v1309 = vor.u32 1.1754944e-38, %v1308
        %v1310 = vsel %vm1307, %v1309, %v1305
        %v1311 = vmul.f32 %v1286, %v1310
        %v1312 = vmin.f32 %v1311, 1.0
        %v1313 = vmax.f32 %v1312, -1.0
        %v1314 = vmul.f32 %v463, %v463
        %v1315 = vmin.f32 16.0, %v1314
        %v1316 = vmul.f32 %v1315, 2.1237322e-06
        %v1317 = vadd.f32 %v1316, 0.00028619796
        %v1318 = vmul.f32 %v1315, %v1317
        %v1319 = vadd.f32 %v1318, 0.0036580483
        %v1320 = vmul.f32 %v1315, %v1319
        %v1321 = vadd.f32 %v1320, 0.05243302
        %v1322 = vmul.f32 %v1315, %v1321
        %v1323 = vadd.f32 %v1322, 0.18741608
        %v1324 = vmul.f32 %v1315, %v1323
        %v1325 = vadd.f32 %v1324, 1.1283791
        %v1326 = vmul.f32 %v463, %v1325
        %v1327 = vmul.f32 %v1315, 3.8918573e-05
        %v1328 = vadd.f32 %v1327, 0.001143296
        %v1329 = vmul.f32 %v1315, %v1328
        %v1330 = vadd.f32 %v1329, 0.014752088
        %v1331 = vmul.f32 %v1315, %v1330
        %v1332 = vadd.f32 %v1331, 0.112945676
        %v1333 = vmul.f32 %v1315, %v1332
        %v1334 = vadd.f32 %v1333, 0.4994258
        %v1335 = vmul.f32 %v1315, %v1334
        %v1336 = vadd.f32 %v1335, 1.0
        %v1337 = vrcp.pop %v1336
        %v1338 = vmul.f32 %v1336, %v1337
        %v1339 = vsub.f32 1.0, %v1338
        %v1340 = vmul.f32 %v1337, %v1339
        %v1341 = vadd.f32 %v1337, %v1340
        %vm1342 = vweird.f32 %v1336
        %vm1343 = vweird.f32 %v1337
        %vm1344 = vmor %vm1342, %vm1343
        %v1345 = vsel %vm1344, %v1337, %v1341
        %v1346 = vand.u32 2147483647, %v1336
        %vm1347 = vcmp.eq.f32.partialorder %v1346, 8.507059e+37
        %v1348 = vand.u32 %v1336, 2147483648
        %v1349 = vor.u32 1.1754944e-38, %v1348
        %v1350 = vsel %vm1347, %v1349, %v1345
        %v1351 = vmul.f32 %v1326, %v1350
        %v1352 = vmin.f32 %v1351, 1.0
        %v1353 = vmax.f32 %v1352, -1.0
        %v1354 = vmul.f32 %v464, %v464
        %v1355 = vmin.f32 16.0, %v1354
        %v1356 = vmul.f32 %v1355, 2.1237322e-06
        %v1357 = vadd.f32 %v1356, 0.00028619796
        %v1358 = vmul.f32 %v1355, %v1357
        %v1359 = vadd.f32 %v1358, 0.0036580483
        %v1360 = vmul.f32 %v1355, %v1359
        %v1361 = vadd.f32 %v1360, 0.05243302
        %v1362 = vmul.f32 %v1355, %v1361
        %v1363 = vadd.f32 %v1362, 0.18741608
        %v1364 = vmul.f32 %v1355, %v1363
        %v1365 = vadd.f32 %v1364, 1.1283791
        %v1366 = vmul.f32 %v464, %v1365
        %v1367 = vmul.f32 %v1355, 3.8918573e-05
        %v1368 = vadd.f32 %v1367, 0.001143296
        %v1369 = vmul.f32 %v1355, %v1368
        %v1370 = vadd.f32 %v1369, 0.014752088
        %v1371 = vmul.f32 %v1355, %v1370
        %v1372 = vadd.f32 %v1371, 0.112945676
        %v1373 = vmul.f32 %v1355, %v1372
        %v1374 = vadd.f32 %v1373, 0.4994258
        %v1375 = vmul.f32 %v1355, %v1374
        %v1376 = vadd.f32 %v1375, 1.0
        %v1377 = vrcp.pop %v1376
        %v1378 = vmul.f32 %v1376, %v1377
        %v1379 = vsub.f32 1.0, %v1378
        %v1380 = vmul.f32 %v1377, %v1379
        %v1381 = vadd.f32 %v1377, %v1380
        %vm1382 = vweird.f32 %v1376
        %vm1383 = vweird.f32 %v1377
        %vm1384 = vmor %vm1382, %vm1383
        %v1385 = vsel %vm1384, %v1377, %v1381
        %v1386 = vand.u32 2147483647, %v1376
        %vm1387 = vcmp.eq.f32.partialorder %v1386, 8.507059e+37
        %v1388 = vand.u32 %v1376, 2147483648
        %v1389 = vor.u32 1.1754944e-38, %v1388
        %v1390 = vsel %vm1387, %v1389, %v1385
        %v1391 = vmul.f32 %v1366, %v1390
        %v1392 = vmin.f32 %v1391, 1.0
        %v1393 = vmax.f32 %v1392, -1.0
        %v1394 = vmul.f32 %v465, %v465
        %v1395 = vmin.f32 16.0, %v1394
        %v1396 = vmul.f32 %v1395, 2.1237322e-06
        %v1397 = vadd.f32 %v1396, 0.00028619796
        %v1398 = vmul.f32 %v1395, %v1397
        %v1399 = vadd.f32 %v1398, 0.0036580483
        %v1400 = vmul.f32 %v1395, %v1399
        %v1401 = vadd.f32 %v1400, 0.05243302
        %v1402 = vmul.f32 %v1395, %v1401
        %v1403 = vadd.f32 %v1402, 0.18741608
        %v1404 = vmul.f32 %v1395, %v1403
        %v1405 = vadd.f32 %v1404, 1.1283791
        %v1406 = vmul.f32 %v465, %v1405
        %v1407 = vmul.f32 %v1395, 3.8918573e-05
        %v1408 = vadd.f32 %v1407, 0.001143296
        %v1409 = vmul.f32 %v1395, %v1408
        %v1410 = vadd.f32 %v1409, 0.014752088
        %v1411 = vmul.f32 %v1395, %v1410
        %v1412 = vadd.f32 %v1411, 0.112945676
        %v1413 = vmul.f32 %v1395, %v1412
        %v1414 = vadd.f32 %v1413, 0.4994258
        %v1415 = vmul.f32 %v1395, %v1414
        %v1416 = vadd.f32 %v1415, 1.0
        %v1417 = vrcp.pop %v1416
        %v1418 = vmul.f32 %v1416, %v1417
        %v1419 = vsub.f32 1.0, %v1418
        %v1420 = vmul.f32 %v1417, %v1419
        %v1421 = vadd.f32 %v1417, %v1420
        %vm1422 = vweird.f32 %v1416
        %vm1423 = vweird.f32 %v1417
        %vm1424 = vmor %vm1422, %vm1423
        %v1425 = vsel %vm1424, %v1417, %v1421
        %v1426 = vand.u32 2147483647, %v1416
        %vm1427 = vcmp.eq.f32.partialorder %v1426, 8.507059e+37
        %v1428 = vand.u32 %v1416, 2147483648
        %v1429 = vor.u32 1.1754944e-38, %v1428
        %v1430 = vsel %vm1427, %v1429, %v1425
        %v1431 = vmul.f32 %v1406, %v1430
        %v1432 = vmin.f32 %v1431, 1.0
        %v1433 = vmax.f32 %v1432, -1.0
        %v1434 = vmul.f32 %v466, %v466
        %v1435 = vmin.f32 16.0, %v1434
        %v1436 = vmul.f32 %v1435, 2.1237322e-06
        %v1437 = vadd.f32 %v1436, 0.00028619796
        %v1438 = vmul.f32 %v1435, %v1437
        %v1439 = vadd.f32 %v1438, 0.0036580483
        %v1440 = vmul.f32 %v1435, %v1439
        %v1441 = vadd.f32 %v1440, 0.05243302
        %v1442 = vmul.f32 %v1435, %v1441
        %v1443 = vadd.f32 %v1442, 0.18741608
        %v1444 = vmul.f32 %v1435, %v1443
        %v1445 = vadd.f32 %v1444, 1.1283791
        %v1446 = vmul.f32 %v466, %v1445
        %v1447 = vmul.f32 %v1435, 3.8918573e-05
        %v1448 = vadd.f32 %v1447, 0.001143296
        %v1449 = vmul.f32 %v1435, %v1448
        %v1450 = vadd.f32 %v1449, 0.014752088
        %v1451 = vmul.f32 %v1435, %v1450
        %v1452 = vadd.f32 %v1451, 0.112945676
        %v1453 = vmul.f32 %v1435, %v1452
        %v1454 = vadd.f32 %v1453, 0.4994258
        %v1455 = vmul.f32 %v1435, %v1454
        %v1456 = vadd.f32 %v1455, 1.0
        %v1457 = vrcp.pop %v1456
        %v1458 = vmul.f32 %v1456, %v1457
        %v1459 = vsub.f32 1.0, %v1458
        %v1460 = vmul.f32 %v1457, %v1459
        %v1461 = vadd.f32 %v1457, %v1460
        %vm1462 = vweird.f32 %v1456
        %vm1463 = vweird.f32 %v1457
        %vm1464 = vmor %vm1462, %vm1463
        %v1465 = vsel %vm1464, %v1457, %v1461
        %v1466 = vand.u32 2147483647, %v1456
        %vm1467 = vcmp.eq.f32.partialorder %v1466, 8.507059e+37
        %v1468 = vand.u32 %v1456, 2147483648
        %v1469 = vor.u32 1.1754944e-38, %v1468
        %v1470 = vsel %vm1467, %v1469, %v1465
        %v1471 = vmul.f32 %v1446, %v1470
        %v1472 = vmin.f32 %v1471, 1.0
        %v1473 = vmax.f32 %v1472, -1.0
        %v1474 = vmul.f32 %v467, %v467
        %v1475 = vmin.f32 16.0, %v1474
        %v1476 = vmul.f32 %v1475, 2.1237322e-06
        %v1477 = vadd.f32 %v1476, 0.00028619796
        %v1478 = vmul.f32 %v1475, %v1477
        %v1479 = vadd.f32 %v1478, 0.0036580483
        %v1480 = vmul.f32 %v1475, %v1479
        %v1481 = vadd.f32 %v1480, 0.05243302
        %v1482 = vmul.f32 %v1475, %v1481
        %v1483 = vadd.f32 %v1482, 0.18741608
        %v1484 = vmul.f32 %v1475, %v1483
        %v1485 = vadd.f32 %v1484, 1.1283791
        %v1486 = vmul.f32 %v467, %v1485
        %v1487 = vmul.f32 %v1475, 3.8918573e-05
        %v1488 = vadd.f32 %v1487, 0.001143296
        %v1489 = vmul.f32 %v1475, %v1488
        %v1490 = vadd.f32 %v1489, 0.014752088
        %v1491 = vmul.f32 %v1475, %v1490
        %v1492 = vadd.f32 %v1491, 0.112945676
        %v1493 = vmul.f32 %v1475, %v1492
        %v1494 = vadd.f32 %v1493, 0.4994258
        %v1495 = vmul.f32 %v1475, %v1494
        %v1496 = vadd.f32 %v1495, 1.0
        %v1497 = vrcp.pop %v1496
        %v1498 = vmul.f32 %v1496, %v1497
        %v1499 = vsub.f32 1.0, %v1498
        %v1500 = vmul.f32 %v1497, %v1499
        %v1501 = vadd.f32 %v1497, %v1500
        %vm1502 = vweird.f32 %v1496
        %vm1503 = vweird.f32 %v1497
        %vm1504 = vmor %vm1502, %vm1503
        %v1505 = vsel %vm1504, %v1497, %v1501
        %v1506 = vand.u32 2147483647, %v1496
        %vm1507 = vcmp.eq.f32.partialorder %v1506, 8.507059e+37
        %v1508 = vand.u32 %v1496, 2147483648
        %v1509 = vor.u32 1.1754944e-38, %v1508
        %v1510 = vsel %vm1507, %v1509, %v1505
        %v1511 = vmul.f32 %v1486, %v1510
        %v1512 = vmin.f32 %v1511, 1.0
        %v1513 = vmax.f32 %v1512, -1.0
        %v1514 = vmul.f32 %v468, %v468
        %v1515 = vmin.f32 16.0, %v1514
        %v1516 = vmul.f32 %v1515, 2.1237322e-06
        %v1517 = vadd.f32 %v1516, 0.00028619796
        %v1518 = vmul.f32 %v1515, %v1517
        %v1519 = vadd.f32 %v1518, 0.0036580483
        %v1520 = vmul.f32 %v1515, %v1519
        %v1521 = vadd.f32 %v1520, 0.05243302
        %v1522 = vmul.f32 %v1515, %v1521
        %v1523 = vadd.f32 %v1522, 0.18741608
        %v1524 = vmul.f32 %v1515, %v1523
        %v1525 = vadd.f32 %v1524, 1.1283791
        %v1526 = vmul.f32 %v468, %v1525
        %v1527 = vmul.f32 %v1515, 3.8918573e-05
        %v1528 = vadd.f32 %v1527, 0.001143296
        %v1529 = vmul.f32 %v1515, %v1528
        %v1530 = vadd.f32 %v1529, 0.014752088
        %v1531 = vmul.f32 %v1515, %v1530
        %v1532 = vadd.f32 %v1531, 0.112945676
        %v1533 = vmul.f32 %v1515, %v1532
        %v1534 = vadd.f32 %v1533, 0.4994258
        %v1535 = vmul.f32 %v1515, %v1534
        %v1536 = vadd.f32 %v1535, 1.0
        %v1537 = vrcp.pop %v1536
        %v1538 = vmul.f32 %v1536, %v1537
        %v1539 = vsub.f32 1.0, %v1538
        %v1540 = vmul.f32 %v1537, %v1539
        %v1541 = vadd.f32 %v1537, %v1540
        %vm1542 = vweird.f32 %v1536
        %vm1543 = vweird.f32 %v1537
        %vm1544 = vmor %vm1542, %vm1543
        %v1545 = vsel %vm1544, %v1537, %v1541
        %v1546 = vand.u32 2147483647, %v1536
        %vm1547 = vcmp.eq.f32.partialorder %v1546, 8.507059e+37
        %v1548 = vand.u32 %v1536, 2147483648
        %v1549 = vor.u32 1.1754944e-38, %v1548
        %v1550 = vsel %vm1547, %v1549, %v1545
        %v1551 = vmul.f32 %v1526, %v1550
        %v1552 = vmin.f32 %v1551, 1.0
        %v1553 = vmax.f32 %v1552, -1.0
        %v1554 = vmul.f32 %v469, %v469
        %v1555 = vmin.f32 16.0, %v1554
        %v1556 = vmul.f32 %v1555, 2.1237322e-06
        %v1557 = vadd.f32 %v1556, 0.00028619796
        %v1558 = vmul.f32 %v1555, %v1557
        %v1559 = vadd.f32 %v1558, 0.0036580483
        %v1560 = vmul.f32 %v1555, %v1559
        %v1561 = vadd.f32 %v1560, 0.05243302
        %v1562 = vmul.f32 %v1555, %v1561
        %v1563 = vadd.f32 %v1562, 0.18741608
        %v1564 = vmul.f32 %v1555, %v1563
        %v1565 = vadd.f32 %v1564, 1.1283791
        %v1566 = vmul.f32 %v469, %v1565
        %v1567 = vmul.f32 %v1555, 3.8918573e-05
        %v1568 = vadd.f32 %v1567, 0.001143296
        %v1569 = vmul.f32 %v1555, %v1568
        %v1570 = vadd.f32 %v1569, 0.014752088
        %v1571 = vmul.f32 %v1555, %v1570
        %v1572 = vadd.f32 %v1571, 0.112945676
        %v1573 = vmul.f32 %v1555, %v1572
        %v1574 = vadd.f32 %v1573, 0.4994258
        %v1575 = vmul.f32 %v1555, %v1574
        %v1576 = vadd.f32 %v1575, 1.0
        %v1577 = vrcp.pop %v1576
        %v1578 = vmul.f32 %v1576, %v1577
        %v1579 = vsub.f32 1.0, %v1578
        %v1580 = vmul.f32 %v1577, %v1579
        %v1581 = vadd.f32 %v1577, %v1580
        %vm1582 = vweird.f32 %v1576
        %vm1583 = vweird.f32 %v1577
        %vm1584 = vmor %vm1582, %vm1583
        %v1585 = vsel %vm1584, %v1577, %v1581
        %v1586 = vand.u32 2147483647, %v1576
        %vm1587 = vcmp.eq.f32.partialorder %v1586, 8.507059e+37
        %v1588 = vand.u32 %v1576, 2147483648
        %v1589 = vor.u32 1.1754944e-38, %v1588
        %v1590 = vsel %vm1587, %v1589, %v1585
        %v1591 = vmul.f32 %v1566, %v1590
        %v1592 = vmin.f32 %v1591, 1.0
        %v1593 = vmax.f32 %v1592, -1.0
        %v1594 = vmul.f32 %v470, %v470
        %v1595 = vmin.f32 16.0, %v1594
        %v1596 = vmul.f32 %v1595, 2.1237322e-06
        %v1597 = vadd.f32 %v1596, 0.00028619796
        %v1598 = vmul.f32 %v1595, %v1597
        %v1599 = vadd.f32 %v1598, 0.0036580483
        %v1600 = vmul.f32 %v1595, %v1599
        %v1601 = vadd.f32 %v1600, 0.05243302
        %v1602 = vmul.f32 %v1595, %v1601
        %v1603 = vadd.f32 %v1602, 0.18741608
        %v1604 = vmul.f32 %v1595, %v1603
        %v1605 = vadd.f32 %v1604, 1.1283791
        %v1606 = vmul.f32 %v470, %v1605
        %v1607 = vmul.f32 %v1595, 3.8918573e-05
        %v1608 = vadd.f32 %v1607, 0.001143296
        %v1609 = vmul.f32 %v1595, %v1608
        %v1610 = vadd.f32 %v1609, 0.014752088
        %v1611 = vmul.f32 %v1595, %v1610
        %v1612 = vadd.f32 %v1611, 0.112945676
        %v1613 = vmul.f32 %v1595, %v1612
        %v1614 = vadd.f32 %v1613, 0.4994258
        %v1615 = vmul.f32 %v1595, %v1614
        %v1616 = vadd.f32 %v1615, 1.0
        %v1617 = vrcp.pop %v1616
        %v1618 = vmul.f32 %v1616, %v1617
        %v1619 = vsub.f32 1.0, %v1618
        %v1620 = vmul.f32 %v1617, %v1619
        %v1621 = vadd.f32 %v1617, %v1620
        %vm1622 = vweird.f32 %v1616
        %vm1623 = vweird.f32 %v1617
        %vm1624 = vmor %vm1622, %vm1623
        %v1625 = vsel %vm1624, %v1617, %v1621
        %v1626 = vand.u32 2147483647, %v1616
        %vm1627 = vcmp.eq.f32.partialorder %v1626, 8.507059e+37
        %v1628 = vand.u32 %v1616, 2147483648
        %v1629 = vor.u32 1.1754944e-38, %v1628
        %v1630 = vsel %vm1627, %v1629, %v1625
        %v1631 = vmul.f32 %v1606, %v1630
        %v1632 = vmin.f32 %v1631, 1.0
        %v1633 = vmax.f32 %v1632, -1.0
        %v1634 = vmul.f32 %v471, %v471
        %v1635 = vmin.f32 16.0, %v1634
        %v1636 = vmul.f32 %v1635, 2.1237322e-06
        %v1637 = vadd.f32 %v1636, 0.00028619796
        %v1638 = vmul.f32 %v1635, %v1637
        %v1639 = vadd.f32 %v1638, 0.0036580483
        %v1640 = vmul.f32 %v1635, %v1639
        %v1641 = vadd.f32 %v1640, 0.05243302
        %v1642 = vmul.f32 %v1635, %v1641
        %v1643 = vadd.f32 %v1642, 0.18741608
        %v1644 = vmul.f32 %v1635, %v1643
        %v1645 = vadd.f32 %v1644, 1.1283791
        %v1646 = vmul.f32 %v471, %v1645
        %v1647 = vmul.f32 %v1635, 3.8918573e-05
        %v1648 = vadd.f32 %v1647, 0.001143296
        %v1649 = vmul.f32 %v1635, %v1648
        %v1650 = vadd.f32 %v1649, 0.014752088
        %v1651 = vmul.f32 %v1635, %v1650
        %v1652 = vadd.f32 %v1651, 0.112945676
        %v1653 = vmul.f32 %v1635, %v1652
        %v1654 = vadd.f32 %v1653, 0.4994258
        %v1655 = vmul.f32 %v1635, %v1654
        %v1656 = vadd.f32 %v1655, 1.0
        %v1657 = vrcp.pop %v1656
        %v1658 = vmul.f32 %v1656, %v1657
        %v1659 = vsub.f32 1.0, %v1658
        %v1660 = vmul.f32 %v1657, %v1659
        %v1661 = vadd.f32 %v1657, %v1660
        %vm1662 = vweird.f32 %v1656
        %vm1663 = vweird.f32 %v1657
        %vm1664 = vmor %vm1662, %vm1663
        %v1665 = vsel %vm1664, %v1657, %v1661
        %v1666 = vand.u32 2147483647, %v1656
        %vm1667 = vcmp.eq.f32.partialorder %v1666, 8.507059e+37
        %v1668 = vand.u32 %v1656, 2147483648
        %v1669 = vor.u32 1.1754944e-38, %v1668
        %v1670 = vsel %vm1667, %v1669, %v1665
        %v1671 = vmul.f32 %v1646, %v1670
        %v1672 = vmin.f32 %v1671, 1.0
        %v1673 = vmax.f32 %v1672, -1.0
        %v1674 = vmul.f32 %v472, %v472
        %v1675 = vmin.f32 16.0, %v1674
        %v1676 = vmul.f32 %v1675, 2.1237322e-06
        %v1677 = vadd.f32 %v1676, 0.00028619796
        %v1678 = vmul.f32 %v1675, %v1677
        %v1679 = vadd.f32 %v1678, 0.0036580483
        %v1680 = vmul.f32 %v1675, %v1679
        %v1681 = vadd.f32 %v1680, 0.05243302
        %v1682 = vmul.f32 %v1675, %v1681
        %v1683 = vadd.f32 %v1682, 0.18741608
        %v1684 = vmul.f32 %v1675, %v1683
        %v1685 = vadd.f32 %v1684, 1.1283791
        %v1686 = vmul.f32 %v472, %v1685
        %v1687 = vmul.f32 %v1675, 3.8918573e-05
        %v1688 = vadd.f32 %v1687, 0.001143296
        %v1689 = vmul.f32 %v1675, %v1688
        %v1690 = vadd.f32 %v1689, 0.014752088
        %v1691 = vmul.f32 %v1675, %v1690
        %v1692 = vadd.f32 %v1691, 0.112945676
        %v1693 = vmul.f32 %v1675, %v1692
        %v1694 = vadd.f32 %v1693, 0.4994258
        %v1695 = vmul.f32 %v1675, %v1694
        %v1696 = vadd.f32 %v1695, 1.0
        %v1697 = vrcp.pop %v1696
        %v1698 = vmul.f32 %v1696, %v1697
        %v1699 = vsub.f32 1.0, %v1698
        %v1700 = vmul.f32 %v1697, %v1699
        %v1701 = vadd.f32 %v1697, %v1700
        %vm1702 = vweird.f32 %v1696
        %vm1703 = vweird.f32 %v1697
        %vm1704 = vmor %vm1702, %vm1703
        %v1705 = vsel %vm1704, %v1697, %v1701
        %v1706 = vand.u32 2147483647, %v1696
        %vm1707 = vcmp.eq.f32.partialorder %v1706, 8.507059e+37
        %v1708 = vand.u32 %v1696, 2147483648
        %v1709 = vor.u32 1.1754944e-38, %v1708
        %v1710 = vsel %vm1707, %v1709, %v1705
        %v1711 = vmul.f32 %v1686, %v1710
        %v1712 = vmin.f32 %v1711, 1.0
        %v1713 = vmax.f32 %v1712, -1.0
        %v1714 = vmul.f32 %v473, %v473
        %v1715 = vmin.f32 16.0, %v1714
        %v1716 = vmul.f32 %v1715, 2.1237322e-06
        %v1717 = vadd.f32 %v1716, 0.00028619796
        %v1718 = vmul.f32 %v1715, %v1717
        %v1719 = vadd.f32 %v1718, 0.0036580483
        %v1720 = vmul.f32 %v1715, %v1719
        %v1721 = vadd.f32 %v1720, 0.05243302
        %v1722 = vmul.f32 %v1715, %v1721
        %v1723 = vadd.f32 %v1722, 0.18741608
        %v1724 = vmul.f32 %v1715, %v1723
        %v1725 = vadd.f32 %v1724, 1.1283791
        %v1726 = vmul.f32 %v473, %v1725
        %v1727 = vmul.f32 %v1715, 3.8918573e-05
        %v1728 = vadd.f32 %v1727, 0.001143296
        %v1729 = vmul.f32 %v1715, %v1728
        %v1730 = vadd.f32 %v1729, 0.014752088
        %v1731 = vmul.f32 %v1715, %v1730
        %v1732 = vadd.f32 %v1731, 0.112945676
        %v1733 = vmul.f32 %v1715, %v1732
        %v1734 = vadd.f32 %v1733, 0.4994258
        %v1735 = vmul.f32 %v1715, %v1734
        %v1736 = vadd.f32 %v1735, 1.0
        %v1737 = vrcp.pop %v1736
        %v1738 = vmul.f32 %v1736, %v1737
        %v1739 = vsub.f32 1.0, %v1738
        %v1740 = vmul.f32 %v1737, %v1739
        %v1741 = vadd.f32 %v1737, %v1740
        %vm1742 = vweird.f32 %v1736
        %vm1743 = vweird.f32 %v1737
        %vm1744 = vmor %vm1742, %vm1743
        %v1745 = vsel %vm1744, %v1737, %v1741
        %v1746 = vand.u32 2147483647, %v1736
        %vm1747 = vcmp.eq.f32.partialorder %v1746, 8.507059e+37
        %v1748 = vand.u32 %v1736, 2147483648
        %v1749 = vor.u32 1.1754944e-38, %v1748
        %v1750 = vsel %vm1747, %v1749, %v1745
        %v1751 = vmul.f32 %v1726, %v1750
        %v1752 = vmin.f32 %v1751, 1.0
        %v1753 = vmax.f32 %v1752, -1.0
        %v1754 = vadd.f32 %v513, 1.0
        %v1755 = vadd.f32 %v553, 1.0
        %v1756 = vadd.f32 %v593, 1.0
        %v1757 = vadd.f32 %v633, 1.0
        %v1758 = vadd.f32 %v673, 1.0
        %v1759 = vadd.f32 %v713, 1.0
        %v1760 = vadd.f32 %v753, 1.0
        %v1761 = vadd.f32 %v793, 1.0
        %v1762 = vadd.f32 %v833, 1.0
        %v1763 = vadd.f32 %v873, 1.0
        %v1764 = vadd.f32 %v913, 1.0
        %v1765 = vadd.f32 %v953, 1.0
        %v1766 = vadd.f32 %v993, 1.0
        %v1767 = vadd.f32 %v1033, 1.0
        %v1768 = vadd.f32 %v1073, 1.0
        %v1769 = vadd.f32 %v1113, 1.0
        %v1770 = vadd.f32 %v1153, 1.0
        %v1771 = vadd.f32 %v1193, 1.0
        %v1772 = vadd.f32 %v1233, 1.0
        %v1773 = vadd.f32 %v1273, 1.0
        %v1774 = vadd.f32 %v1313, 1.0
        %v1775 = vadd.f32 %v1353, 1.0
        %v1776 = vadd.f32 %v1393, 1.0
        %v1777 = vadd.f32 %v1433, 1.0
        %v1778 = vadd.f32 %v1473, 1.0
        %v1779 = vadd.f32 %v1513, 1.0
        %v1780 = vadd.f32 %v1553, 1.0
        %v1781 = vadd.f32 %v1593, 1.0
        %v1782 = vadd.f32 %v1633, 1.0
        %v1783 = vadd.f32 %v1673, 1.0
        %v1784 = vadd.f32 %v1713, 1.0
        %v1785 = vadd.f32 %v1753, 1.0
        %v1786 = vmul.f32 %v410, %v1754
        %v1787 = vmul.f32 %v411, %v1755
        %v1788 = vmul.f32 %v412, %v1756
        %v1789 = vmul.f32 %v413, %v1757
        %v1790 = vmul.f32 %v414, %v1758
        %v1791 = vmul.f32 %v415, %v1759
        %v1792 = vmul.f32 %v416, %v1760
        %v1793 = vmul.f32 %v417, %v1761
        %v1794 = vmul.f32 %v418, %v1762
        %v1795 = vmul.f32 %v419, %v1763
        %v1796 = vmul.f32 %v420, %v1764
        %v1797 = vmul.f32 %v421, %v1765
        %v1798 = vmul.f32 %v422, %v1766
        %v1799 = vmul.f32 %v423, %v1767
        %v1800 = vmul.f32 %v424, %v1768
        %v1801 = vmul.f32 %v425, %v1769
        %v1802 = vmul.f32 %v426, %v1770
        %v1803 = vmul.f32 %v427, %v1771
        %v1804 = vmul.f32 %v428, %v1772
        %v1805 = vmul.f32 %v429, %v1773
        %v1806 = vmul.f32 %v430, %v1774
        %v1807 = vmul.f32 %v431, %v1775
        %v1808 = vmul.f32 %v432, %v1776
        %v1809 = vmul.f32 %v433, %v1777
        %v1810 = vmul.f32 %v434, %v1778
        %v1811 = vmul.f32 %v435, %v1779
        %v1812 = vmul.f32 %v436, %v1780
        %v1813 = vmul.f32 %v437, %v1781
        %v1814 = vmul.f32 %v438, %v1782
        %v1815 = vmul.f32 %v439, %v1783
        %v1816 = vmul.f32 %v440, %v1784
        %v1817 = vmul.f32 %v441, %v1785
        %1818 = vst [vmem:[%s207] sm:$0xff] %v1786
        %1819 = vst [vmem:[%s207 + $0x8] sm:$0xff] %v1787
        %1820 = vst [vmem:[%s207 + $0x10] sm:$0xff] %v1788
        %1821 = vst [vmem:[%s207 + $0x18] sm:$0xff] %v1789
        %1822 = vst [vmem:[%s207 + $0x20] sm:$0xff] %v1790
        %1823 = vst [vmem:[%s207 + $0x28] sm:$0xff] %v1791
        %1824 = vst [vmem:[%s207 + $0x30] sm:$0xff] %v1792
        %1825 = vst [vmem:[%s207 + $0x38] sm:$0xff] %v1793
        %1826 = vst [vmem:[%s207 + $0x40] sm:$0xff] %v1794
        %1827 = vst [vmem:[%s207 + $0x48] sm:$0xff] %v1795
        %1828 = vst [vmem:[%s207 + $0x50] sm:$0xff] %v1796
        %1829 = vst [vmem:[%s207 + $0x58] sm:$0xff] %v1797
        %1830 = vst [vmem:[%s207 + $0x60] sm:$0xff] %v1798
        %1831 = vst [vmem:[%s207 + $0x68] sm:$0xff] %v1799
        %1832 = vst [vmem:[%s207 + $0x70] sm:$0xff] %v1800
        %1833 = vst [vmem:[%s207 + $0x78] sm:$0xff] %v1801
        %1834 = vst [vmem:[%s207 + $0x80] sm:$0xff] %v1802
        %1835 = vst [vmem:[%s207 + $0x88] sm:$0xff] %v1803
        %1836 = vst [vmem:[%s207 + $0x90] sm:$0xff] %v1804
        %1837 = vst [vmem:[%s207 + $0x98] sm:$0xff] %v1805
        %1838 = vst [vmem:[%s207 + $0xa0] sm:$0xff] %v1806
        %1839 = vst [vmem:[%s207 + $0xa8] sm:$0xff] %v1807
        %1840 = vst [vmem:[%s207 + $0xb0] sm:$0xff] %v1808
        %1841 = vst [vmem:[%s207 + $0xb8] sm:$0xff] %v1809
        %1842 = vst [vmem:[%s207 + $0xc0] sm:$0xff] %v1810
        %1843 = vst [vmem:[%s207 + $0xc8] sm:$0xff] %v1811
        %1844 = vst [vmem:[%s207 + $0xd0] sm:$0xff] %v1812
        %1845 = vst [vmem:[%s207 + $0xd8] sm:$0xff] %v1813
        %1846 = vst [vmem:[%s207 + $0xe0] sm:$0xff] %v1814
        %1847 = vst [vmem:[%s207 + $0xe8] sm:$0xff] %v1815
        %1848 = vst [vmem:[%s207 + $0xf0] sm:$0xff] %v1816
        %1849 = vst [vmem:[%s207 + $0xf8] sm:$0xff] %v1817
        %s1850 = sand.u32 %s97, 1
        %s1851 = scalar_lea.sflag [#allocation4], %s1850
        %s1852 = sand.u32 %s97, 1
        %s1853 = smul.addr %s1852, 256
        %s1854 = scalar_lea.vmem [#allocation7], %s1853
        // Predicated region
        $region41: #{tpu_custom_call.1} parent=31 // pred_check
          %p1855 = pneg %p107
        $region42: #{tpu_custom_call.1} parent=31 // pred_check_branch
          %1857 = sbr.rel (%p1855) target = $region44
        $region43: #{tpu_custom_call.1} parent=31 // pred_region
          %1859 = vsyncadd %s1851, 0
          %s1860 = smul.addr %s21, 32
          %s1861 = smul.addr %s1860, 8
          %s1862 = scalar_lea.hbm %s3, %s1861
          %s1863 = sshll.u32 %s1854, 4
          %s1864 = int_to_ptr.vmem [resolvable:$true] %s1863
          %s1865 = sshll.u32 %s1862, 4
          %s1866 = int_to_ptr.hbm [resolvable:$true] %s1865
          %1871 = dma.vmem_to_hbm [thread:$0]  %s1864, 4096, %s1866, %s1851, 128, 128, 8
        $region44: #{tpu_custom_call.1} parent=31 // pred_fallthru
          _
      $region32: #{tpu_custom_call.1} parent=5 // pred_fallthru
        _
      %p1872 = scmp.le.s32.totalorder 2, %s16
      // Predicated region
      $region45: #{tpu_custom_call.1} parent=5 // pred_check
        %p1873 = pneg %p1872
      $region46: #{tpu_custom_call.1} parent=5 // pred_check_branch
        %1875 = sbr.rel (%p1873) target = $region48
      $region47: #{tpu_custom_call.1} parent=5 // pred_region
        %s1876 = ssub.s32 %s16, 2
        // Predicated region
        $region49: #{tpu_custom_call.1} parent=47 // pred_check
          %p1877 = pneg %p113
        $region50: #{tpu_custom_call.1} parent=47 // pred_check_branch
          %1879 = sbr.rel (%p1877) target = $region52
        $region51: #{tpu_custom_call.1} parent=47 // pred_region
          %s1880 = sand.u32 %s98, 1
          %s1881 = scalar_lea.sflag [#allocation4], %s1880
          %s1882 = sand.u32 %s98, 1
          %s1883 = smul.addr %s1882, 256
          %s1884 = scalar_lea.vmem [#allocation7], %s1883
          %1886 = dma.done %s1881, 4096
        $region52: #{tpu_custom_call.1} parent=47 // pred_fallthru
          _
      $region48: #{tpu_custom_call.1} parent=5 // pred_fallthru
        _
    $region6: #{tpu_custom_call.1} parent=1 // loop_footer
      %s20 = sadd.s32 1, %s16
    $region7: #{tpu_custom_call.1} parent=1 // loop_footer_branch
      %15 = sbr.rel target = $region3
    $region8: #{tpu_custom_call.1} parent=1 // loop_exit
      _
    %1887 = vsyncpa [#allocation3], 1
    %s1888 = scalar_lea.sflag [#allocation3], 1
    %1889 = vsyncpa %s1888, 1
    %1890 = vsyncpa [#allocation6], 1
    %1891 = vsyncpa [#allocation4], 1
    %s1892 = scalar_lea.sflag [#allocation4], 1
    %1893 = vsyncpa %s1892, 1

</llo_original>
